<compile_context>
chip_gen: v7x
topology: tpu7x:2x2x1
jax: 0.10.0
libtpu: 0.0.40
codegen_flags: <defaults>
</compile_context>

<pallas_src>
import functools

import jax
import jax.numpy as jnp
from jax import lax
from jax.experimental import pallas as pl
from jax.experimental.pallas import tpu as pltpu


def _corr_kernel(f1_ref, g_ref, corr_ref, *, C, P, PATCH, P1, P2, CHUNK):
    """Correlation volume for one (batch, lane-chunk) grid step.

    f1_ref  : (1, C, CHUNK)          frame1, flattened over (y, x)
    g_ref   : (1, C, P, P, CHUNK)    g[c, i, j, yx] = f2pad[c, y+i, x+j]
    corr_ref: (1, PATCH, PATCH, CHUNK)  zero-padded correlation volume (fused F.pad)
    """
    f32 = jnp.float32

    # Fused displacement pad: every pad element of this lane chunk is written
    # exactly once, outside the hot loop (lane-dense stores).
    if P1 > 0:
        corr_ref[0, 0:P1] = jnp.zeros((P1, PATCH, CHUNK), f32)                # top rows
        corr_ref[0, P1:P1 + P, 0:P1, :] = jnp.zeros((P, P1, CHUNK), f32)      # left cols
    if P2 > 0:
        corr_ref[0, P1 + P:PATCH] = jnp.zeros((P2, PATCH, CHUNK), f32)        # bottom rows
        corr_ref[0, P1:P1 + P, P1 + P:PATCH, :] = jnp.zeros((P, P2, CHUNK), f32)  # right cols

    # frame1, sublane-broadcast across the P horizontal displacements:
    # C x (P, CHUNK) ~ 8 vregs at CHUNK=128 — tiny, no spill risk.
    f1 = [jnp.broadcast_to(f1_ref[0, ch:ch + 1, :], (P, CHUNK)) for ch in range(C)]

    def i_body(i, carry):
        # g_ref[0, ch, i] is a full (P, CHUNK) aligned block: pure vld + VPU FMA.
        acc = (f1[0] * g_ref[0, 0, i]).astype(f32)
        for ch in range(1, C):                       # channel reduction: plain VPU adds
            acc = acc + (f1[ch] * g_ref[0, ch, i]).astype(f32)
        # Direct store into the padded volume (sublane-offset store; XLU is idle now).
        corr_ref[0, P1 + i, P1:P1 + P, :] = acc
        return carry

    lax.fori_loop(0, P, i_body, 0, unroll=True)


def _pick_lane_chunk(hw):
    """Largest 128-multiple chunk of the flattened (y,x) lane axis giving >=2 chunks."""
    if hw % 128 != 0:
        return hw                      # full-extent block (allowed by Mosaic)
    for cand in (512, 256, 128):
        if hw % cand == 0 and hw // cand >= 2:
            return cand
    return hw


def correlation_forward(frame1, frame2, *, grid_size):
    """Forward pass: returns (corr, similarity) as in the PyTorch module."""
    b, c, h, w = frame1.shape
    P = grid_size + 1                      # corr_sampler patch_size
    PATCH = 2 * grid_size + 1
    R = P // 2
    p1 = (PATCH - grid_size - 1) // 2
    p2 = (PATCH - grid_size) // 2
    HW = h * w

    # Keep bf16 inputs in bf16 (packed VPU on v6e/v7x); everything else in f32.
    # TODO(synk): force f32 compute on v5e (no bf16 VALU).
    compute_dtype = jnp.bfloat16 if frame1.dtype == jnp.bfloat16 else jnp.float32
    f1 = frame1.astype(compute_dtype)
    f2 = frame2.astype(compute_dtype)

    # Pre-shift frame2 fully in XLA (2P = 2*(grid_size+1) static slices, built once):
    #   g2[b, c, i, j, y*w + x] = f2pad[b, c, y+i, x+j]
    f2p = jnp.pad(f2, ((0, 0), (0, 0), (R, R), (R, R)))                    # (b,c,Hp,Wp)
    g1 = jnp.stack([f2p[:, :, :, j:j + w] for j in range(P)], axis=2)      # (b,c,Pj,Hp,w)
    g2 = jnp.stack([g1[:, :, :, i:i + h, :] for i in range(P)], axis=2)    # (b,c,Pi,Pj,h,w)
    g2 = g2.reshape(b, c, P, P, HW)

    f1r = f1.reshape(b, c, HW)             # no P-fold broadcast materialized

    chunk = _pick_lane_chunk(HW)
    n_chunks = HW // chunk

    kernel = functools.partial(
        _corr_kernel, C=c, P=P, PATCH=PATCH, P1=p1, P2=p2, CHUNK=chunk)

    # Explicit VMEM budget (double-buffered blocks + headroom), capped for v7x.
    itm = jnp.dtype(compute_dtype).itemsize
    block_bytes = (c * chunk + c * P * P * chunk) * itm + PATCH * PATCH * chunk * 4
    vmem_limit = int(min(64 << 20, max(32 << 20, 2 * block_bytes + (8 << 20))))

    corr_flat = pl.pallas_call(
        kernel,
        out_shape=jax.ShapeDtypeStruct((b, PATCH, PATCH, HW), jnp.float32),
        grid_spec=pltpu.PrefetchScalarGridSpec(
            num_scalar_prefetch=0,
            grid=(b, n_chunks),
            in_specs=[
                pl.BlockSpec((1, c, chunk), lambda bi, wi: (bi, 0, wi)),
                pl.BlockSpec((1, c, P, P, chunk), lambda bi, wi: (bi, 0, 0, 0, wi)),
            ],
            out_specs=pl.BlockSpec((1, PATCH, PATCH, chunk),
                                   lambda bi, wi: (bi, 0, 0, wi)),
        ),
        compiler_params=pltpu.CompilerParams(
            dimension_semantics=("parallel", "parallel"),
            vmem_limit_bytes=vmem_limit),
    )(f1r, g2)

    corr = corr_flat.reshape(b, PATCH, PATCH, h, w)
    # corr contains similarity exactly (pad is zeros) — recover it by slicing.
    similarity = corr_flat[:, p1:p1 + P, p1:p1 + P, :].reshape(b, P, P, h, w)
    return corr, similarity


class CorrelationCalculator:
    """JAX/Pallas port of the PyTorch CorrelationCalculator (forward pass only)."""

    def __init__(self, grid_size=14):
        self.grid_size = grid_size
        self.patch = 2 * grid_size + 1
        self.patch_size = grid_size + 1      # corr_sampler patch_size
        self._forward = jax.jit(
            functools.partial(correlation_forward, grid_size=grid_size))
        # TODO(synk): HeatCenter predictor / crop / get_enhance are never invoked
        # by forward(); they are not ported.

    def __call__(self, frame1, frame2):
        return self._forward(frame1, frame2)


def _correlation_ref(f1, f2, P):
    """Pure-JAX reference for the correlation sampler (correctness check)."""
    R = P // 2
    b, c, h, w = f1.shape
    f2p = jnp.pad(f2, ((0, 0), (0, 0), (R, R), (R, R)))
    rows = []
    for i in range(P):
        cols = []
        for j in range(P):
            cols.append(jnp.sum(f1 * f2p[:, :, i:i + h, j:j + w], axis=1))
        rows.append(jnp.stack(cols, axis=1))
    return jnp.stack(rows, axis=1)  # (b, P, P, h, w)


if __name__ == "__main__":
    key = jax.random.PRNGKey(0)
    k1, k2 = jax.random.split(key)
    B, C, H, W = 2, 4, 16, 16
    frame1 = jax.random.normal(k1, (B, C, H, W), dtype=jnp.float32)
    frame2 = jax.random.normal(k2, (B, C, H, W), dtype=jnp.float32)

    model = CorrelationCalculator(grid_size=14)   # patch_size=15, patch=29
    corr, similarity = model(frame1, frame2)
    jax.block_until_ready((corr, similarity))

    assert similarity.shape == (B, 15, 15, H, W), similarity.shape
    assert corr.shape == (B, 29, 29, H, W), corr.shape

    ref_sim = _correlation_ref(frame1, frame2, model.patch_size)
    p1 = (model.patch - model.grid_size - 1) // 2
    p2 = (model.patch - model.grid_size) // 2
    ref_corr = jnp.pad(ref_sim, ((0, 0), (p1, p2), (p1, p2), (0, 0), (0, 0)))
    assert jnp.allclose(similarity, ref_sim, atol=1e-4, rtol=1e-4)
    assert jnp.allclose(corr, ref_corr, atol=1e-4, rtol=1e-4)

    print("KERNEL_OK")
</pallas_src>

<mosaic_0001>
module attributes {stable_mosaic.version = 11 : i64} {
  func.func @_corr_kernel(%arg0: i32, %arg1: i32, %arg2: memref<1x4x128xf32, #tpu.memory_space<vmem>>, %arg3: memref<1x4x15x15x128xf32, #tpu.memory_space<vmem>>, %arg4: memref<1x29x29x128xf32, #tpu.memory_space<vmem>>) attributes {dimension_semantics = [#tpu.dimension_semantics<parallel>, #tpu.dimension_semantics<parallel>], iteration_bounds = array<i64: 2, 2>, scalar_prefetch = 0 : i64, scratch_operands = 0 : i64, tpu.core_type = #tpu.core_type<tc>, window_params = [{transform_indices = @transform_0, window_bounds = array<i64: 1, 4, 128>}, {transform_indices = @transform_1, window_bounds = array<i64: 1, 4, 15, 15, 128>}, {transform_indices = @transform_2, window_bounds = array<i64: 1, 29, 29, 128>}]} {
    %cst = arith.constant 0.000000e+00 : f32
    %0 = vector.broadcast %cst : f32 to vector<7x29x128xf32>
    %c0 = arith.constant 0 : index
    %c0_0 = arith.constant 0 : index
    %c0_1 = arith.constant 0 : index
    %c0_2 = arith.constant 0 : index
    %1 = vector.load %arg4[%c0, %c0_0, %c0_1, %c0_2] : memref<1x29x29x128xf32, #tpu.memory_space<vmem>>, vector<1x7x29x128xf32>
    %2 = vector.shape_cast %1 : vector<1x7x29x128xf32> to vector<7x29x128xf32>
    %3 = vector.shape_cast %0 : vector<7x29x128xf32> to vector<1x7x29x128xf32>
    tpu.vector_store %arg4[%c0, %c0_0, %c0_1, %c0_2], %3 {strides = array<i32>} : memref<1x29x29x128xf32, #tpu.memory_space<vmem>>, vector<1x7x29x128xf32>,
    %cst_3 = arith.constant 0.000000e+00 : f32
    %4 = vector.broadcast %cst_3 : f32 to vector<15x7x128xf32>
    %c0_4 = arith.constant 0 : index
    %c7 = arith.constant 7 : index
    %c0_5 = arith.constant 0 : index
    %c0_6 = arith.constant 0 : index
    %5 = vector.load %arg4[%c0_4, %c7, %c0_5, %c0_6] : memref<1x29x29x128xf32, #tpu.memory_space<vmem>>, vector<1x15x7x128xf32>
    %6 = vector.shape_cast %5 : vector<1x15x7x128xf32> to vector<15x7x128xf32>
    %7 = vector.shape_cast %4 : vector<15x7x128xf32> to vector<1x15x7x128xf32>
    tpu.vector_store %arg4[%c0_4, %c7, %c0_5, %c0_6], %7 {strides = array<i32>} : memref<1x29x29x128xf32, #tpu.memory_space<vmem>>, vector<1x15x7x128xf32>,
    %cst_7 = arith.constant 0.000000e+00 : f32
    %8 = vector.broadcast %cst_7 : f32 to vector<7x29x128xf32>
    %c0_8 = arith.constant 0 : index
    %c22 = arith.constant 22 : index
    %c0_9 = arith.constant 0 : index
    %c0_10 = arith.constant 0 : index
    %9 = vector.load %arg4[%c0_8, %c22, %c0_9, %c0_10] : memref<1x29x29x128xf32, #tpu.memory_space<vmem>>, vector<1x7x29x128xf32>
    %10 = vector.shape_cast %9 : vector<1x7x29x128xf32> to vector<7x29x128xf32>
    %11 = vector.shape_cast %8 : vector<7x29x128xf32> to vector<1x7x29x128xf32>
    tpu.vector_store %arg4[%c0_8, %c22, %c0_9, %c0_10], %11 {strides = array<i32>} : memref<1x29x29x128xf32, #tpu.memory_space<vmem>>, vector<1x7x29x128xf32>,
    %cst_11 = arith.constant 0.000000e+00 : f32
    %12 = vector.broadcast %cst_11 : f32 to vector<15x7x128xf32>
    %c0_12 = arith.constant 0 : index
    %c7_13 = arith.constant 7 : index
    %c22_14 = arith.constant 22 : index
    %c0_15 = arith.constant 0 : index
    %13 = vector.load %arg4[%c0_12, %c7_13, %c22_14, %c0_15] : memref<1x29x29x128xf32, #tpu.memory_space<vmem>>, vector<1x15x7x128xf32>
    %14 = vector.shape_cast %13 : vector<1x15x7x128xf32> to vector<15x7x128xf32>
    %15 = vector.shape_cast %12 : vector<15x7x128xf32> to vector<1x15x7x128xf32>
    tpu.vector_store %arg4[%c0_12, %c7_13, %c22_14, %c0_15], %15 {strides = array<i32>} : memref<1x29x29x128xf32, #tpu.memory_space<vmem>>, vector<1x15x7x128xf32>,
    %c0_16 = arith.constant 0 : index
    %c0_17 = arith.constant 0 : index
    %c0_18 = arith.constant 0 : index
    %16 = vector.load %arg2[%c0_16, %c0_17, %c0_18] : memref<1x4x128xf32, #tpu.memory_space<vmem>>, vector<1x1x128xf32>
    %17 = vector.shape_cast %16 : vector<1x1x128xf32> to vector<1x128xf32>
    %18 = vector.shape_cast %17 : vector<1x128xf32> to vector<1x128xf32>
    %19 = vector.broadcast %18 : vector<1x128xf32> to vector<15x128xf32>
    %c0_19 = arith.constant 0 : index
    %c1 = arith.constant 1 : index
    %c0_20 = arith.constant 0 : index
    %20 = vector.load %arg2[%c0_19, %c1, %c0_20] : memref<1x4x128xf32, #tpu.memory_space<vmem>>, vector<1x1x128xf32>
    %21 = vector.shape_cast %20 : vector<1x1x128xf32> to vector<1x128xf32>
    %22 = vector.shape_cast %21 : vector<1x128xf32> to vector<1x128xf32>
    %23 = vector.broadcast %22 : vector<1x128xf32> to vector<15x128xf32>
    %c0_21 = arith.constant 0 : index
    %c2 = arith.constant 2 : index
    %c0_22 = arith.constant 0 : index
    %24 = vector.load %arg2[%c0_21, %c2, %c0_22] : memref<1x4x128xf32, #tpu.memory_space<vmem>>, vector<1x1x128xf32>
    %25 = vector.shape_cast %24 : vector<1x1x128xf32> to vector<1x128xf32>
    %26 = vector.shape_cast %25 : vector<1x128xf32> to vector<1x128xf32>
    %27 = vector.broadcast %26 : vector<1x128xf32> to vector<15x128xf32>
    %c0_23 = arith.constant 0 : index
    %c3 = arith.constant 3 : index
    %c0_24 = arith.constant 0 : index
    %28 = vector.load %arg2[%c0_23, %c3, %c0_24] : memref<1x4x128xf32, #tpu.memory_space<vmem>>, vector<1x1x128xf32>
    %29 = vector.shape_cast %28 : vector<1x1x128xf32> to vector<1x128xf32>
    %30 = vector.shape_cast %29 : vector<1x128xf32> to vector<1x128xf32>
    %31 = vector.broadcast %30 : vector<1x128xf32> to vector<15x128xf32>
    %c0_i32 = arith.constant 0 : i32
    %c0_25 = arith.constant 0 : index
    %c0_26 = arith.constant 0 : index
    %32 = arith.index_cast %c0_i32 : i32 to index
    %c0_27 = arith.constant 0 : index
    %c0_28 = arith.constant 0 : index
    %33 = vector.load %arg3[%c0_25, %c0_26, %32, %c0_27, %c0_28] : memref<1x4x15x15x128xf32, #tpu.memory_space<vmem>>, vector<1x1x1x15x128xf32>
    %34 = vector.shape_cast %33 : vector<1x1x1x15x128xf32> to vector<15x128xf32>
    %35 = arith.mulf %19, %34 : vector<15x128xf32>
    %c0_29 = arith.constant 0 : index
    %c1_30 = arith.constant 1 : index
    %36 = arith.index_cast %c0_i32 : i32 to index
    %c0_31 = arith.constant 0 : index
    %c0_32 = arith.constant 0 : index
    %37 = vector.load %arg3[%c0_29, %c1_30, %36, %c0_31, %c0_32] : memref<1x4x15x15x128xf32, #tpu.memory_space<vmem>>, vector<1x1x1x15x128xf32>
    %38 = vector.shape_cast %37 : vector<1x1x1x15x128xf32> to vector<15x128xf32>
    %39 = arith.mulf %23, %38 : vector<15x128xf32>
    %40 = arith.addf %35, %39 : vector<15x128xf32>
    %c0_33 = arith.constant 0 : index
    %c2_34 = arith.constant 2 : index
    %41 = arith.index_cast %c0_i32 : i32 to index
    %c0_35 = arith.constant 0 : index
    %c0_36 = arith.constant 0 : index
    %42 = vector.load %arg3[%c0_33, %c2_34, %41, %c0_35, %c0_36] : memref<1x4x15x15x128xf32, #tpu.memory_space<vmem>>, vector<1x1x1x15x128xf32>
    %43 = vector.shape_cast %42 : vector<1x1x1x15x128xf32> to vector<15x128xf32>
    %44 = arith.mulf %27, %43 : vector<15x128xf32>
    %45 = arith.addf %40, %44 : vector<15x128xf32>
    %c0_37 = arith.constant 0 : index
    %c3_38 = arith.constant 3 : index
    %46 = arith.index_cast %c0_i32 : i32 to index
    %c0_39 = arith.constant 0 : index
    %c0_40 = arith.constant 0 : index
    %47 = vector.load %arg3[%c0_37, %c3_38, %46, %c0_39, %c0_40] : memref<1x4x15x15x128xf32, #tpu.memory_space<vmem>>, vector<1x1x1x15x128xf32>
    %48 = vector.shape_cast %47 : vector<1x1x1x15x128xf32> to vector<15x128xf32>
    %49 = arith.mulf %31, %48 : vector<15x128xf32>
    %50 = arith.addf %45, %49 : vector<15x128xf32>
    %c7_i32 = arith.constant 7 : i32
    %51 = arith.addi %c7_i32, %c0_i32 : i32
    %c0_41 = arith.constant 0 : index
    %52 = arith.index_cast %51 : i32 to index
    %c7_42 = arith.constant 7 : index
    %c0_43 = arith.constant 0 : index
    %53 = vector.load %arg4[%c0_41, %52, %c7_42, %c0_43] : memref<1x29x29x128xf32, #tpu.memory_space<vmem>>, vector<1x1x15x128xf32>
    %54 = vector.shape_cast %53 : vector<1x1x15x128xf32> to vector<15x128xf32>
    %55 = vector.shape_cast %50 : vector<15x128xf32> to vector<1x1x15x128xf32>
    tpu.vector_store %arg4[%c0_41, %52, %c7_42, %c0_43], %55 {strides = array<i32>} : memref<1x29x29x128xf32, #tpu.memory_space<vmem>>, vector<1x1x15x128xf32>,
    %c1_i32 = arith.constant 1 : i32
    %c0_44 = arith.constant 0 : index
    %c0_45 = arith.constant 0 : index
    %56 = arith.index_cast %c1_i32 : i32 to index
    %c0_46 = arith.constant 0 : index
    %c0_47 = arith.constant 0 : index
    %57 = vector.load %arg3[%c0_44, %c0_45, %56, %c0_46, %c0_47] : memref<1x4x15x15x128xf32, #tpu.memory_space<vmem>>, vector<1x1x1x15x128xf32>
    %58 = vector.shape_cast %57 : vector<1x1x1x15x128xf32> to vector<15x128xf32>
    %59 = arith.mulf %19, %58 : vector<15x128xf32>
    %c0_48 = arith.constant 0 : index
    %c1_49 = arith.constant 1 : index
    %60 = arith.index_cast %c1_i32 : i32 to index
    %c0_50 = arith.constant 0 : index
    %c0_51 = arith.constant 0 : index
    %61 = vector.load %arg3[%c0_48, %c1_49, %60, %c0_50, %c0_51] : memref<1x4x15x15x128xf32, #tpu.memory_space<vmem>>, vector<1x1x1x15x128xf32>
    %62 = vector.shape_cast %61 : vector<1x1x1x15x128xf32> to vector<15x128xf32>
    %63 = arith.mulf %23, %62 : vector<15x128xf32>
    %64 = arith.addf %59, %63 : vector<15x128xf32>
    %c0_52 = arith.constant 0 : index
    %c2_53 = arith.constant 2 : index
    %65 = arith.index_cast %c1_i32 : i32 to index
    %c0_54 = arith.constant 0 : index
    %c0_55 = arith.constant 0 : index
    %66 = vector.load %arg3[%c0_52, %c2_53, %65, %c0_54, %c0_55] : memref<1x4x15x15x128xf32, #tpu.memory_space<vmem>>, vector<1x1x1x15x128xf32>
    %67 = vector.shape_cast %66 : vector<1x1x1x15x128xf32> to vector<15x128xf32>
    %68 = arith.mulf %27, %67 : vector<15x128xf32>
    %69 = arith.addf %64, %68 : vector<15x128xf32>
    %c0_56 = arith.constant 0 : index
    %c3_57 = arith.constant 3 : index
    %70 = arith.index_cast %c1_i32 : i32 to index
    %c0_58 = arith.constant 0 : index
    %c0_59 = arith.constant 0 : index
    %71 = vector.load %arg3[%c0_56, %c3_57, %70, %c0_58, %c0_59] : memref<1x4x15x15x128xf32, #tpu.memory_space<vmem>>, vector<1x1x1x15x128xf32>
    %72 = vector.shape_cast %71 : vector<1x1x1x15x128xf32> to vector<15x128xf32>
    %73 = arith.mulf %31, %72 : vector<15x128xf32>
    %74 = arith.addf %69, %73 : vector<15x128xf32>
    %c7_i32_60 = arith.constant 7 : i32
    %75 = arith.addi %c7_i32_60, %c1_i32 : i32
    %c0_61 = arith.constant 0 : index
    %76 = arith.index_cast %75 : i32 to index
    %c7_62 = arith.constant 7 : index
    %c0_63 = arith.constant 0 : index
    %77 = vector.load %arg4[%c0_61, %76, %c7_62, %c0_63] : memref<1x29x29x128xf32, #tpu.memory_space<vmem>>, vector<1x1x15x128xf32>
    %78 = vector.shape_cast %77 : vector<1x1x15x128xf32> to vector<15x128xf32>
    %79 = vector.shape_cast %74 : vector<15x128xf32> to vector<1x1x15x128xf32>
    tpu.vector_store %arg4[%c0_61, %76, %c7_62, %c0_63], %79 {strides = array<i32>} : memref<1x29x29x128xf32, #tpu.memory_space<vmem>>, vector<1x1x15x128xf32>,
    %c2_i32 = arith.constant 2 : i32
    %c0_64 = arith.constant 0 : index
    %c0_65 = arith.constant 0 : index
    %80 = arith.index_cast %c2_i32 : i32 to index
    %c0_66 = arith.constant 0 : index
    %c0_67 = arith.constant 0 : index
    %81 = vector.load %arg3[%c0_64, %c0_65, %80, %c0_66, %c0_67] : memref<1x4x15x15x128xf32, #tpu.memory_space<vmem>>, vector<1x1x1x15x128xf32>
    %82 = vector.shape_cast %81 : vector<1x1x1x15x128xf32> to vector<15x128xf32>
    %83 = arith.mulf %19, %82 : vector<15x128xf32>
    %c0_68 = arith.constant 0 : index
    %c1_69 = arith.constant 1 : index
    %84 = arith.index_cast %c2_i32 : i32 to index
    %c0_70 = arith.constant 0 : index
    %c0_71 = arith.constant 0 : index
    %85 = vector.load %arg3[%c0_68, %c1_69, %84, %c0_70, %c0_71] : memref<1x4x15x15x128xf32, #tpu.memory_space<vmem>>, vector<1x1x1x15x128xf32>
    %86 = vector.shape_cast %85 : vector<1x1x1x15x128xf32> to vector<15x128xf32>
    %87 = arith.mulf %23, %86 : vector<15x128xf32>
    %88 = arith.addf %83, %87 : vector<15x128xf32>
    %c0_72 = arith.constant 0 : index
    %c2_73 = arith.constant 2 : index
    %89 = arith.index_cast %c2_i32 : i32 to index
    %c0_74 = arith.constant 0 : index
    %c0_75 = arith.constant 0 : index
    %90 = vector.load %arg3[%c0_72, %c2_73, %89, %c0_74, %c0_75] : memref<1x4x15x15x128xf32, #tpu.memory_space<vmem>>, vector<1x1x1x15x128xf32>
    %91 = vector.shape_cast %90 : vector<1x1x1x15x128xf32> to vector<15x128xf32>
    %92 = arith.mulf %27, %91 : vector<15x128xf32>
    %93 = arith.addf %88, %92 : vector<15x128xf32>
    %c0_76 = arith.constant 0 : index
    %c3_77 = arith.constant 3 : index
    %94 = arith.index_cast %c2_i32 : i32 to index
    %c0_78 = arith.constant 0 : index
    %c0_79 = arith.constant 0 : index
    %95 = vector.load %arg3[%c0_76, %c3_77, %94, %c0_78, %c0_79] : memref<1x4x15x15x128xf32, #tpu.memory_space<vmem>>, vector<1x1x1x15x128xf32>
    %96 = vector.shape_cast %95 : vector<1x1x1x15x128xf32> to vector<15x128xf32>
    %97 = arith.mulf %31, %96 : vector<15x128xf32>
    %98 = arith.addf %93, %97 : vector<15x128xf32>
    %c7_i32_80 = arith.constant 7 : i32
    %99 = arith.addi %c7_i32_80, %c2_i32 : i32
    %c0_81 = arith.constant 0 : index
    %100 = arith.index_cast %99 : i32 to index
    %c7_82 = arith.constant 7 : index
    %c0_83 = arith.constant 0 : index
    %101 = vector.load %arg4[%c0_81, %100, %c7_82, %c0_83] : memref<1x29x29x128xf32, #tpu.memory_space<vmem>>, vector<1x1x15x128xf32>
    %102 = vector.shape_cast %101 : vector<1x1x15x128xf32> to vector<15x128xf32>
    %103 = vector.shape_cast %98 : vector<15x128xf32> to vector<1x1x15x128xf32>
    tpu.vector_store %arg4[%c0_81, %100, %c7_82, %c0_83], %103 {strides = array<i32>} : memref<1x29x29x128xf32, #tpu.memory_space<vmem>>, vector<1x1x15x128xf32>,
    %c3_i32 = arith.constant 3 : i32
    %c0_84 = arith.constant 0 : index
    %c0_85 = arith.constant 0 : index
    %104 = arith.index_cast %c3_i32 : i32 to index
    %c0_86 = arith.constant 0 : index
    %c0_87 = arith.constant 0 : index
    %105 = vector.load %arg3[%c0_84, %c0_85, %104, %c0_86, %c0_87] : memref<1x4x15x15x128xf32, #tpu.memory_space<vmem>>, vector<1x1x1x15x128xf32>
    %106 = vector.shape_cast %105 : vector<1x1x1x15x128xf32> to vector<15x128xf32>
    %107 = arith.mulf %19, %106 : vector<15x128xf32>
    %c0_88 = arith.constant 0 : index
    %c1_89 = arith.constant 1 : index
    %108 = arith.index_cast %c3_i32 : i32 to index
    %c0_90 = arith.constant 0 : index
    %c0_91 = arith.constant 0 : index
    %109 = vector.load %arg3[%c0_88, %c1_89, %108, %c0_90, %c0_91] : memref<1x4x15x15x128xf32, #tpu.memory_space<vmem>>, vector<1x1x1x15x128xf32>
    %110 = vector.shape_cast %109 : vector<1x1x1x15x128xf32> to vector<15x128xf32>
    %111 = arith.mulf %23, %110 : vector<15x128xf32>
    %112 = arith.addf %107, %111 : vector<15x128xf32>
    %c0_92 = arith.constant 0 : index
    %c2_93 = arith.constant 2 : index
    %113 = arith.index_cast %c3_i32 : i32 to index
    %c0_94 = arith.constant 0 : index
    %c0_95 = arith.constant 0 : index
    %114 = vector.load %arg3[%c0_92, %c2_93, %113, %c0_94, %c0_95] : memref<1x4x15x15x128xf32, #tpu.memory_space<vmem>>, vector<1x1x1x15x128xf32>
    %115 = vector.shape_cast %114 : vector<1x1x1x15x128xf32> to vector<15x128xf32>
    %116 = arith.mulf %27, %115 : vector<15x128xf32>
    %117 = arith.addf %112, %116 : vector<15x128xf32>
    %c0_96 = arith.constant 0 : index
    %c3_97 = arith.constant 3 : index
    %118 = arith.index_cast %c3_i32 : i32 to index
    %c0_98 = arith.constant 0 : index
    %c0_99 = arith.constant 0 : index
    %119 = vector.load %arg3[%c0_96, %c3_97, %118, %c0_98, %c0_99] : memref<1x4x15x15x128xf32, #tpu.memory_space<vmem>>, vector<1x1x1x15x128xf32>
    %120 = vector.shape_cast %119 : vector<1x1x1x15x128xf32> to vector<15x128xf32>
    %121 = arith.mulf %31, %120 : vector<15x128xf32>
    %122 = arith.addf %117, %121 : vector<15x128xf32>
    %c7_i32_100 = arith.constant 7 : i32
    %123 = arith.addi %c7_i32_100, %c3_i32 : i32
    %c0_101 = arith.constant 0 : index
    %124 = arith.index_cast %123 : i32 to index
    %c7_102 = arith.constant 7 : index
    %c0_103 = arith.constant 0 : index
    %125 = vector.load %arg4[%c0_101, %124, %c7_102, %c0_103] : memref<1x29x29x128xf32, #tpu.memory_space<vmem>>, vector<1x1x15x128xf32>
    %126 = vector.shape_cast %125 : vector<1x1x15x128xf32> to vector<15x128xf32>
    %127 = vector.shape_cast %122 : vector<15x128xf32> to vector<1x1x15x128xf32>
    tpu.vector_store %arg4[%c0_101, %124, %c7_102, %c0_103], %127 {strides = array<i32>} : memref<1x29x29x128xf32, #tpu.memory_space<vmem>>, vector<1x1x15x128xf32>,
    %c4_i32 = arith.constant 4 : i32
    %c0_104 = arith.constant 0 : index
    %c0_105 = arith.constant 0 : index
    %128 = arith.index_cast %c4_i32 : i32 to index
    %c0_106 = arith.constant 0 : index
    %c0_107 = arith.constant 0 : index
    %129 = vector.load %arg3[%c0_104, %c0_105, %128, %c0_106, %c0_107] : memref<1x4x15x15x128xf32, #tpu.memory_space<vmem>>, vector<1x1x1x15x128xf32>
    %130 = vector.shape_cast %129 : vector<1x1x1x15x128xf32> to vector<15x128xf32>
    %131 = arith.mulf %19, %130 : vector<15x128xf32>
    %c0_108 = arith.constant 0 : index
    %c1_109 = arith.constant 1 : index
    %132 = arith.index_cast %c4_i32 : i32 to index
    %c0_110 = arith.constant 0 : index
    %c0_111 = arith.constant 0 : index
    %133 = vector.load %arg3[%c0_108, %c1_109, %132, %c0_110, %c0_111] : memref<1x4x15x15x128xf32, #tpu.memory_space<vmem>>, vector<1x1x1x15x128xf32>
    %134 = vector.shape_cast %133 : vector<1x1x1x15x128xf32> to vector<15x128xf32>
    %135 = arith.mulf %23, %134 : vector<15x128xf32>
    %136 = arith.addf %131, %135 : vector<15x128xf32>
    %c0_112 = arith.constant 0 : index
    %c2_113 = arith.constant 2 : index
    %137 = arith.index_cast %c4_i32 : i32 to index
    %c0_114 = arith.constant 0 : index
    %c0_115 = arith.constant 0 : index
    %138 = vector.load %arg3[%c0_112, %c2_113, %137, %c0_114, %c0_115] : memref<1x4x15x15x128xf32, #tpu.memory_space<vmem>>, vector<1x1x1x15x128xf32>
    %139 = vector.shape_cast %138 : vector<1x1x1x15x128xf32> to vector<15x128xf32>
    %140 = arith.mulf %27, %139 : vector<15x128xf32>
    %141 = arith.addf %136, %140 : vector<15x128xf32>
    %c0_116 = arith.constant 0 : index
    %c3_117 = arith.constant 3 : index
    %142 = arith.index_cast %c4_i32 : i32 to index
    %c0_118 = arith.constant 0 : index
    %c0_119 = arith.constant 0 : index
    %143 = vector.load %arg3[%c0_116, %c3_117, %142, %c0_118, %c0_119] : memref<1x4x15x15x128xf32, #tpu.memory_space<vmem>>, vector<1x1x1x15x128xf32>
    %144 = vector.shape_cast %143 : vector<1x1x1x15x128xf32> to vector<15x128xf32>
    %145 = arith.mulf %31, %144 : vector<15x128xf32>
    %146 = arith.addf %141, %145 : vector<15x128xf32>
    %c7_i32_120 = arith.constant 7 : i32
    %147 = arith.addi %c7_i32_120, %c4_i32 : i32
    %c0_121 = arith.constant 0 : index
    %148 = arith.index_cast %147 : i32 to index
    %c7_122 = arith.constant 7 : index
    %c0_123 = arith.constant 0 : index
    %149 = vector.load %arg4[%c0_121, %148, %c7_122, %c0_123] : memref<1x29x29x128xf32, #tpu.memory_space<vmem>>, vector<1x1x15x128xf32>
    %150 = vector.shape_cast %149 : vector<1x1x15x128xf32> to vector<15x128xf32>
    %151 = vector.shape_cast %146 : vector<15x128xf32> to vector<1x1x15x128xf32>
    tpu.vector_store %arg4[%c0_121, %148, %c7_122, %c0_123], %151 {strides = array<i32>} : memref<1x29x29x128xf32, #tpu.memory_space<vmem>>, vector<1x1x15x128xf32>,
    %c5_i32 = arith.constant 5 : i32
    %c0_124 = arith.constant 0 : index
    %c0_125 = arith.constant 0 : index
    %152 = arith.index_cast %c5_i32 : i32 to index
    %c0_126 = arith.constant 0 : index
    %c0_127 = arith.constant 0 : index
    %153 = vector.load %arg3[%c0_124, %c0_125, %152, %c0_126, %c0_127] : memref<1x4x15x15x128xf32, #tpu.memory_space<vmem>>, vector<1x1x1x15x128xf32>
    %154 = vector.shape_cast %153 : vector<1x1x1x15x128xf32> to vector<15x128xf32>
    %155 = arith.mulf %19, %154 : vector<15x128xf32>
    %c0_128 = arith.constant 0 : index
    %c1_129 = arith.constant 1 : index
    %156 = arith.index_cast %c5_i32 : i32 to index
    %c0_130 = arith.constant 0 : index
    %c0_131 = arith.constant 0 : index
    %157 = vector.load %arg3[%c0_128, %c1_129, %156, %c0_130, %c0_131] : memref<1x4x15x15x128xf32, #tpu.memory_space<vmem>>, vector<1x1x1x15x128xf32>
    %158 = vector.shape_cast %157 : vector<1x1x1x15x128xf32> to vector<15x128xf32>
    %159 = arith.mulf %23, %158 : vector<15x128xf32>
    %160 = arith.addf %155, %159 : vector<15x128xf32>
    %c0_132 = arith.constant 0 : index
    %c2_133 = arith.constant 2 : index
    %161 = arith.index_cast %c5_i32 : i32 to index
    %c0_134 = arith.constant 0 : index
    %c0_135 = arith.constant 0 : index
    %162 = vector.load %arg3[%c0_132, %c2_133, %161, %c0_134, %c0_135] : memref<1x4x15x15x128xf32, #tpu.memory_space<vmem>>, vector<1x1x1x15x128xf32>
    %163 = vector.shape_cast %162 : vector<1x1x1x15x128xf32> to vector<15x128xf32>
    %164 = arith.mulf %27, %163 : vector<15x128xf32>
    %165 = arith.addf %160, %164 : vector<15x128xf32>
    %c0_136 = arith.constant 0 : index
    %c3_137 = arith.constant 3 : index
    %166 = arith.index_cast %c5_i32 : i32 to index
    %c0_138 = arith.constant 0 : index
    %c0_139 = arith.constant 0 : index
    %167 = vector.load %arg3[%c0_136, %c3_137, %166, %c0_138, %c0_139] : memref<1x4x15x15x128xf32, #tpu.memory_space<vmem>>, vector<1x1x1x15x128xf32>
    %168 = vector.shape_cast %167 : vector<1x1x1x15x128xf32> to vector<15x128xf32>
    %169 = arith.mulf %31, %168 : vector<15x128xf32>
    %170 = arith.addf %165, %169 : vector<15x128xf32>
    %c7_i32_140 = arith.constant 7 : i32
    %171 = arith.addi %c7_i32_140, %c5_i32 : i32
    %c0_141 = arith.constant 0 : index
    %172 = arith.index_cast %171 : i32 to index
    %c7_142 = arith.constant 7 : index
    %c0_143 = arith.constant 0 : index
    %173 = vector.load %arg4[%c0_141, %172, %c7_142, %c0_143] : memref<1x29x29x128xf32, #tpu.memory_space<vmem>>, vector<1x1x15x128xf32>
    %174 = vector.shape_cast %173 : vector<1x1x15x128xf32> to vector<15x128xf32>
    %175 = vector.shape_cast %170 : vector<15x128xf32> to vector<1x1x15x128xf32>
    tpu.vector_store %arg4[%c0_141, %172, %c7_142, %c0_143], %175 {strides = array<i32>} : memref<1x29x29x128xf32, #tpu.memory_space<vmem>>, vector<1x1x15x128xf32>,
    %c6_i32 = arith.constant 6 : i32
    %c0_144 = arith.constant 0 : index
    %c0_145 = arith.constant 0 : index
    %176 = arith.index_cast %c6_i32 : i32 to index
    %c0_146 = arith.constant 0 : index
    %c0_147 = arith.constant 0 : index
    %177 = vector.load %arg3[%c0_144, %c0_145, %176, %c0_146, %c0_147] : memref<1x4x15x15x128xf32, #tpu.memory_space<vmem>>, vector<1x1x1x15x128xf32>
    %178 = vector.shape_cast %177 : vector<1x1x1x15x128xf32> to vector<15x128xf32>
    %179 = arith.mulf %19, %178 : vector<15x128xf32>
    %c0_148 = arith.constant 0 : index
    %c1_149 = arith.constant 1 : index
    %180 = arith.index_cast %c6_i32 : i32 to index
    %c0_150 = arith.constant 0 : index
    %c0_151 = arith.constant 0 : index
    %181 = vector.load %arg3[%c0_148, %c1_149, %180, %c0_150, %c0_151] : memref<1x4x15x15x128xf32, #tpu.memory_space<vmem>>, vector<1x1x1x15x128xf32>
    %182 = vector.shape_cast %181 : vector<1x1x1x15x128xf32> to vector<15x128xf32>
    %183 = arith.mulf %23, %182 : vector<15x128xf32>
    %184 = arith.addf %179, %183 : vector<15x128xf32>
    %c0_152 = arith.constant 0 : index
    %c2_153 = arith.constant 2 : index
    %185 = arith.index_cast %c6_i32 : i32 to index
    %c0_154 = arith.constant 0 : index
    %c0_155 = arith.constant 0 : index
    %186 = vector.load %arg3[%c0_152, %c2_153, %185, %c0_154, %c0_155] : memref<1x4x15x15x128xf32, #tpu.memory_space<vmem>>, vector<1x1x1x15x128xf32>
    %187 = vector.shape_cast %186 : vector<1x1x1x15x128xf32> to vector<15x128xf32>
    %188 = arith.mulf %27, %187 : vector<15x128xf32>
    %189 = arith.addf %184, %188 : vector<15x128xf32>
    %c0_156 = arith.constant 0 : index
    %c3_157 = arith.constant 3 : index
    %190 = arith.index_cast %c6_i32 : i32 to index
    %c0_158 = arith.constant 0 : index
    %c0_159 = arith.constant 0 : index
    %191 = vector.load %arg3[%c0_156, %c3_157, %190, %c0_158, %c0_159] : memref<1x4x15x15x128xf32, #tpu.memory_space<vmem>>, vector<1x1x1x15x128xf32>
    %192 = vector.shape_cast %191 : vector<1x1x1x15x128xf32> to vector<15x128xf32>
    %193 = arith.mulf %31, %192 : vector<15x128xf32>
    %194 = arith.addf %189, %193 : vector<15x128xf32>
    %c7_i32_160 = arith.constant 7 : i32
    %195 = arith.addi %c7_i32_160, %c6_i32 : i32
    %c0_161 = arith.constant 0 : index
    %196 = arith.index_cast %195 : i32 to index
    %c7_162 = arith.constant 7 : index
    %c0_163 = arith.constant 0 : index
    %197 = vector.load %arg4[%c0_161, %196, %c7_162, %c0_163] : memref<1x29x29x128xf32, #tpu.memory_space<vmem>>, vector<1x1x15x128xf32>
    %198 = vector.shape_cast %197 : vector<1x1x15x128xf32> to vector<15x128xf32>
    %199 = vector.shape_cast %194 : vector<15x128xf32> to vector<1x1x15x128xf32>
    tpu.vector_store %arg4[%c0_161, %196, %c7_162, %c0_163], %199 {strides = array<i32>} : memref<1x29x29x128xf32, #tpu.memory_space<vmem>>, vector<1x1x15x128xf32>,
    %c7_i32_164 = arith.constant 7 : i32
    %c0_165 = arith.constant 0 : index
    %c0_166 = arith.constant 0 : index
    %200 = arith.index_cast %c7_i32_164 : i32 to index
    %c0_167 = arith.constant 0 : index
    %c0_168 = arith.constant 0 : index
    %201 = vector.load %arg3[%c0_165, %c0_166, %200, %c0_167, %c0_168] : memref<1x4x15x15x128xf32, #tpu.memory_space<vmem>>, vector<1x1x1x15x128xf32>
    %202 = vector.shape_cast %201 : vector<1x1x1x15x128xf32> to vector<15x128xf32>
    %203 = arith.mulf %19, %202 : vector<15x128xf32>
    %c0_169 = arith.constant 0 : index
    %c1_170 = arith.constant 1 : index
    %204 = arith.index_cast %c7_i32_164 : i32 to index
    %c0_171 = arith.constant 0 : index
    %c0_172 = arith.constant 0 : index
    %205 = vector.load %arg3[%c0_169, %c1_170, %204, %c0_171, %c0_172] : memref<1x4x15x15x128xf32, #tpu.memory_space<vmem>>, vector<1x1x1x15x128xf32>
    %206 = vector.shape_cast %205 : vector<1x1x1x15x128xf32> to vector<15x128xf32>
    %207 = arith.mulf %23, %206 : vector<15x128xf32>
    %208 = arith.addf %203, %207 : vector<15x128xf32>
    %c0_173 = arith.constant 0 : index
    %c2_174 = arith.constant 2 : index
    %209 = arith.index_cast %c7_i32_164 : i32 to index
    %c0_175 = arith.constant 0 : index
    %c0_176 = arith.constant 0 : index
    %210 = vector.load %arg3[%c0_173, %c2_174, %209, %c0_175, %c0_176] : memref<1x4x15x15x128xf32, #tpu.memory_space<vmem>>, vector<1x1x1x15x128xf32>
    %211 = vector.shape_cast %210 : vector<1x1x1x15x128xf32> to vector<15x128xf32>
    %212 = arith.mulf %27, %211 : vector<15x128xf32>
    %213 = arith.addf %208, %212 : vector<15x128xf32>
    %c0_177 = arith.constant 0 : index
    %c3_178 = arith.constant 3 : index
    %214 = arith.index_cast %c7_i32_164 : i32 to index
    %c0_179 = arith.constant 0 : index
    %c0_180 = arith.constant 0 : index
    %215 = vector.load %arg3[%c0_177, %c3_178, %214, %c0_179, %c0_180] : memref<1x4x15x15x128xf32, #tpu.memory_space<vmem>>, vector<1x1x1x15x128xf32>
    %216 = vector.shape_cast %215 : vector<1x1x1x15x128xf32> to vector<15x128xf32>
    %217 = arith.mulf %31, %216 : vector<15x128xf32>
    %218 = arith.addf %213, %217 : vector<15x128xf32>
    %c7_i32_181 = arith.constant 7 : i32
    %219 = arith.addi %c7_i32_181, %c7_i32_164 : i32
    %c0_182 = arith.constant 0 : index
    %220 = arith.index_cast %219 : i32 to index
    %c7_183 = arith.constant 7 : index
    %c0_184 = arith.constant 0 : index
    %221 = vector.load %arg4[%c0_182, %220, %c7_183, %c0_184] : memref<1x29x29x128xf32, #tpu.memory_space<vmem>>, vector<1x1x15x128xf32>
    %222 = vector.shape_cast %221 : vector<1x1x15x128xf32> to vector<15x128xf32>
    %223 = vector.shape_cast %218 : vector<15x128xf32> to vector<1x1x15x128xf32>
    tpu.vector_store %arg4[%c0_182, %220, %c7_183, %c0_184], %223 {strides = array<i32>} : memref<1x29x29x128xf32, #tpu.memory_space<vmem>>, vector<1x1x15x128xf32>,
    %c8_i32 = arith.constant 8 : i32
    %c0_185 = arith.constant 0 : index
    %c0_186 = arith.constant 0 : index
    %224 = arith.index_cast %c8_i32 : i32 to index
    %c0_187 = arith.constant 0 : index
    %c0_188 = arith.constant 0 : index
    %225 = vector.load %arg3[%c0_185, %c0_186, %224, %c0_187, %c0_188] : memref<1x4x15x15x128xf32, #tpu.memory_space<vmem>>, vector<1x1x1x15x128xf32>
    %226 = vector.shape_cast %225 : vector<1x1x1x15x128xf32> to vector<15x128xf32>
    %227 = arith.mulf %19, %226 : vector<15x128xf32>
    %c0_189 = arith.constant 0 : index
    %c1_190 = arith.constant 1 : index
    %228 = arith.index_cast %c8_i32 : i32 to index
    %c0_191 = arith.constant 0 : index
    %c0_192 = arith.constant 0 : index
    %229 = vector.load %arg3[%c0_189, %c1_190, %228, %c0_191, %c0_192] : memref<1x4x15x15x128xf32, #tpu.memory_space<vmem>>, vector<1x1x1x15x128xf32>
    %230 = vector.shape_cast %229 : vector<1x1x1x15x128xf32> to vector<15x128xf32>
    %231 = arith.mulf %23, %230 : vector<15x128xf32>
    %232 = arith.addf %227, %231 : vector<15x128xf32>
    %c0_193 = arith.constant 0 : index
    %c2_194 = arith.constant 2 : index
    %233 = arith.index_cast %c8_i32 : i32 to index
    %c0_195 = arith.constant 0 : index
    %c0_196 = arith.constant 0 : index
    %234 = vector.load %arg3[%c0_193, %c2_194, %233, %c0_195, %c0_196] : memref<1x4x15x15x128xf32, #tpu.memory_space<vmem>>, vector<1x1x1x15x128xf32>
    %235 = vector.shape_cast %234 : vector<1x1x1x15x128xf32> to vector<15x128xf32>
    %236 = arith.mulf %27, %235 : vector<15x128xf32>
    %237 = arith.addf %232, %236 : vector<15x128xf32>
    %c0_197 = arith.constant 0 : index
    %c3_198 = arith.constant 3 : index
    %238 = arith.index_cast %c8_i32 : i32 to index
    %c0_199 = arith.constant 0 : index
    %c0_200 = arith.constant 0 : index
    %239 = vector.load %arg3[%c0_197, %c3_198, %238, %c0_199, %c0_200] : memref<1x4x15x15x128xf32, #tpu.memory_space<vmem>>, vector<1x1x1x15x128xf32>
    %240 = vector.shape_cast %239 : vector<1x1x1x15x128xf32> to vector<15x128xf32>
    %241 = arith.mulf %31, %240 : vector<15x128xf32>
    %242 = arith.addf %237, %241 : vector<15x128xf32>
    %c7_i32_201 = arith.constant 7 : i32
    %243 = arith.addi %c7_i32_201, %c8_i32 : i32
    %c0_202 = arith.constant 0 : index
    %244 = arith.index_cast %243 : i32 to index
    %c7_203 = arith.constant 7 : index
    %c0_204 = arith.constant 0 : index
    %245 = vector.load %arg4[%c0_202, %244, %c7_203, %c0_204] : memref<1x29x29x128xf32, #tpu.memory_space<vmem>>, vector<1x1x15x128xf32>
    %246 = vector.shape_cast %245 : vector<1x1x15x128xf32> to vector<15x128xf32>
    %247 = vector.shape_cast %242 : vector<15x128xf32> to vector<1x1x15x128xf32>
    tpu.vector_store %arg4[%c0_202, %244, %c7_203, %c0_204], %247 {strides = array<i32>} : memref<1x29x29x128xf32, #tpu.memory_space<vmem>>, vector<1x1x15x128xf32>,
    %c9_i32 = arith.constant 9 : i32
    %c0_205 = arith.constant 0 : index
    %c0_206 = arith.constant 0 : index
    %248 = arith.index_cast %c9_i32 : i32 to index
    %c0_207 = arith.constant 0 : index
    %c0_208 = arith.constant 0 : index
    %249 = vector.load %arg3[%c0_205, %c0_206, %248, %c0_207, %c0_208] : memref<1x4x15x15x128xf32, #tpu.memory_space<vmem>>, vector<1x1x1x15x128xf32>
    %250 = vector.shape_cast %249 : vector<1x1x1x15x128xf32> to vector<15x128xf32>
    %251 = arith.mulf %19, %250 : vector<15x128xf32>
    %c0_209 = arith.constant 0 : index
    %c1_210 = arith.constant 1 : index
    %252 = arith.index_cast %c9_i32 : i32 to index
    %c0_211 = arith.constant 0 : index
    %c0_212 = arith.constant 0 : index
    %253 = vector.load %arg3[%c0_209, %c1_210, %252, %c0_211, %c0_212] : memref<1x4x15x15x128xf32, #tpu.memory_space<vmem>>, vector<1x1x1x15x128xf32>
    %254 = vector.shape_cast %253 : vector<1x1x1x15x128xf32> to vector<15x128xf32>
    %255 = arith.mulf %23, %254 : vector<15x128xf32>
    %256 = arith.addf %251, %255 : vector<15x128xf32>
    %c0_213 = arith.constant 0 : index
    %c2_214 = arith.constant 2 : index
    %257 = arith.index_cast %c9_i32 : i32 to index
    %c0_215 = arith.constant 0 : index
    %c0_216 = arith.constant 0 : index
    %258 = vector.load %arg3[%c0_213, %c2_214, %257, %c0_215, %c0_216] : memref<1x4x15x15x128xf32, #tpu.memory_space<vmem>>, vector<1x1x1x15x128xf32>
    %259 = vector.shape_cast %258 : vector<1x1x1x15x128xf32> to vector<15x128xf32>
    %260 = arith.mulf %27, %259 : vector<15x128xf32>
    %261 = arith.addf %256, %260 : vector<15x128xf32>
    %c0_217 = arith.constant 0 : index
    %c3_218 = arith.constant 3 : index
    %262 = arith.index_cast %c9_i32 : i32 to index
    %c0_219 = arith.constant 0 : index
    %c0_220 = arith.constant 0 : index
    %263 = vector.load %arg3[%c0_217, %c3_218, %262, %c0_219, %c0_220] : memref<1x4x15x15x128xf32, #tpu.memory_space<vmem>>, vector<1x1x1x15x128xf32>
    %264 = vector.shape_cast %263 : vector<1x1x1x15x128xf32> to vector<15x128xf32>
    %265 = arith.mulf %31, %264 : vector<15x128xf32>
    %266 = arith.addf %261, %265 : vector<15x128xf32>
    %c7_i32_221 = arith.constant 7 : i32
    %267 = arith.addi %c7_i32_221, %c9_i32 : i32
    %c0_222 = arith.constant 0 : index
    %268 = arith.index_cast %267 : i32 to index
    %c7_223 = arith.constant 7 : index
    %c0_224 = arith.constant 0 : index
    %269 = vector.load %arg4[%c0_222, %268, %c7_223, %c0_224] : memref<1x29x29x128xf32, #tpu.memory_space<vmem>>, vector<1x1x15x128xf32>
    %270 = vector.shape_cast %269 : vector<1x1x15x128xf32> to vector<15x128xf32>
    %271 = vector.shape_cast %266 : vector<15x128xf32> to vector<1x1x15x128xf32>
    tpu.vector_store %arg4[%c0_222, %268, %c7_223, %c0_224], %271 {strides = array<i32>} : memref<1x29x29x128xf32, #tpu.memory_space<vmem>>, vector<1x1x15x128xf32>,
    %c10_i32 = arith.constant 10 : i32
    %c0_225 = arith.constant 0 : index
    %c0_226 = arith.constant 0 : index
    %272 = arith.index_cast %c10_i32 : i32 to index
    %c0_227 = arith.constant 0 : index
    %c0_228 = arith.constant 0 : index
    %273 = vector.load %arg3[%c0_225, %c0_226, %272, %c0_227, %c0_228] : memref<1x4x15x15x128xf32, #tpu.memory_space<vmem>>, vector<1x1x1x15x128xf32>
    %274 = vector.shape_cast %273 : vector<1x1x1x15x128xf32> to vector<15x128xf32>
    %275 = arith.mulf %19, %274 : vector<15x128xf32>
    %c0_229 = arith.constant 0 : index
    %c1_230 = arith.constant 1 : index
    %276 = arith.index_cast %c10_i32 : i32 to index
    %c0_231 = arith.constant 0 : index
    %c0_232 = arith.constant 0 : index
    %277 = vector.load %arg3[%c0_229, %c1_230, %276, %c0_231, %c0_232] : memref<1x4x15x15x128xf32, #tpu.memory_space<vmem>>, vector<1x1x1x15x128xf32>
    %278 = vector.shape_cast %277 : vector<1x1x1x15x128xf32> to vector<15x128xf32>
    %279 = arith.mulf %23, %278 : vector<15x128xf32>
    %280 = arith.addf %275, %279 : vector<15x128xf32>
    %c0_233 = arith.constant 0 : index
    %c2_234 = arith.constant 2 : index
    %281 = arith.index_cast %c10_i32 : i32 to index
    %c0_235 = arith.constant 0 : index
    %c0_236 = arith.constant 0 : index
    %282 = vector.load %arg3[%c0_233, %c2_234, %281, %c0_235, %c0_236] : memref<1x4x15x15x128xf32, #tpu.memory_space<vmem>>, vector<1x1x1x15x128xf32>
    %283 = vector.shape_cast %282 : vector<1x1x1x15x128xf32> to vector<15x128xf32>
    %284 = arith.mulf %27, %283 : vector<15x128xf32>
    %285 = arith.addf %280, %284 : vector<15x128xf32>
    %c0_237 = arith.constant 0 : index
    %c3_238 = arith.constant 3 : index
    %286 = arith.index_cast %c10_i32 : i32 to index
    %c0_239 = arith.constant 0 : index
    %c0_240 = arith.constant 0 : index
    %287 = vector.load %arg3[%c0_237, %c3_238, %286, %c0_239, %c0_240] : memref<1x4x15x15x128xf32, #tpu.memory_space<vmem>>, vector<1x1x1x15x128xf32>
    %288 = vector.shape_cast %287 : vector<1x1x1x15x128xf32> to vector<15x128xf32>
    %289 = arith.mulf %31, %288 : vector<15x128xf32>
    %290 = arith.addf %285, %289 : vector<15x128xf32>
    %c7_i32_241 = arith.constant 7 : i32
    %291 = arith.addi %c7_i32_241, %c10_i32 : i32
    %c0_242 = arith.constant 0 : index
    %292 = arith.index_cast %291 : i32 to index
    %c7_243 = arith.constant 7 : index
    %c0_244 = arith.constant 0 : index
    %293 = vector.load %arg4[%c0_242, %292, %c7_243, %c0_244] : memref<1x29x29x128xf32, #tpu.memory_space<vmem>>, vector<1x1x15x128xf32>
    %294 = vector.shape_cast %293 : vector<1x1x15x128xf32> to vector<15x128xf32>
    %295 = vector.shape_cast %290 : vector<15x128xf32> to vector<1x1x15x128xf32>
    tpu.vector_store %arg4[%c0_242, %292, %c7_243, %c0_244], %295 {strides = array<i32>} : memref<1x29x29x128xf32, #tpu.memory_space<vmem>>, vector<1x1x15x128xf32>,
    %c11_i32 = arith.constant 11 : i32
    %c0_245 = arith.constant 0 : index
    %c0_246 = arith.constant 0 : index
    %296 = arith.index_cast %c11_i32 : i32 to index
    %c0_247 = arith.constant 0 : index
    %c0_248 = arith.constant 0 : index
    %297 = vector.load %arg3[%c0_245, %c0_246, %296, %c0_247, %c0_248] : memref<1x4x15x15x128xf32, #tpu.memory_space<vmem>>, vector<1x1x1x15x128xf32>
    %298 = vector.shape_cast %297 : vector<1x1x1x15x128xf32> to vector<15x128xf32>
    %299 = arith.mulf %19, %298 : vector<15x128xf32>
    %c0_249 = arith.constant 0 : index
    %c1_250 = arith.constant 1 : index
    %300 = arith.index_cast %c11_i32 : i32 to index
    %c0_251 = arith.constant 0 : index
    %c0_252 = arith.constant 0 : index
    %301 = vector.load %arg3[%c0_249, %c1_250, %300, %c0_251, %c0_252] : memref<1x4x15x15x128xf32, #tpu.memory_space<vmem>>, vector<1x1x1x15x128xf32>
    %302 = vector.shape_cast %301 : vector<1x1x1x15x128xf32> to vector<15x128xf32>
    %303 = arith.mulf %23, %302 : vector<15x128xf32>
    %304 = arith.addf %299, %303 : vector<15x128xf32>
    %c0_253 = arith.constant 0 : index
    %c2_254 = arith.constant 2 : index
    %305 = arith.index_cast %c11_i32 : i32 to index
    %c0_255 = arith.constant 0 : index
    %c0_256 = arith.constant 0 : index
    %306 = vector.load %arg3[%c0_253, %c2_254, %305, %c0_255, %c0_256] : memref<1x4x15x15x128xf32, #tpu.memory_space<vmem>>, vector<1x1x1x15x128xf32>
    %307 = vector.shape_cast %306 : vector<1x1x1x15x128xf32> to vector<15x128xf32>
    %308 = arith.mulf %27, %307 : vector<15x128xf32>
    %309 = arith.addf %304, %308 : vector<15x128xf32>
    %c0_257 = arith.constant 0 : index
    %c3_258 = arith.constant 3 : index
    %310 = arith.index_cast %c11_i32 : i32 to index
    %c0_259 = arith.constant 0 : index
    %c0_260 = arith.constant 0 : index
    %311 = vector.load %arg3[%c0_257, %c3_258, %310, %c0_259, %c0_260] : memref<1x4x15x15x128xf32, #tpu.memory_space<vmem>>, vector<1x1x1x15x128xf32>
    %312 = vector.shape_cast %311 : vector<1x1x1x15x128xf32> to vector<15x128xf32>
    %313 = arith.mulf %31, %312 : vector<15x128xf32>
    %314 = arith.addf %309, %313 : vector<15x128xf32>
    %c7_i32_261 = arith.constant 7 : i32
    %315 = arith.addi %c7_i32_261, %c11_i32 : i32
    %c0_262 = arith.constant 0 : index
    %316 = arith.index_cast %315 : i32 to index
    %c7_263 = arith.constant 7 : index
    %c0_264 = arith.constant 0 : index
    %317 = vector.load %arg4[%c0_262, %316, %c7_263, %c0_264] : memref<1x29x29x128xf32, #tpu.memory_space<vmem>>, vector<1x1x15x128xf32>
    %318 = vector.shape_cast %317 : vector<1x1x15x128xf32> to vector<15x128xf32>
    %319 = vector.shape_cast %314 : vector<15x128xf32> to vector<1x1x15x128xf32>
    tpu.vector_store %arg4[%c0_262, %316, %c7_263, %c0_264], %319 {strides = array<i32>} : memref<1x29x29x128xf32, #tpu.memory_space<vmem>>, vector<1x1x15x128xf32>,
    %c12_i32 = arith.constant 12 : i32
    %c0_265 = arith.constant 0 : index
    %c0_266 = arith.constant 0 : index
    %320 = arith.index_cast %c12_i32 : i32 to index
    %c0_267 = arith.constant 0 : index
    %c0_268 = arith.constant 0 : index
    %321 = vector.load %arg3[%c0_265, %c0_266, %320, %c0_267, %c0_268] : memref<1x4x15x15x128xf32, #tpu.memory_space<vmem>>, vector<1x1x1x15x128xf32>
    %322 = vector.shape_cast %321 : vector<1x1x1x15x128xf32> to vector<15x128xf32>
    %323 = arith.mulf %19, %322 : vector<15x128xf32>
    %c0_269 = arith.constant 0 : index
    %c1_270 = arith.constant 1 : index
    %324 = arith.index_cast %c12_i32 : i32 to index
    %c0_271 = arith.constant 0 : index
    %c0_272 = arith.constant 0 : index
    %325 = vector.load %arg3[%c0_269, %c1_270, %324, %c0_271, %c0_272] : memref<1x4x15x15x128xf32, #tpu.memory_space<vmem>>, vector<1x1x1x15x128xf32>
    %326 = vector.shape_cast %325 : vector<1x1x1x15x128xf32> to vector<15x128xf32>
    %327 = arith.mulf %23, %326 : vector<15x128xf32>
    %328 = arith.addf %323, %327 : vector<15x128xf32>
    %c0_273 = arith.constant 0 : index
    %c2_274 = arith.constant 2 : index
    %329 = arith.index_cast %c12_i32 : i32 to index
    %c0_275 = arith.constant 0 : index
    %c0_276 = arith.constant 0 : index
    %330 = vector.load %arg3[%c0_273, %c2_274, %329, %c0_275, %c0_276] : memref<1x4x15x15x128xf32, #tpu.memory_space<vmem>>, vector<1x1x1x15x128xf32>
    %331 = vector.shape_cast %330 : vector<1x1x1x15x128xf32> to vector<15x128xf32>
    %332 = arith.mulf %27, %331 : vector<15x128xf32>
    %333 = arith.addf %328, %332 : vector<15x128xf32>
    %c0_277 = arith.constant 0 : index
    %c3_278 = arith.constant 3 : index
    %334 = arith.index_cast %c12_i32 : i32 to index
    %c0_279 = arith.constant 0 : index
    %c0_280 = arith.constant 0 : index
    %335 = vector.load %arg3[%c0_277, %c3_278, %334, %c0_279, %c0_280] : memref<1x4x15x15x128xf32, #tpu.memory_space<vmem>>, vector<1x1x1x15x128xf32>
    %336 = vector.shape_cast %335 : vector<1x1x1x15x128xf32> to vector<15x128xf32>
    %337 = arith.mulf %31, %336 : vector<15x128xf32>
    %338 = arith.addf %333, %337 : vector<15x128xf32>
    %c7_i32_281 = arith.constant 7 : i32
    %339 = arith.addi %c7_i32_281, %c12_i32 : i32
    %c0_282 = arith.constant 0 : index
    %340 = arith.index_cast %339 : i32 to index
    %c7_283 = arith.constant 7 : index
    %c0_284 = arith.constant 0 : index
    %341 = vector.load %arg4[%c0_282, %340, %c7_283, %c0_284] : memref<1x29x29x128xf32, #tpu.memory_space<vmem>>, vector<1x1x15x128xf32>
    %342 = vector.shape_cast %341 : vector<1x1x15x128xf32> to vector<15x128xf32>
    %343 = vector.shape_cast %338 : vector<15x128xf32> to vector<1x1x15x128xf32>
    tpu.vector_store %arg4[%c0_282, %340, %c7_283, %c0_284], %343 {strides = array<i32>} : memref<1x29x29x128xf32, #tpu.memory_space<vmem>>, vector<1x1x15x128xf32>,
    %c13_i32 = arith.constant 13 : i32
    %c0_285 = arith.constant 0 : index
    %c0_286 = arith.constant 0 : index
    %344 = arith.index_cast %c13_i32 : i32 to index
    %c0_287 = arith.constant 0 : index
    %c0_288 = arith.constant 0 : index
    %345 = vector.load %arg3[%c0_285, %c0_286, %344, %c0_287, %c0_288] : memref<1x4x15x15x128xf32, #tpu.memory_space<vmem>>, vector<1x1x1x15x128xf32>
    %346 = vector.shape_cast %345 : vector<1x1x1x15x128xf32> to vector<15x128xf32>
    %347 = arith.mulf %19, %346 : vector<15x128xf32>
    %c0_289 = arith.constant 0 : index
    %c1_290 = arith.constant 1 : index
    %348 = arith.index_cast %c13_i32 : i32 to index
    %c0_291 = arith.constant 0 : index
    %c0_292 = arith.constant 0 : index
    %349 = vector.load %arg3[%c0_289, %c1_290, %348, %c0_291, %c0_292] : memref<1x4x15x15x128xf32, #tpu.memory_space<vmem>>, vector<1x1x1x15x128xf32>
    %350 = vector.shape_cast %349 : vector<1x1x1x15x128xf32> to vector<15x128xf32>
    %351 = arith.mulf %23, %350 : vector<15x128xf32>
    %352 = arith.addf %347, %351 : vector<15x128xf32>
    %c0_293 = arith.constant 0 : index
    %c2_294 = arith.constant 2 : index
    %353 = arith.index_cast %c13_i32 : i32 to index
    %c0_295 = arith.constant 0 : index
    %c0_296 = arith.constant 0 : index
    %354 = vector.load %arg3[%c0_293, %c2_294, %353, %c0_295, %c0_296] : memref<1x4x15x15x128xf32, #tpu.memory_space<vmem>>, vector<1x1x1x15x128xf32>
    %355 = vector.shape_cast %354 : vector<1x1x1x15x128xf32> to vector<15x128xf32>
    %356 = arith.mulf %27, %355 : vector<15x128xf32>
    %357 = arith.addf %352, %356 : vector<15x128xf32>
    %c0_297 = arith.constant 0 : index
    %c3_298 = arith.constant 3 : index
    %358 = arith.index_cast %c13_i32 : i32 to index
    %c0_299 = arith.constant 0 : index
    %c0_300 = arith.constant 0 : index
    %359 = vector.load %arg3[%c0_297, %c3_298, %358, %c0_299, %c0_300] : memref<1x4x15x15x128xf32, #tpu.memory_space<vmem>>, vector<1x1x1x15x128xf32>
    %360 = vector.shape_cast %359 : vector<1x1x1x15x128xf32> to vector<15x128xf32>
    %361 = arith.mulf %31, %360 : vector<15x128xf32>
    %362 = arith.addf %357, %361 : vector<15x128xf32>
    %c7_i32_301 = arith.constant 7 : i32
    %363 = arith.addi %c7_i32_301, %c13_i32 : i32
    %c0_302 = arith.constant 0 : index
    %364 = arith.index_cast %363 : i32 to index
    %c7_303 = arith.constant 7 : index
    %c0_304 = arith.constant 0 : index
    %365 = vector.load %arg4[%c0_302, %364, %c7_303, %c0_304] : memref<1x29x29x128xf32, #tpu.memory_space<vmem>>, vector<1x1x15x128xf32>
    %366 = vector.shape_cast %365 : vector<1x1x15x128xf32> to vector<15x128xf32>
    %367 = vector.shape_cast %362 : vector<15x128xf32> to vector<1x1x15x128xf32>
    tpu.vector_store %arg4[%c0_302, %364, %c7_303, %c0_304], %367 {strides = array<i32>} : memref<1x29x29x128xf32, #tpu.memory_space<vmem>>, vector<1x1x15x128xf32>,
    %c14_i32 = arith.constant 14 : i32
    %c0_305 = arith.constant 0 : index
    %c0_306 = arith.constant 0 : index
    %368 = arith.index_cast %c14_i32 : i32 to index
    %c0_307 = arith.constant 0 : index
    %c0_308 = arith.constant 0 : index
    %369 = vector.load %arg3[%c0_305, %c0_306, %368, %c0_307, %c0_308] : memref<1x4x15x15x128xf32, #tpu.memory_space<vmem>>, vector<1x1x1x15x128xf32>
    %370 = vector.shape_cast %369 : vector<1x1x1x15x128xf32> to vector<15x128xf32>
    %371 = arith.mulf %19, %370 : vector<15x128xf32>
    %c0_309 = arith.constant 0 : index
    %c1_310 = arith.constant 1 : index
    %372 = arith.index_cast %c14_i32 : i32 to index
    %c0_311 = arith.constant 0 : index
    %c0_312 = arith.constant 0 : index
    %373 = vector.load %arg3[%c0_309, %c1_310, %372, %c0_311, %c0_312] : memref<1x4x15x15x128xf32, #tpu.memory_space<vmem>>, vector<1x1x1x15x128xf32>
    %374 = vector.shape_cast %373 : vector<1x1x1x15x128xf32> to vector<15x128xf32>
    %375 = arith.mulf %23, %374 : vector<15x128xf32>
    %376 = arith.addf %371, %375 : vector<15x128xf32>
    %c0_313 = arith.constant 0 : index
    %c2_314 = arith.constant 2 : index
    %377 = arith.index_cast %c14_i32 : i32 to index
    %c0_315 = arith.constant 0 : index
    %c0_316 = arith.constant 0 : index
    %378 = vector.load %arg3[%c0_313, %c2_314, %377, %c0_315, %c0_316] : memref<1x4x15x15x128xf32, #tpu.memory_space<vmem>>, vector<1x1x1x15x128xf32>
    %379 = vector.shape_cast %378 : vector<1x1x1x15x128xf32> to vector<15x128xf32>
    %380 = arith.mulf %27, %379 : vector<15x128xf32>
    %381 = arith.addf %376, %380 : vector<15x128xf32>
    %c0_317 = arith.constant 0 : index
    %c3_318 = arith.constant 3 : index
    %382 = arith.index_cast %c14_i32 : i32 to index
    %c0_319 = arith.constant 0 : index
    %c0_320 = arith.constant 0 : index
    %383 = vector.load %arg3[%c0_317, %c3_318, %382, %c0_319, %c0_320] : memref<1x4x15x15x128xf32, #tpu.memory_space<vmem>>, vector<1x1x1x15x128xf32>
    %384 = vector.shape_cast %383 : vector<1x1x1x15x128xf32> to vector<15x128xf32>
    %385 = arith.mulf %31, %384 : vector<15x128xf32>
    %386 = arith.addf %381, %385 : vector<15x128xf32>
    %c7_i32_321 = arith.constant 7 : i32
    %387 = arith.addi %c7_i32_321, %c14_i32 : i32
    %c0_322 = arith.constant 0 : index
    %388 = arith.index_cast %387 : i32 to index
    %c7_323 = arith.constant 7 : index
    %c0_324 = arith.constant 0 : index
    %389 = vector.load %arg4[%c0_322, %388, %c7_323, %c0_324] : memref<1x29x29x128xf32, #tpu.memory_space<vmem>>, vector<1x1x15x128xf32>
    %390 = vector.shape_cast %389 : vector<1x1x15x128xf32> to vector<15x128xf32>
    %391 = vector.shape_cast %386 : vector<15x128xf32> to vector<1x1x15x128xf32>
    tpu.vector_store %arg4[%c0_322, %388, %c7_323, %c0_324], %391 {strides = array<i32>} : memref<1x29x29x128xf32, #tpu.memory_space<vmem>>, vector<1x1x15x128xf32>,
    %c15_i32 = arith.constant 15 : i32
    return
  }
  func.func @transform_0(%arg0: i32, %arg1: i32) -> (i32, i32, i32) {
    %c0_i32 = arith.constant 0 : i32
    %c0_i32_0 = arith.constant 0 : i32
    return %arg0, %c0_i32, %arg1 : i32, i32, i32
  }
  func.func @transform_1(%arg0: i32, %arg1: i32) -> (i32, i32, i32, i32, i32) {
    %c0_i32 = arith.constant 0 : i32
    %c0_i32_0 = arith.constant 0 : i32
    %c0_i32_1 = arith.constant 0 : i32
    %c0_i32_2 = arith.constant 0 : i32
    return %arg0, %c0_i32, %c0_i32_0, %c0_i32_1, %arg1 : i32, i32, i32, i32, i32
  }
  func.func @transform_2(%arg0: i32, %arg1: i32) -> (i32, i32, i32, i32) {
    %c0_i32 = arith.constant 0 : i32
    %c0_i32_0 = arith.constant 0 : i32
    %c0_i32_1 = arith.constant 0 : i32
    return %arg0, %c0_i32, %c0_i32_0, %arg1 : i32, i32, i32, i32
  }
}

</mosaic_0001>

<llo_original>
// kernel: correlation_forward.1
$region0: #{correlation_forward.1}
  #allocation0 [shape = 'u32[]', space=smem, size = 0x4, offset = 0x4, fixed_abs, tag = 'smem constant byte address 0x4 - core index']
  #allocation1 [shape = 'u32[144,128]{1,0:T(1,128)}', space=vmem, size = 0x12000, scoped, tag = 'internal scratch']
  %s0 = inlined_call_operand.vmem [shape: f32[2,4,256], index: 0, kind: input, shape index: {}]
  %s1 = inlined_call_operand.vmem [shape: f32[2,4,15,15,256], index: 1, kind: input, shape index: {}]
  %s2 = inlined_call_operand.vmem [shape: f32[2,29,29,256], index: 2, kind: output, shape index: {}]
  %s3 = sld [smem:[#allocation0]]
  $region113: #{correlation_forward.1} parent=0
    _
  %s5 = ssub.s32 1, %s3
  %s6 = scalar_select 0, %s5, %s3
  $region1: #{correlation_forward.1} parent=0
    #allocation2 [shape = 'u8[983040]{0}', space=vmem, size = 0xf0000, scoped, tag = 'input window, operand 1']
    #allocation3 [shape = 'u8[950272]{0}', space=vmem, size = 0xe8000, scoped, tag = 'output window, operand 0']
    loop: start=0, step=1, limit=6
    $region2: #{correlation_forward.1} parent=1 // loop_pre_header
      _
    $region3: #{correlation_forward.1} parent=1 // loop_header
      %s8 = sphi 0, %s12
      %p9 = scmp.ge.s32.totalorder %s8, 6
      %s15 = sphi 0, %s27
      %s16 = sphi 0, %s23
      %s17 = sphi 0, %s15
      %s18 = sphi 0, %s16
      %s19 = sphi 0, %s17
      %s20 = sphi 0, %s18
      %s32 = sphi 0, %s34
      %s35 = sphi 0, %s32
      %s36 = sphi 0, %s35
      %s52 = sphi 0, %s36
      %s60 = sphi 0, %s62
      %s63 = sphi 0, %s60
      %s64 = sphi 0, %s63
      %s80 = sphi 0, %s64
      %s88 = sphi 0, %s90
      %s91 = sphi 0, %s88
      %s92 = sphi 0, %s91
      %s108 = sphi 0, %s92
    $region4: #{correlation_forward.1} parent=1 // loop_header_branch
      %11 = sbr.rel (%p9) target = $region8
    $region5: #{correlation_forward.1} parent=1 // loop_body
      %s13 = ssub.s32 %s8, 1
      %s14 = ssub.s32 %s8, 2
      %s21 = sadd.s32 1, %s16
      %p22 = scmp.ge.s32.totalorder %s21, 2
      %s23 = scalar_select %p22, 0, %s21
      %s24 = sadd.s32 1, %s15
      %s25 = scalar_select %p22, %s24, %s15
      %p26 = scmp.ge.s32.totalorder %s25, 2
      %s27 = scalar_select %p26, 0, %s25
      %s28 = ssub.s32 %s15, %s27
      %s29 = ssub.s32 %s16, %s23
      %s30 = sor.u32 %s28, %s29
      %p31 = scmp.eq.s32.totalorder %s30, 0
      %s33 = sadd.s32 %s32, 1
      %s34 = scalar_select %p31, %s32, %s33
      %p37 = pneg %p31
      %p38 = scmp.eq.s32.totalorder %s8, 3
      %p39 = por %p37, %p38
      %p40 = scmp.ne.s32.totalorder %s32, %s35
      %p41 = scmp.eq.s32.totalorder %s8, 0
      %p42 = por %p40, %p41
      %p43 = scmp.ne.s32.totalorder %s32, %s35
      %p44 = scmp.eq.s32.totalorder %s13, 3
      %p45 = por %p43, %p44
      %p46 = scmp.ne.s32.totalorder %s35, %s36
      %p47 = scmp.eq.s32.totalorder %s13, 0
      %p48 = por %p46, %p47
      %p49 = scmp.ne.s32.totalorder %s35, %s36
      %p50 = scmp.eq.s32.totalorder %s14, 3
      %p51 = por %p49, %p50
      %p53 = scmp.ne.s32.totalorder %s36, %s52
      %p54 = scmp.eq.s32.totalorder %s14, 0
      %p55 = por %p53, %p54
      %s56 = ssub.s32 %s15, %s27
      %s57 = ssub.s32 %s16, %s23
      %s58 = sor.u32 %s56, %s57
      %p59 = scmp.eq.s32.totalorder %s58, 0
      %s61 = sadd.s32 %s60, 1
      %s62 = scalar_select %p59, %s60, %s61
      %p65 = pneg %p59
      %p66 = scmp.eq.s32.totalorder %s8, 3
      %p67 = por %p65, %p66
      %p68 = scmp.ne.s32.totalorder %s60, %s63
      %p69 = scmp.eq.s32.totalorder %s8, 0
      %p70 = por %p68, %p69
      %p71 = scmp.ne.s32.totalorder %s60, %s63
      %p72 = scmp.eq.s32.totalorder %s13, 3
      %p73 = por %p71, %p72
      %p74 = scmp.ne.s32.totalorder %s63, %s64
      %p75 = scmp.eq.s32.totalorder %s13, 0
      %p76 = por %p74, %p75
      %p77 = scmp.ne.s32.totalorder %s63, %s64
      %p78 = scmp.eq.s32.totalorder %s14, 3
      %p79 = por %p77, %p78
      %p81 = scmp.ne.s32.totalorder %s64, %s80
      %p82 = scmp.eq.s32.totalorder %s14, 0
      %p83 = por %p81, %p82
      %s84 = ssub.s32 %s15, %s27
      %s85 = ssub.s32 %s16, %s23
      %s86 = sor.u32 %s84, %s85
      %p87 = scmp.eq.s32.totalorder %s86, 0
      %s89 = sadd.s32 %s88, 1
      %s90 = scalar_select %p87, %s88, %s89
      %p93 = pneg %p87
      %p94 = scmp.eq.s32.totalorder %s8, 3
      %p95 = por %p93, %p94
      %p96 = scmp.ne.s32.totalorder %s88, %s91
      %p97 = scmp.eq.s32.totalorder %s8, 0
      %p98 = por %p96, %p97
      %p99 = scmp.ne.s32.totalorder %s88, %s91
      %p100 = scmp.eq.s32.totalorder %s13, 3
      %p101 = por %p99, %p100
      %p102 = scmp.ne.s32.totalorder %s91, %s92
      %p103 = scmp.eq.s32.totalorder %s13, 0
      %p104 = por %p102, %p103
      %p105 = scmp.ne.s32.totalorder %s91, %s92
      %p106 = scmp.eq.s32.totalorder %s14, 3
      %p107 = por %p105, %p106
      %p109 = scmp.ne.s32.totalorder %s92, %s108
      %p110 = scmp.eq.s32.totalorder %s14, 0
      %p111 = por %p109, %p110
      %p112 = scmp.le.s32.totalorder 1, %s8
      %p113 = scmp.lt.s32.totalorder %s8, 5
      %p114 = pnand %p112, %p113
      %p115 = pneg %p114
      // Predicated region
      $region9: #{correlation_forward.1} parent=5 // pred_check
        _
      $region10: #{correlation_forward.1} parent=5 // pred_check_branch
        %117 = sbr.rel (%p114) target = $region12
      $region11: #{correlation_forward.1} parent=5 // pred_region
        %s118 = ssub.s32 %s8, 1
      $region12: #{correlation_forward.1} parent=5 // pred_fallthru
        _
      %p119 = scmp.lt.s32.totalorder %s8, 4
      // Predicated region
      $region13: #{correlation_forward.1} parent=5 // pred_check
        %p120 = pneg %p119
      $region14: #{correlation_forward.1} parent=5 // pred_check_branch
        %122 = sbr.rel (%p120) target = $region16
      $region15: #{correlation_forward.1} parent=5 // pred_region
        // Predicated region
        $region17: #{correlation_forward.1} parent=15 // pred_check
          %p123 = pneg %p42
        $region18: #{correlation_forward.1} parent=15 // pred_check_branch
          %125 = sbr.rel (%p123) target = $region20
        $region19: #{correlation_forward.1} parent=15 // pred_region
          %p126 = scmp.lt.s32.totalorder %s15, 1
          %s127 = scalar_select %p126, %s15, 1
          %p128 = scmp.lt.s32.totalorder %s16, 1
          %s129 = scalar_select %p128, %s16, 1
          %s130 = smul.addr %s127, 2
          %s131 = sadd.s32 %s129, %s130
          %s132 = smul.addr %s131, 4
          %s133 = scalar_lea.vmem %s0, %s132
        $region20: #{correlation_forward.1} parent=15 // pred_fallthru
          _
        // Predicated region
        $region21: #{correlation_forward.1} parent=15 // pred_check
          %p134 = pneg %p70
        $region22: #{correlation_forward.1} parent=15 // pred_check_branch
          %136 = sbr.rel (%p134) target = $region24
        $region23: #{correlation_forward.1} parent=15 // pred_region
          %s137 = sand.u32 %s60, 1
          %s138 = sand.u32 %s60, 1
          %s139 = smul.addr %s138, 960
          %s140 = scalar_lea.vmem [#allocation2], %s139
          %s141 = smul.addr %s15, 240
          %s142 = sadd.s32 %s16, %s141
          %s143 = smul.addr %s142, 8
          %s144 = scalar_lea.vmem %s1, %s143
          // Predicated region
          $region25: #{correlation_forward.1} parent=23 // pred_check
            _
          $region26: #{correlation_forward.1} parent=23 // pred_check_branch
            %146 = sbr.rel (0) target = $region28
          $region27: #{correlation_forward.1} parent=23 // pred_region
            // Predicated region
            $region29: #{correlation_forward.1} parent=27 // pred_check
              _
            $region30: #{correlation_forward.1} parent=27 // pred_check_branch
              %148 = sbr.rel (0) target = $region32
            $region31: #{correlation_forward.1} parent=27 // pred_region
              // Predicated region
              $region44: #{correlation_forward.1} parent=31 // pred_check
                _
              $region45: #{correlation_forward.1} parent=31 // pred_check_branch
                %401 = sbr.rel (0) target = $region47
              $region46: #{correlation_forward.1} parent=31 // pred_region
                loop: start=0, step=1, limit=1
                $region48: #{correlation_forward.1} parent=46 // loop_pre_header
                  _
                $region49: #{correlation_forward.1} parent=46 // loop_header
                  %s403 = sphi 0, %s407
                  %p404 = scmp.ge.s32.totalorder %s403, 1
                  %s408 = sphi %s144, %s144
                  %s409 = sphi %s140, %s140
                $region50: #{correlation_forward.1} parent=46 // loop_header_branch
                  %406 = sbr.rel (%p404) target = $region54
                $region51: #{correlation_forward.1} parent=46 // loop_body
                  %v410 = vld [vmem:[%s408] sm:$0xff]
                  %411 = vst [vmem:[%s409] sm:$0xff] %v410
                  %v412 = vld [vmem:[%s408 + $0x10] sm:$0xff]
                  %413 = vst [vmem:[%s409 + $0x8] sm:$0xff] %v412
                  %v414 = vld [vmem:[%s408 + $0x20] sm:$0xff]
                  %415 = vst [vmem:[%s409 + $0x10] sm:$0xff] %v414
                  %v416 = vld [vmem:[%s408 + $0x30] sm:$0xff]
                  %417 = vst [vmem:[%s409 + $0x18] sm:$0xff] %v416
                  %v418 = vld [vmem:[%s408 + $0x40] sm:$0xff]
                  %419 = vst [vmem:[%s409 + $0x20] sm:$0xff] %v418
                  %v420 = vld [vmem:[%s408 + $0x50] sm:$0xff]
                  %421 = vst [vmem:[%s409 + $0x28] sm:$0xff] %v420
                  %v422 = vld [vmem:[%s408 + $0x60] sm:$0xff]
                  %423 = vst [vmem:[%s409 + $0x30] sm:$0xff] %v422
                  %v424 = vld [vmem:[%s408 + $0x70] sm:$0xff]
                  %425 = vst [vmem:[%s409 + $0x38] sm:$0xff] %v424
                  %v426 = vld [vmem:[%s408 + $0x80] sm:$0xff]
                  %427 = vst [vmem:[%s409 + $0x40] sm:$0xff] %v426
                  %v428 = vld [vmem:[%s408 + $0x90] sm:$0xff]
                  %429 = vst [vmem:[%s409 + $0x48] sm:$0xff] %v428
                  %v430 = vld [vmem:[%s408 + $0xa0] sm:$0xff]
                  %431 = vst [vmem:[%s409 + $0x50] sm:$0xff] %v430
                  %v432 = vld [vmem:[%s408 + $0xb0] sm:$0xff]
                  %433 = vst [vmem:[%s409 + $0x58] sm:$0xff] %v432
                  %v434 = vld [vmem:[%s408 + $0xc0] sm:$0xff]
                  %435 = vst [vmem:[%s409 + $0x60] sm:$0xff] %v434
                  %v436 = vld [vmem:[%s408 + $0xd0] sm:$0xff]
                  %437 = vst [vmem:[%s409 + $0x68] sm:$0xff] %v436
                  %v438 = vld [vmem:[%s408 + $0xe0] sm:$0xff]
                  %439 = vst [vmem:[%s409 + $0x70] sm:$0xff] %v438
                  %v440 = vld [vmem:[%s408 + $0xf0] sm:$0xff]
                  %441 = vst [vmem:[%s409 + $0x78] sm:$0xff] %v440
                  %v442 = vld [vmem:[%s408 + $0x100] sm:$0xff]
                  %443 = vst [vmem:[%s409 + $0x80] sm:$0xff] %v442
                  %v444 = vld [vmem:[%s408 + $0x110] sm:$0xff]
                  %445 = vst [vmem:[%s409 + $0x88] sm:$0xff] %v444
                  %v446 = vld [vmem:[%s408 + $0x120] sm:$0xff]
                  %447 = vst [vmem:[%s409 + $0x90] sm:$0xff] %v446
                  %v448 = vld [vmem:[%s408 + $0x130] sm:$0xff]
                  %449 = vst [vmem:[%s409 + $0x98] sm:$0xff] %v448
                  %v450 = vld [vmem:[%s408 + $0x140] sm:$0xff]
                  %451 = vst [vmem:[%s409 + $0xa0] sm:$0xff] %v450
                  %v452 = vld [vmem:[%s408 + $0x150] sm:$0xff]
                  %453 = vst [vmem:[%s409 + $0xa8] sm:$0xff] %v452
                  %v454 = vld [vmem:[%s408 + $0x160] sm:$0xff]
                  %455 = vst [vmem:[%s409 + $0xb0] sm:$0xff] %v454
                  %v456 = vld [vmem:[%s408 + $0x170] sm:$0xff]
                  %457 = vst [vmem:[%s409 + $0xb8] sm:$0xff] %v456
                  %v458 = vld [vmem:[%s408 + $0x180] sm:$0xff]
                  %459 = vst [vmem:[%s409 + $0xc0] sm:$0xff] %v458
                  %v460 = vld [vmem:[%s408 + $0x190] sm:$0xff]
                  %461 = vst [vmem:[%s409 + $0xc8] sm:$0xff] %v460
                  %v462 = vld [vmem:[%s408 + $0x1a0] sm:$0xff]
                  %463 = vst [vmem:[%s409 + $0xd0] sm:$0xff] %v462
                  %v464 = vld [vmem:[%s408 + $0x1b0] sm:$0xff]
                  %465 = vst [vmem:[%s409 + $0xd8] sm:$0xff] %v464
                  %v466 = vld [vmem:[%s408 + $0x1c0] sm:$0xff]
                  %467 = vst [vmem:[%s409 + $0xe0] sm:$0xff] %v466
                  %v468 = vld [vmem:[%s408 + $0x1d0] sm:$0xff]
                  %469 = vst [vmem:[%s409 + $0xe8] sm:$0xff] %v468
                  %v470 = vld [vmem:[%s408 + $0x1e0] sm:$0xff]
                  %471 = vst [vmem:[%s409 + $0xf0] sm:$0xff] %v470
                  %v472 = vld [vmem:[%s408 + $0x1f0] sm:$0xff]
                  %473 = vst [vmem:[%s409 + $0xf8] sm:$0xff] %v472
                  %v474 = vld [vmem:[%s408 + $0x200] sm:$0xff]
                  %475 = vst [vmem:[%s409 + $0x100] sm:$0xff] %v474
                  %v476 = vld [vmem:[%s408 + $0x210] sm:$0xff]
                  %477 = vst [vmem:[%s409 + $0x108] sm:$0xff] %v476
                  %v478 = vld [vmem:[%s408 + $0x220] sm:$0xff]
                  %479 = vst [vmem:[%s409 + $0x110] sm:$0xff] %v478
                  %v480 = vld [vmem:[%s408 + $0x230] sm:$0xff]
                  %481 = vst [vmem:[%s409 + $0x118] sm:$0xff] %v480
                  %v482 = vld [vmem:[%s408 + $0x240] sm:$0xff]
                  %483 = vst [vmem:[%s409 + $0x120] sm:$0xff] %v482
                  %v484 = vld [vmem:[%s408 + $0x250] sm:$0xff]
                  %485 = vst [vmem:[%s409 + $0x128] sm:$0xff] %v484
                  %v486 = vld [vmem:[%s408 + $0x260] sm:$0xff]
                  %487 = vst [vmem:[%s409 + $0x130] sm:$0xff] %v486
                  %v488 = vld [vmem:[%s408 + $0x270] sm:$0xff]
                  %489 = vst [vmem:[%s409 + $0x138] sm:$0xff] %v488
                  %v490 = vld [vmem:[%s408 + $0x280] sm:$0xff]
                  %491 = vst [vmem:[%s409 + $0x140] sm:$0xff] %v490
                  %v492 = vld [vmem:[%s408 + $0x290] sm:$0xff]
                  %493 = vst [vmem:[%s409 + $0x148] sm:$0xff] %v492
                  %v494 = vld [vmem:[%s408 + $0x2a0] sm:$0xff]
                  %495 = vst [vmem:[%s409 + $0x150] sm:$0xff] %v494
                  %v496 = vld [vmem:[%s408 + $0x2b0] sm:$0xff]
                  %497 = vst [vmem:[%s409 + $0x158] sm:$0xff] %v496
                  %v498 = vld [vmem:[%s408 + $0x2c0] sm:$0xff]
                  %499 = vst [vmem:[%s409 + $0x160] sm:$0xff] %v498
                  %v500 = vld [vmem:[%s408 + $0x2d0] sm:$0xff]
                  %501 = vst [vmem:[%s409 + $0x168] sm:$0xff] %v500
                  %v502 = vld [vmem:[%s408 + $0x2e0] sm:$0xff]
                  %503 = vst [vmem:[%s409 + $0x170] sm:$0xff] %v502
                  %v504 = vld [vmem:[%s408 + $0x2f0] sm:$0xff]
                  %505 = vst [vmem:[%s409 + $0x178] sm:$0xff] %v504
                  %v506 = vld [vmem:[%s408 + $0x300] sm:$0xff]
                  %507 = vst [vmem:[%s409 + $0x180] sm:$0xff] %v506
                  %v508 = vld [vmem:[%s408 + $0x310] sm:$0xff]
                  %509 = vst [vmem:[%s409 + $0x188] sm:$0xff] %v508
                  %v510 = vld [vmem:[%s408 + $0x320] sm:$0xff]
                  %511 = vst [vmem:[%s409 + $0x190] sm:$0xff] %v510
                  %v512 = vld [vmem:[%s408 + $0x330] sm:$0xff]
                  %513 = vst [vmem:[%s409 + $0x198] sm:$0xff] %v512
                  %v514 = vld [vmem:[%s408 + $0x340] sm:$0xff]
                  %515 = vst [vmem:[%s409 + $0x1a0] sm:$0xff] %v514
                  %v516 = vld [vmem:[%s408 + $0x350] sm:$0xff]
                  %517 = vst [vmem:[%s409 + $0x1a8] sm:$0xff] %v516
                  %v518 = vld [vmem:[%s408 + $0x360] sm:$0xff]
                  %519 = vst [vmem:[%s409 + $0x1b0] sm:$0xff] %v518
                  %v520 = vld [vmem:[%s408 + $0x370] sm:$0xff]
                  %521 = vst [vmem:[%s409 + $0x1b8] sm:$0xff] %v520
                  %v522 = vld [vmem:[%s408 + $0x380] sm:$0xff]
                  %523 = vst [vmem:[%s409 + $0x1c0] sm:$0xff] %v522
                  %v524 = vld [vmem:[%s408 + $0x390] sm:$0xff]
                  %525 = vst [vmem:[%s409 + $0x1c8] sm:$0xff] %v524
                  %v526 = vld [vmem:[%s408 + $0x3a0] sm:$0xff]
                  %527 = vst [vmem:[%s409 + $0x1d0] sm:$0xff] %v526
                  %v528 = vld [vmem:[%s408 + $0x3b0] sm:$0xff]
                  %529 = vst [vmem:[%s409 + $0x1d8] sm:$0xff] %v528
                  %v530 = vld [vmem:[%s408 + $0x3c0] sm:$0xff]
                  %531 = vst [vmem:[%s409 + $0x1e0] sm:$0xff] %v530
                  %v532 = vld [vmem:[%s408 + $0x3d0] sm:$0xff]
                  %533 = vst [vmem:[%s409 + $0x1e8] sm:$0xff] %v532
                  %v534 = vld [vmem:[%s408 + $0x3e0] sm:$0xff]
                  %535 = vst [vmem:[%s409 + $0x1f0] sm:$0xff] %v534
                  %v536 = vld [vmem:[%s408 + $0x3f0] sm:$0xff]
                  %537 = vst [vmem:[%s409 + $0x1f8] sm:$0xff] %v536
                  %v538 = vld [vmem:[%s408 + $0x400] sm:$0xff]
                  %539 = vst [vmem:[%s409 + $0x200] sm:$0xff] %v538
                  %v540 = vld [vmem:[%s408 + $0x410] sm:$0xff]
                  %541 = vst [vmem:[%s409 + $0x208] sm:$0xff] %v540
                  %v542 = vld [vmem:[%s408 + $0x420] sm:$0xff]
                  %543 = vst [vmem:[%s409 + $0x210] sm:$0xff] %v542
                  %v544 = vld [vmem:[%s408 + $0x430] sm:$0xff]
                  %545 = vst [vmem:[%s409 + $0x218] sm:$0xff] %v544
                  %v546 = vld [vmem:[%s408 + $0x440] sm:$0xff]
                  %547 = vst [vmem:[%s409 + $0x220] sm:$0xff] %v546
                  %v548 = vld [vmem:[%s408 + $0x450] sm:$0xff]
                  %549 = vst [vmem:[%s409 + $0x228] sm:$0xff] %v548
                  %v550 = vld [vmem:[%s408 + $0x460] sm:$0xff]
                  %551 = vst [vmem:[%s409 + $0x230] sm:$0xff] %v550
                  %v552 = vld [vmem:[%s408 + $0x470] sm:$0xff]
                  %553 = vst [vmem:[%s409 + $0x238] sm:$0xff] %v552
                  %v554 = vld [vmem:[%s408 + $0x480] sm:$0xff]
                  %555 = vst [vmem:[%s409 + $0x240] sm:$0xff] %v554
                  %v556 = vld [vmem:[%s408 + $0x490] sm:$0xff]
                  %557 = vst [vmem:[%s409 + $0x248] sm:$0xff] %v556
                  %v558 = vld [vmem:[%s408 + $0x4a0] sm:$0xff]
                  %559 = vst [vmem:[%s409 + $0x250] sm:$0xff] %v558
                  %v560 = vld [vmem:[%s408 + $0x4b0] sm:$0xff]
                  %561 = vst [vmem:[%s409 + $0x258] sm:$0xff] %v560
                  %v562 = vld [vmem:[%s408 + $0x4c0] sm:$0xff]
                  %563 = vst [vmem:[%s409 + $0x260] sm:$0xff] %v562
                  %v564 = vld [vmem:[%s408 + $0x4d0] sm:$0xff]
                  %565 = vst [vmem:[%s409 + $0x268] sm:$0xff] %v564
                  %v566 = vld [vmem:[%s408 + $0x4e0] sm:$0xff]
                  %567 = vst [vmem:[%s409 + $0x270] sm:$0xff] %v566
                  %v568 = vld [vmem:[%s408 + $0x4f0] sm:$0xff]
                  %569 = vst [vmem:[%s409 + $0x278] sm:$0xff] %v568
                  %v570 = vld [vmem:[%s408 + $0x500] sm:$0xff]
                  %571 = vst [vmem:[%s409 + $0x280] sm:$0xff] %v570
                  %v572 = vld [vmem:[%s408 + $0x510] sm:$0xff]
                  %573 = vst [vmem:[%s409 + $0x288] sm:$0xff] %v572
                  %v574 = vld [vmem:[%s408 + $0x520] sm:$0xff]
                  %575 = vst [vmem:[%s409 + $0x290] sm:$0xff] %v574
                  %v576 = vld [vmem:[%s408 + $0x530] sm:$0xff]
                  %577 = vst [vmem:[%s409 + $0x298] sm:$0xff] %v576
                  %v578 = vld [vmem:[%s408 + $0x540] sm:$0xff]
                  %579 = vst [vmem:[%s409 + $0x2a0] sm:$0xff] %v578
                  %v580 = vld [vmem:[%s408 + $0x550] sm:$0xff]
                  %581 = vst [vmem:[%s409 + $0x2a8] sm:$0xff] %v580
                  %v582 = vld [vmem:[%s408 + $0x560] sm:$0xff]
                  %583 = vst [vmem:[%s409 + $0x2b0] sm:$0xff] %v582
                  %v584 = vld [vmem:[%s408 + $0x570] sm:$0xff]
                  %585 = vst [vmem:[%s409 + $0x2b8] sm:$0xff] %v584
                  %v586 = vld [vmem:[%s408 + $0x580] sm:$0xff]
                  %587 = vst [vmem:[%s409 + $0x2c0] sm:$0xff] %v586
                  %v588 = vld [vmem:[%s408 + $0x590] sm:$0xff]
                  %589 = vst [vmem:[%s409 + $0x2c8] sm:$0xff] %v588
                  %v590 = vld [vmem:[%s408 + $0x5a0] sm:$0xff]
                  %591 = vst [vmem:[%s409 + $0x2d0] sm:$0xff] %v590
                  %v592 = vld [vmem:[%s408 + $0x5b0] sm:$0xff]
                  %593 = vst [vmem:[%s409 + $0x2d8] sm:$0xff] %v592
                  %v594 = vld [vmem:[%s408 + $0x5c0] sm:$0xff]
                  %595 = vst [vmem:[%s409 + $0x2e0] sm:$0xff] %v594
                  %v596 = vld [vmem:[%s408 + $0x5d0] sm:$0xff]
                  %597 = vst [vmem:[%s409 + $0x2e8] sm:$0xff] %v596
                  %v598 = vld [vmem:[%s408 + $0x5e0] sm:$0xff]
                  %599 = vst [vmem:[%s409 + $0x2f0] sm:$0xff] %v598
                  %v600 = vld [vmem:[%s408 + $0x5f0] sm:$0xff]
                  %601 = vst [vmem:[%s409 + $0x2f8] sm:$0xff] %v600
                  %v602 = vld [vmem:[%s408 + $0x600] sm:$0xff]
                  %603 = vst [vmem:[%s409 + $0x300] sm:$0xff] %v602
                  %v604 = vld [vmem:[%s408 + $0x610] sm:$0xff]
                  %605 = vst [vmem:[%s409 + $0x308] sm:$0xff] %v604
                  %v606 = vld [vmem:[%s408 + $0x620] sm:$0xff]
                  %607 = vst [vmem:[%s409 + $0x310] sm:$0xff] %v606
                  %v608 = vld [vmem:[%s408 + $0x630] sm:$0xff]
                  %609 = vst [vmem:[%s409 + $0x318] sm:$0xff] %v608
                  %v610 = vld [vmem:[%s408 + $0x640] sm:$0xff]
                  %611 = vst [vmem:[%s409 + $0x320] sm:$0xff] %v610
                  %v612 = vld [vmem:[%s408 + $0x650] sm:$0xff]
                  %613 = vst [vmem:[%s409 + $0x328] sm:$0xff] %v612
                  %v614 = vld [vmem:[%s408 + $0x660] sm:$0xff]
                  %615 = vst [vmem:[%s409 + $0x330] sm:$0xff] %v614
                  %v616 = vld [vmem:[%s408 + $0x670] sm:$0xff]
                  %617 = vst [vmem:[%s409 + $0x338] sm:$0xff] %v616
                  %v618 = vld [vmem:[%s408 + $0x680] sm:$0xff]
                  %619 = vst [vmem:[%s409 + $0x340] sm:$0xff] %v618
                  %v620 = vld [vmem:[%s408 + $0x690] sm:$0xff]
                  %621 = vst [vmem:[%s409 + $0x348] sm:$0xff] %v620
                  %v622 = vld [vmem:[%s408 + $0x6a0] sm:$0xff]
                  %623 = vst [vmem:[%s409 + $0x350] sm:$0xff] %v622
                  %v624 = vld [vmem:[%s408 + $0x6b0] sm:$0xff]
                  %625 = vst [vmem:[%s409 + $0x358] sm:$0xff] %v624
                  %v626 = vld [vmem:[%s408 + $0x6c0] sm:$0xff]
                  %627 = vst [vmem:[%s409 + $0x360] sm:$0xff] %v626
                  %v628 = vld [vmem:[%s408 + $0x6d0] sm:$0xff]
                  %629 = vst [vmem:[%s409 + $0x368] sm:$0xff] %v628
                  %v630 = vld [vmem:[%s408 + $0x6e0] sm:$0xff]
                  %631 = vst [vmem:[%s409 + $0x370] sm:$0xff] %v630
                  %v632 = vld [vmem:[%s408 + $0x6f0] sm:$0xff]
                  %633 = vst [vmem:[%s409 + $0x378] sm:$0xff] %v632
                  %v634 = vld [vmem:[%s408 + $0x700] sm:$0xff]
                  %635 = vst [vmem:[%s409 + $0x380] sm:$0xff] %v634
                  %v636 = vld [vmem:[%s408 + $0x710] sm:$0xff]
                  %637 = vst [vmem:[%s409 + $0x388] sm:$0xff] %v636
                  %v638 = vld [vmem:[%s408 + $0x720] sm:$0xff]
                  %639 = vst [vmem:[%s409 + $0x390] sm:$0xff] %v638
                  %v640 = vld [vmem:[%s408 + $0x730] sm:$0xff]
                  %641 = vst [vmem:[%s409 + $0x398] sm:$0xff] %v640
                  %v642 = vld [vmem:[%s408 + $0x740] sm:$0xff]
                  %643 = vst [vmem:[%s409 + $0x3a0] sm:$0xff] %v642
                  %v644 = vld [vmem:[%s408 + $0x750] sm:$0xff]
                  %645 = vst [vmem:[%s409 + $0x3a8] sm:$0xff] %v644
                  %v646 = vld [vmem:[%s408 + $0x760] sm:$0xff]
                  %647 = vst [vmem:[%s409 + $0x3b0] sm:$0xff] %v646
                  %v648 = vld [vmem:[%s408 + $0x770] sm:$0xff]
                  %649 = vst [vmem:[%s409 + $0x3b8] sm:$0xff] %v648
                $region52: #{correlation_forward.1} parent=46 // loop_footer
                  %s407 = sadd.s32 1, %s403
                $region53: #{correlation_forward.1} parent=46 // loop_footer_branch
                  %402 = sbr.rel target = $region49
                $region54: #{correlation_forward.1} parent=46 // loop_exit
                  _
              $region47: #{correlation_forward.1} parent=31 // pred_fallthru
                _
              // Predicated region
              $region55: #{correlation_forward.1} parent=31 // pred_check
                _
              $region56: #{correlation_forward.1} parent=31 // pred_check_branch
                %651 = sbr.rel target = $region58
              $region57: #{correlation_forward.1} parent=31 // pred_region
                _
              $region58: #{correlation_forward.1} parent=31 // pred_fallthru
                _
            $region32: #{correlation_forward.1} parent=27 // pred_fallthru
              _
            // Predicated region
            $region33: #{correlation_forward.1} parent=27 // pred_check
              _
            $region34: #{correlation_forward.1} parent=27 // pred_check_branch
              %150 = sbr.rel target = $region36
            $region35: #{correlation_forward.1} parent=27 // pred_region
              loop: start=0, step=1, limit=1
              $region37: #{correlation_forward.1} parent=35 // loop_pre_header
                _
              $region38: #{correlation_forward.1} parent=35 // loop_header
                %s153 = sphi 0, %s157
                %p154 = scmp.ge.s32.totalorder %s153, 1
                %s158 = sphi %s144, %s144
                %s159 = sphi %s140, %s140
              $region39: #{correlation_forward.1} parent=35 // loop_header_branch
                %156 = sbr.rel (%p154) target = $region43
              $region40: #{correlation_forward.1} parent=35 // loop_body
                %v160 = vld [vmem:[%s158] sm:$0xff]
                %161 = vst [vmem:[%s159] sm:$0xff] %v160
                %v162 = vld [vmem:[%s158 + $0x10] sm:$0xff]
                %163 = vst [vmem:[%s159 + $0x8] sm:$0xff] %v162
                %v164 = vld [vmem:[%s158 + $0x20] sm:$0xff]
                %165 = vst [vmem:[%s159 + $0x10] sm:$0xff] %v164
                %v166 = vld [vmem:[%s158 + $0x30] sm:$0xff]
                %167 = vst [vmem:[%s159 + $0x18] sm:$0xff] %v166
                %v168 = vld [vmem:[%s158 + $0x40] sm:$0xff]
                %169 = vst [vmem:[%s159 + $0x20] sm:$0xff] %v168
                %v170 = vld [vmem:[%s158 + $0x50] sm:$0xff]
                %171 = vst [vmem:[%s159 + $0x28] sm:$0xff] %v170
                %v172 = vld [vmem:[%s158 + $0x60] sm:$0xff]
                %173 = vst [vmem:[%s159 + $0x30] sm:$0xff] %v172
                %v174 = vld [vmem:[%s158 + $0x70] sm:$0xff]
                %175 = vst [vmem:[%s159 + $0x38] sm:$0xff] %v174
                %v176 = vld [vmem:[%s158 + $0x80] sm:$0xff]
                %177 = vst [vmem:[%s159 + $0x40] sm:$0xff] %v176
                %v178 = vld [vmem:[%s158 + $0x90] sm:$0xff]
                %179 = vst [vmem:[%s159 + $0x48] sm:$0xff] %v178
                %v180 = vld [vmem:[%s158 + $0xa0] sm:$0xff]
                %181 = vst [vmem:[%s159 + $0x50] sm:$0xff] %v180
                %v182 = vld [vmem:[%s158 + $0xb0] sm:$0xff]
                %183 = vst [vmem:[%s159 + $0x58] sm:$0xff] %v182
                %v184 = vld [vmem:[%s158 + $0xc0] sm:$0xff]
                %185 = vst [vmem:[%s159 + $0x60] sm:$0xff] %v184
                %v186 = vld [vmem:[%s158 + $0xd0] sm:$0xff]
                %187 = vst [vmem:[%s159 + $0x68] sm:$0xff] %v186
                %v188 = vld [vmem:[%s158 + $0xe0] sm:$0xff]
                %189 = vst [vmem:[%s159 + $0x70] sm:$0xff] %v188
                %v190 = vld [vmem:[%s158 + $0xf0] sm:$0xff]
                %191 = vst [vmem:[%s159 + $0x78] sm:$0xff] %v190
                %v192 = vld [vmem:[%s158 + $0x100] sm:$0xff]
                %193 = vst [vmem:[%s159 + $0x80] sm:$0xff] %v192
                %v194 = vld [vmem:[%s158 + $0x110] sm:$0xff]
                %195 = vst [vmem:[%s159 + $0x88] sm:$0xff] %v194
                %v196 = vld [vmem:[%s158 + $0x120] sm:$0xff]
                %197 = vst [vmem:[%s159 + $0x90] sm:$0xff] %v196
                %v198 = vld [vmem:[%s158 + $0x130] sm:$0xff]
                %199 = vst [vmem:[%s159 + $0x98] sm:$0xff] %v198
                %v200 = vld [vmem:[%s158 + $0x140] sm:$0xff]
                %201 = vst [vmem:[%s159 + $0xa0] sm:$0xff] %v200
                %v202 = vld [vmem:[%s158 + $0x150] sm:$0xff]
                %203 = vst [vmem:[%s159 + $0xa8] sm:$0xff] %v202
                %v204 = vld [vmem:[%s158 + $0x160] sm:$0xff]
                %205 = vst [vmem:[%s159 + $0xb0] sm:$0xff] %v204
                %v206 = vld [vmem:[%s158 + $0x170] sm:$0xff]
                %207 = vst [vmem:[%s159 + $0xb8] sm:$0xff] %v206
                %v208 = vld [vmem:[%s158 + $0x180] sm:$0xff]
                %209 = vst [vmem:[%s159 + $0xc0] sm:$0xff] %v208
                %v210 = vld [vmem:[%s158 + $0x190] sm:$0xff]
                %211 = vst [vmem:[%s159 + $0xc8] sm:$0xff] %v210
                %v212 = vld [vmem:[%s158 + $0x1a0] sm:$0xff]
                %213 = vst [vmem:[%s159 + $0xd0] sm:$0xff] %v212
                %v214 = vld [vmem:[%s158 + $0x1b0] sm:$0xff]
                %215 = vst [vmem:[%s159 + $0xd8] sm:$0xff] %v214
                %v216 = vld [vmem:[%s158 + $0x1c0] sm:$0xff]
                %217 = vst [vmem:[%s159 + $0xe0] sm:$0xff] %v216
                %v218 = vld [vmem:[%s158 + $0x1d0] sm:$0xff]
                %219 = vst [vmem:[%s159 + $0xe8] sm:$0xff] %v218
                %v220 = vld [vmem:[%s158 + $0x1e0] sm:$0xff]
                %221 = vst [vmem:[%s159 + $0xf0] sm:$0xff] %v220
                %v222 = vld [vmem:[%s158 + $0x1f0] sm:$0xff]
                %223 = vst [vmem:[%s159 + $0xf8] sm:$0xff] %v222
                %v224 = vld [vmem:[%s158 + $0x200] sm:$0xff]
                %225 = vst [vmem:[%s159 + $0x100] sm:$0xff] %v224
                %v226 = vld [vmem:[%s158 + $0x210] sm:$0xff]
                %227 = vst [vmem:[%s159 + $0x108] sm:$0xff] %v226
                %v228 = vld [vmem:[%s158 + $0x220] sm:$0xff]
                %229 = vst [vmem:[%s159 + $0x110] sm:$0xff] %v228
                %v230 = vld [vmem:[%s158 + $0x230] sm:$0xff]
                %231 = vst [vmem:[%s159 + $0x118] sm:$0xff] %v230
                %v232 = vld [vmem:[%s158 + $0x240] sm:$0xff]
                %233 = vst [vmem:[%s159 + $0x120] sm:$0xff] %v232
                %v234 = vld [vmem:[%s158 + $0x250] sm:$0xff]
                %235 = vst [vmem:[%s159 + $0x128] sm:$0xff] %v234
                %v236 = vld [vmem:[%s158 + $0x260] sm:$0xff]
                %237 = vst [vmem:[%s159 + $0x130] sm:$0xff] %v236
                %v238 = vld [vmem:[%s158 + $0x270] sm:$0xff]
                %239 = vst [vmem:[%s159 + $0x138] sm:$0xff] %v238
                %v240 = vld [vmem:[%s158 + $0x280] sm:$0xff]
                %241 = vst [vmem:[%s159 + $0x140] sm:$0xff] %v240
                %v242 = vld [vmem:[%s158 + $0x290] sm:$0xff]
                %243 = vst [vmem:[%s159 + $0x148] sm:$0xff] %v242
                %v244 = vld [vmem:[%s158 + $0x2a0] sm:$0xff]
                %245 = vst [vmem:[%s159 + $0x150] sm:$0xff] %v244
                %v246 = vld [vmem:[%s158 + $0x2b0] sm:$0xff]
                %247 = vst [vmem:[%s159 + $0x158] sm:$0xff] %v246
                %v248 = vld [vmem:[%s158 + $0x2c0] sm:$0xff]
                %249 = vst [vmem:[%s159 + $0x160] sm:$0xff] %v248
                %v250 = vld [vmem:[%s158 + $0x2d0] sm:$0xff]
                %251 = vst [vmem:[%s159 + $0x168] sm:$0xff] %v250
                %v252 = vld [vmem:[%s158 + $0x2e0] sm:$0xff]
                %253 = vst [vmem:[%s159 + $0x170] sm:$0xff] %v252
                %v254 = vld [vmem:[%s158 + $0x2f0] sm:$0xff]
                %255 = vst [vmem:[%s159 + $0x178] sm:$0xff] %v254
                %v256 = vld [vmem:[%s158 + $0x300] sm:$0xff]
                %257 = vst [vmem:[%s159 + $0x180] sm:$0xff] %v256
                %v258 = vld [vmem:[%s158 + $0x310] sm:$0xff]
                %259 = vst [vmem:[%s159 + $0x188] sm:$0xff] %v258
                %v260 = vld [vmem:[%s158 + $0x320] sm:$0xff]
                %261 = vst [vmem:[%s159 + $0x190] sm:$0xff] %v260
                %v262 = vld [vmem:[%s158 + $0x330] sm:$0xff]
                %263 = vst [vmem:[%s159 + $0x198] sm:$0xff] %v262
                %v264 = vld [vmem:[%s158 + $0x340] sm:$0xff]
                %265 = vst [vmem:[%s159 + $0x1a0] sm:$0xff] %v264
                %v266 = vld [vmem:[%s158 + $0x350] sm:$0xff]
                %267 = vst [vmem:[%s159 + $0x1a8] sm:$0xff] %v266
                %v268 = vld [vmem:[%s158 + $0x360] sm:$0xff]
                %269 = vst [vmem:[%s159 + $0x1b0] sm:$0xff] %v268
                %v270 = vld [vmem:[%s158 + $0x370] sm:$0xff]
                %271 = vst [vmem:[%s159 + $0x1b8] sm:$0xff] %v270
                %v272 = vld [vmem:[%s158 + $0x380] sm:$0xff]
                %273 = vst [vmem:[%s159 + $0x1c0] sm:$0xff] %v272
                %v274 = vld [vmem:[%s158 + $0x390] sm:$0xff]
                %275 = vst [vmem:[%s159 + $0x1c8] sm:$0xff] %v274
                %v276 = vld [vmem:[%s158 + $0x3a0] sm:$0xff]
                %277 = vst [vmem:[%s159 + $0x1d0] sm:$0xff] %v276
                %v278 = vld [vmem:[%s158 + $0x3b0] sm:$0xff]
                %279 = vst [vmem:[%s159 + $0x1d8] sm:$0xff] %v278
                %v280 = vld [vmem:[%s158 + $0x3c0] sm:$0xff]
                %281 = vst [vmem:[%s159 + $0x1e0] sm:$0xff] %v280
                %v282 = vld [vmem:[%s158 + $0x3d0] sm:$0xff]
                %283 = vst [vmem:[%s159 + $0x1e8] sm:$0xff] %v282
                %v284 = vld [vmem:[%s158 + $0x3e0] sm:$0xff]
                %285 = vst [vmem:[%s159 + $0x1f0] sm:$0xff] %v284
                %v286 = vld [vmem:[%s158 + $0x3f0] sm:$0xff]
                %287 = vst [vmem:[%s159 + $0x1f8] sm:$0xff] %v286
                %v288 = vld [vmem:[%s158 + $0x400] sm:$0xff]
                %289 = vst [vmem:[%s159 + $0x200] sm:$0xff] %v288
                %v290 = vld [vmem:[%s158 + $0x410] sm:$0xff]
                %291 = vst [vmem:[%s159 + $0x208] sm:$0xff] %v290
                %v292 = vld [vmem:[%s158 + $0x420] sm:$0xff]
                %293 = vst [vmem:[%s159 + $0x210] sm:$0xff] %v292
                %v294 = vld [vmem:[%s158 + $0x430] sm:$0xff]
                %295 = vst [vmem:[%s159 + $0x218] sm:$0xff] %v294
                %v296 = vld [vmem:[%s158 + $0x440] sm:$0xff]
                %297 = vst [vmem:[%s159 + $0x220] sm:$0xff] %v296
                %v298 = vld [vmem:[%s158 + $0x450] sm:$0xff]
                %299 = vst [vmem:[%s159 + $0x228] sm:$0xff] %v298
                %v300 = vld [vmem:[%s158 + $0x460] sm:$0xff]
                %301 = vst [vmem:[%s159 + $0x230] sm:$0xff] %v300
                %v302 = vld [vmem:[%s158 + $0x470] sm:$0xff]
                %303 = vst [vmem:[%s159 + $0x238] sm:$0xff] %v302
                %v304 = vld [vmem:[%s158 + $0x480] sm:$0xff]
                %305 = vst [vmem:[%s159 + $0x240] sm:$0xff] %v304
                %v306 = vld [vmem:[%s158 + $0x490] sm:$0xff]
                %307 = vst [vmem:[%s159 + $0x248] sm:$0xff] %v306
                %v308 = vld [vmem:[%s158 + $0x4a0] sm:$0xff]
                %309 = vst [vmem:[%s159 + $0x250] sm:$0xff] %v308
                %v310 = vld [vmem:[%s158 + $0x4b0] sm:$0xff]
                %311 = vst [vmem:[%s159 + $0x258] sm:$0xff] %v310
                %v312 = vld [vmem:[%s158 + $0x4c0] sm:$0xff]
                %313 = vst [vmem:[%s159 + $0x260] sm:$0xff] %v312
                %v314 = vld [vmem:[%s158 + $0x4d0] sm:$0xff]
                %315 = vst [vmem:[%s159 + $0x268] sm:$0xff] %v314
                %v316 = vld [vmem:[%s158 + $0x4e0] sm:$0xff]
                %317 = vst [vmem:[%s159 + $0x270] sm:$0xff] %v316
                %v318 = vld [vmem:[%s158 + $0x4f0] sm:$0xff]
                %319 = vst [vmem:[%s159 + $0x278] sm:$0xff] %v318
                %v320 = vld [vmem:[%s158 + $0x500] sm:$0xff]
                %321 = vst [vmem:[%s159 + $0x280] sm:$0xff] %v320
                %v322 = vld [vmem:[%s158 + $0x510] sm:$0xff]
                %323 = vst [vmem:[%s159 + $0x288] sm:$0xff] %v322
                %v324 = vld [vmem:[%s158 + $0x520] sm:$0xff]
                %325 = vst [vmem:[%s159 + $0x290] sm:$0xff] %v324
                %v326 = vld [vmem:[%s158 + $0x530] sm:$0xff]
                %327 = vst [vmem:[%s159 + $0x298] sm:$0xff] %v326
                %v328 = vld [vmem:[%s158 + $0x540] sm:$0xff]
                %329 = vst [vmem:[%s159 + $0x2a0] sm:$0xff] %v328
                %v330 = vld [vmem:[%s158 + $0x550] sm:$0xff]
                %331 = vst [vmem:[%s159 + $0x2a8] sm:$0xff] %v330
                %v332 = vld [vmem:[%s158 + $0x560] sm:$0xff]
                %333 = vst [vmem:[%s159 + $0x2b0] sm:$0xff] %v332
                %v334 = vld [vmem:[%s158 + $0x570] sm:$0xff]
                %335 = vst [vmem:[%s159 + $0x2b8] sm:$0xff] %v334
                %v336 = vld [vmem:[%s158 + $0x580] sm:$0xff]
                %337 = vst [vmem:[%s159 + $0x2c0] sm:$0xff] %v336
                %v338 = vld [vmem:[%s158 + $0x590] sm:$0xff]
                %339 = vst [vmem:[%s159 + $0x2c8] sm:$0xff] %v338
                %v340 = vld [vmem:[%s158 + $0x5a0] sm:$0xff]
                %341 = vst [vmem:[%s159 + $0x2d0] sm:$0xff] %v340
                %v342 = vld [vmem:[%s158 + $0x5b0] sm:$0xff]
                %343 = vst [vmem:[%s159 + $0x2d8] sm:$0xff] %v342
                %v344 = vld [vmem:[%s158 + $0x5c0] sm:$0xff]
                %345 = vst [vmem:[%s159 + $0x2e0] sm:$0xff] %v344
                %v346 = vld [vmem:[%s158 + $0x5d0] sm:$0xff]
                %347 = vst [vmem:[%s159 + $0x2e8] sm:$0xff] %v346
                %v348 = vld [vmem:[%s158 + $0x5e0] sm:$0xff]
                %349 = vst [vmem:[%s159 + $0x2f0] sm:$0xff] %v348
                %v350 = vld [vmem:[%s158 + $0x5f0] sm:$0xff]
                %351 = vst [vmem:[%s159 + $0x2f8] sm:$0xff] %v350
                %v352 = vld [vmem:[%s158 + $0x600] sm:$0xff]
                %353 = vst [vmem:[%s159 + $0x300] sm:$0xff] %v352
                %v354 = vld [vmem:[%s158 + $0x610] sm:$0xff]
                %355 = vst [vmem:[%s159 + $0x308] sm:$0xff] %v354
                %v356 = vld [vmem:[%s158 + $0x620] sm:$0xff]
                %357 = vst [vmem:[%s159 + $0x310] sm:$0xff] %v356
                %v358 = vld [vmem:[%s158 + $0x630] sm:$0xff]
                %359 = vst [vmem:[%s159 + $0x318] sm:$0xff] %v358
                %v360 = vld [vmem:[%s158 + $0x640] sm:$0xff]
                %361 = vst [vmem:[%s159 + $0x320] sm:$0xff] %v360
                %v362 = vld [vmem:[%s158 + $0x650] sm:$0xff]
                %363 = vst [vmem:[%s159 + $0x328] sm:$0xff] %v362
                %v364 = vld [vmem:[%s158 + $0x660] sm:$0xff]
                %365 = vst [vmem:[%s159 + $0x330] sm:$0xff] %v364
                %v366 = vld [vmem:[%s158 + $0x670] sm:$0xff]
                %367 = vst [vmem:[%s159 + $0x338] sm:$0xff] %v366
                %v368 = vld [vmem:[%s158 + $0x680] sm:$0xff]
                %369 = vst [vmem:[%s159 + $0x340] sm:$0xff] %v368
                %v370 = vld [vmem:[%s158 + $0x690] sm:$0xff]
                %371 = vst [vmem:[%s159 + $0x348] sm:$0xff] %v370
                %v372 = vld [vmem:[%s158 + $0x6a0] sm:$0xff]
                %373 = vst [vmem:[%s159 + $0x350] sm:$0xff] %v372
                %v374 = vld [vmem:[%s158 + $0x6b0] sm:$0xff]
                %375 = vst [vmem:[%s159 + $0x358] sm:$0xff] %v374
                %v376 = vld [vmem:[%s158 + $0x6c0] sm:$0xff]
                %377 = vst [vmem:[%s159 + $0x360] sm:$0xff] %v376
                %v378 = vld [vmem:[%s158 + $0x6d0] sm:$0xff]
                %379 = vst [vmem:[%s159 + $0x368] sm:$0xff] %v378
                %v380 = vld [vmem:[%s158 + $0x6e0] sm:$0xff]
                %381 = vst [vmem:[%s159 + $0x370] sm:$0xff] %v380
                %v382 = vld [vmem:[%s158 + $0x6f0] sm:$0xff]
                %383 = vst [vmem:[%s159 + $0x378] sm:$0xff] %v382
                %v384 = vld [vmem:[%s158 + $0x700] sm:$0xff]
                %385 = vst [vmem:[%s159 + $0x380] sm:$0xff] %v384
                %v386 = vld [vmem:[%s158 + $0x710] sm:$0xff]
                %387 = vst [vmem:[%s159 + $0x388] sm:$0xff] %v386
                %v388 = vld [vmem:[%s158 + $0x720] sm:$0xff]
                %389 = vst [vmem:[%s159 + $0x390] sm:$0xff] %v388
                %v390 = vld [vmem:[%s158 + $0x730] sm:$0xff]
                %391 = vst [vmem:[%s159 + $0x398] sm:$0xff] %v390
                %v392 = vld [vmem:[%s158 + $0x740] sm:$0xff]
                %393 = vst [vmem:[%s159 + $0x3a0] sm:$0xff] %v392
                %v394 = vld [vmem:[%s158 + $0x750] sm:$0xff]
                %395 = vst [vmem:[%s159 + $0x3a8] sm:$0xff] %v394
                %v396 = vld [vmem:[%s158 + $0x760] sm:$0xff]
                %397 = vst [vmem:[%s159 + $0x3b0] sm:$0xff] %v396
                %v398 = vld [vmem:[%s158 + $0x770] sm:$0xff]
                %399 = vst [vmem:[%s159 + $0x3b8] sm:$0xff] %v398
              $region41: #{correlation_forward.1} parent=35 // loop_footer
                %s157 = sadd.s32 1, %s153
              $region42: #{correlation_forward.1} parent=35 // loop_footer_branch
                %152 = sbr.rel target = $region38
              $region43: #{correlation_forward.1} parent=35 // loop_exit
                _
            $region36: #{correlation_forward.1} parent=27 // pred_fallthru
              _
          $region28: #{correlation_forward.1} parent=23 // pred_fallthru
            _
          %652 = vnop
        $region24: #{correlation_forward.1} parent=15 // pred_fallthru
          _
      $region16: #{correlation_forward.1} parent=5 // pred_fallthru
        _
      %p653 = scmp.le.s32.totalorder 1, %s8
      %p654 = scmp.lt.s32.totalorder %s8, 5
      %p655 = pnand %p653, %p654
      %p656 = pneg %p655
      // Predicated region
      $region59: #{correlation_forward.1} parent=5 // pred_check
        _
      $region60: #{correlation_forward.1} parent=5 // pred_check_branch
        %658 = sbr.rel (%p655) target = $region62
      $region61: #{correlation_forward.1} parent=5 // pred_region
        %s659 = ssub.s32 %s8, 1
        %s660 = sand.u32 %s63, 1
        %s661 = sand.u32 %s63, 1
        %s662 = smul.addr %s661, 960
        %s663 = scalar_lea.vmem [#allocation2], %s662
        // Predicated region
        $region63: #{correlation_forward.1} parent=61 // pred_check
          %p664 = pneg %p76
        $region64: #{correlation_forward.1} parent=61 // pred_check_branch
          %666 = sbr.rel (%p664) target = $region66
        $region65: #{correlation_forward.1} parent=61 // pred_region
          _
        $region66: #{correlation_forward.1} parent=61 // pred_fallthru
          _
        %p667 = scmp.lt.s32.totalorder %s17, 1
        %s668 = scalar_select %p667, %s17, 1
        %p669 = scmp.lt.s32.totalorder %s18, 1
        %s670 = scalar_select %p669, %s18, 1
        %s671 = smul.addr %s668, 2
        %s672 = sadd.s32 %s670, %s671
        %s673 = smul.addr %s672, 4
        %s674 = scalar_lea.vmem %s0, %s673
        %p675 = pneg %p48
        %p676 = pneg %p45
        %s677 = sand.u32 %s63, 1
        %s678 = sand.u32 %s63, 1
        %s679 = smul.addr %s678, 960
        %s680 = scalar_lea.vmem [#allocation2], %s679
        %p681 = pneg %p76
        %p682 = pneg %p73
        %p683 = pneg %p104
        %p684 = pneg %p101
        %s685 = sand.u32 %s91, 1
        %s686 = sand.u32 %s91, 1
        %s687 = smul.addr %s686, 928
        %s688 = scalar_lea.vmem [#allocation3], %s687
        %p689 = scmp.lt.s32.totalorder %s17, 1
        %s690 = scalar_select %p689, %s17, 1
        %p691 = scmp.lt.s32.totalorder %s18, 1
        %s692 = scalar_select %p691, %s18, 1
        %s693 = smul.addr %s690, 2
        %s694 = sadd.s32 %s692, %s693
        %s695 = smul.addr %s694, 4
        %s696 = scalar_lea.vmem %s0, %s695
        %697 = vst [vmem:[%s688] sm:$0xff] 0.0
        %698 = vst [vmem:[%s688 + $0x8] sm:$0xff] 0.0
        %699 = vst [vmem:[%s688 + $0x10] sm:$0xff] 0.0
        %700 = vst [vmem:[%s688 + $0x18] sm:$0x1f] 0.0
        %701 = vst [vmem:[%s688 + $0x20] sm:$0xff] 0.0
        %702 = vst [vmem:[%s688 + $0x28] sm:$0xff] 0.0
        %703 = vst [vmem:[%s688 + $0x30] sm:$0xff] 0.0
        %704 = vst [vmem:[%s688 + $0x38] sm:$0x1f] 0.0
        %705 = vst [vmem:[%s688 + $0x40] sm:$0xff] 0.0
        %706 = vst [vmem:[%s688 + $0x48] sm:$0xff] 0.0
        %707 = vst [vmem:[%s688 + $0x50] sm:$0xff] 0.0
        %708 = vst [vmem:[%s688 + $0x58] sm:$0x1f] 0.0
        %709 = vst [vmem:[%s688 + $0x60] sm:$0xff] 0.0
        %710 = vst [vmem:[%s688 + $0x68] sm:$0xff] 0.0
        %711 = vst [vmem:[%s688 + $0x70] sm:$0xff] 0.0
        %712 = vst [vmem:[%s688 + $0x78] sm:$0x1f] 0.0
        %713 = vst [vmem:[%s688 + $0x80] sm:$0xff] 0.0
        %714 = vst [vmem:[%s688 + $0x88] sm:$0xff] 0.0
        %715 = vst [vmem:[%s688 + $0x90] sm:$0xff] 0.0
        %716 = vst [vmem:[%s688 + $0x98] sm:$0x1f] 0.0
        %717 = vst [vmem:[%s688 + $0xa0] sm:$0xff] 0.0
        %718 = vst [vmem:[%s688 + $0xa8] sm:$0xff] 0.0
        %719 = vst [vmem:[%s688 + $0xb0] sm:$0xff] 0.0
        %720 = vst [vmem:[%s688 + $0xb8] sm:$0x1f] 0.0
        %721 = vst [vmem:[%s688 + $0xc0] sm:$0xff] 0.0
        %722 = vst [vmem:[%s688 + $0xc8] sm:$0xff] 0.0
        %723 = vst [vmem:[%s688 + $0xd0] sm:$0xff] 0.0
        %724 = vst [vmem:[%s688 + $0xd8] sm:$0x1f] 0.0
        %s725 = scalar_lea.vmem %s688, 224 [#allocation3]
        %726 = vst [vmem:[%s725] sm:$0x7f] 0.0
        %727 = vst [vmem:[%s725 + $0x20] sm:$0x7f] 0.0
        %728 = vst [vmem:[%s725 + $0x40] sm:$0x7f] 0.0
        %729 = vst [vmem:[%s725 + $0x60] sm:$0x7f] 0.0
        %730 = vst [vmem:[%s725 + $0x80] sm:$0x7f] 0.0
        %731 = vst [vmem:[%s725 + $0xa0] sm:$0x7f] 0.0
        %732 = vst [vmem:[%s725 + $0xc0] sm:$0x7f] 0.0
        %733 = vst [vmem:[%s725 + $0xe0] sm:$0x7f] 0.0
        %734 = vst [vmem:[%s725 + $0x100] sm:$0x7f] 0.0
        %735 = vst [vmem:[%s725 + $0x120] sm:$0x7f] 0.0
        %736 = vst [vmem:[%s725 + $0x140] sm:$0x7f] 0.0
        %737 = vst [vmem:[%s725 + $0x160] sm:$0x7f] 0.0
        %738 = vst [vmem:[%s725 + $0x180] sm:$0x7f] 0.0
        %739 = vst [vmem:[%s725 + $0x1a0] sm:$0x7f] 0.0
        %740 = vst [vmem:[%s725 + $0x1c0] sm:$0x7f] 0.0
        %s741 = scalar_lea.vmem %s688, 704 [#allocation3]
        %742 = vst [vmem:[%s741] sm:$0xff] 0.0
        %743 = vst [vmem:[%s741 + $0x8] sm:$0xff] 0.0
        %744 = vst [vmem:[%s741 + $0x10] sm:$0xff] 0.0
        %745 = vst [vmem:[%s741 + $0x18] sm:$0x1f] 0.0
        %746 = vst [vmem:[%s741 + $0x20] sm:$0xff] 0.0
        %747 = vst [vmem:[%s741 + $0x28] sm:$0xff] 0.0
        %748 = vst [vmem:[%s741 + $0x30] sm:$0xff] 0.0
        %749 = vst [vmem:[%s741 + $0x38] sm:$0x1f] 0.0
        %750 = vst [vmem:[%s741 + $0x40] sm:$0xff] 0.0
        %751 = vst [vmem:[%s741 + $0x48] sm:$0xff] 0.0
        %752 = vst [vmem:[%s741 + $0x50] sm:$0xff] 0.0
        %753 = vst [vmem:[%s741 + $0x58] sm:$0x1f] 0.0
        %754 = vst [vmem:[%s741 + $0x60] sm:$0xff] 0.0
        %755 = vst [vmem:[%s741 + $0x68] sm:$0xff] 0.0
        %756 = vst [vmem:[%s741 + $0x70] sm:$0xff] 0.0
        %757 = vst [vmem:[%s741 + $0x78] sm:$0x1f] 0.0
        %758 = vst [vmem:[%s741 + $0x80] sm:$0xff] 0.0
        %759 = vst [vmem:[%s741 + $0x88] sm:$0xff] 0.0
        %760 = vst [vmem:[%s741 + $0x90] sm:$0xff] 0.0
        %761 = vst [vmem:[%s741 + $0x98] sm:$0x1f] 0.0
        %762 = vst [vmem:[%s741 + $0xa0] sm:$0xff] 0.0
        %763 = vst [vmem:[%s741 + $0xa8] sm:$0xff] 0.0
        %764 = vst [vmem:[%s741 + $0xb0] sm:$0xff] 0.0
        %765 = vst [vmem:[%s741 + $0xb8] sm:$0x1f] 0.0
        %766 = vst [vmem:[%s741 + $0xc0] sm:$0xff] 0.0
        %767 = vst [vmem:[%s741 + $0xc8] sm:$0xff] 0.0
        %768 = vst [vmem:[%s741 + $0xd0] sm:$0xff] 0.0
        %769 = vst [vmem:[%s741 + $0xd8] sm:$0x1f] 0.0
        %770 = vst [vmem:[%s725 + $0x16] sm:$0x7f] 0.0
        %771 = vst [vmem:[%s725 + $0x36] sm:$0x7f] 0.0
        %772 = vst [vmem:[%s725 + $0x56] sm:$0x7f] 0.0
        %773 = vst [vmem:[%s725 + $0x76] sm:$0x7f] 0.0
        %774 = vst [vmem:[%s725 + $0x96] sm:$0x7f] 0.0
        %775 = vst [vmem:[%s725 + $0xb6] sm:$0x7f] 0.0
        %776 = vst [vmem:[%s725 + $0xd6] sm:$0x7f] 0.0
        %777 = vst [vmem:[%s725 + $0xf6] sm:$0x7f] 0.0
        %778 = vst [vmem:[%s725 + $0x116] sm:$0x7f] 0.0
        %779 = vst [vmem:[%s725 + $0x136] sm:$0x7f] 0.0
        %780 = vst [vmem:[%s725 + $0x156] sm:$0x7f] 0.0
        %781 = vst [vmem:[%s725 + $0x176] sm:$0x7f] 0.0
        %782 = vst [vmem:[%s725 + $0x196] sm:$0x7f] 0.0
        %783 = vst [vmem:[%s725 + $0x1b6] sm:$0x7f] 0.0
        %784 = vst [vmem:[%s725 + $0x1d6] sm:$0x7f] 0.0
        %v785 = vld [vmem:[%s696] sm:$0x1]
        %v786 = vlaneseq
        %v787 = vshrl.u32 %v786, 7
        %v788 = vsub.s32 0, %v787
        %v789 = vrot.slane %v785, %v788
        %v790 = vld [vmem:[%s696 + $0x1] sm:$0x1]
        %v791 = vlaneseq
        %v792 = vshrl.u32 %v791, 7
        %v793 = vsub.s32 0, %v792
        %v794 = vrot.slane %v790, %v793
        %v795 = vld [vmem:[%s696 + $0x2] sm:$0x1]
        %v796 = vlaneseq
        %v797 = vshrl.u32 %v796, 7
        %v798 = vsub.s32 0, %v797
        %v799 = vrot.slane %v795, %v798
        %v800 = vld [vmem:[%s696 + $0x3] sm:$0x1]
        %v801 = vlaneseq
        %v802 = vshrl.u32 %v801, 7
        %v803 = vsub.s32 0, %v802
        %v804 = vrot.slane %v800, %v803
        %v805 = vld [vmem:[%s663] sm:$0xff]
        %v806 = vld [vmem:[%s663 + $0x8] sm:$0x7f]
        %v807 = vmul.f32 %v789, %v805
        %v808 = vmul.f32 %v789, %v806
        %s809 = scalar_lea.vmem %s663, 240 [#allocation2]
        %v810 = vld [vmem:[%s809] sm:$0xff]
        %v811 = vld [vmem:[%s809 + $0x8] sm:$0x7f]
        %v812 = vmul.f32 %v794, %v810
        %v813 = vmul.f32 %v794, %v811
        %v814 = vadd.f32 %v807, %v812
        %v815 = vadd.f32 %v808, %v813
        %s816 = scalar_lea.vmem %s663, 480 [#allocation2]
        %v817 = vld [vmem:[%s816] sm:$0xff]
        %v818 = vld [vmem:[%s816 + $0x8] sm:$0x7f]
        %v819 = vmul.f32 %v799, %v817
        %v820 = vmul.f32 %v799, %v818
        %v821 = vadd.f32 %v814, %v819
        %v822 = vadd.f32 %v815, %v820
        %s823 = scalar_lea.vmem %s663, 720 [#allocation2]
        %v824 = vld [vmem:[%s823] sm:$0xff]
        %v825 = vld [vmem:[%s823 + $0x8] sm:$0x7f]
        %v826 = vmul.f32 %v804, %v824
        %v827 = vmul.f32 %v804, %v825
        %v828 = vadd.f32 %v821, %v826
        %v829 = vadd.f32 %v822, %v827
        %830 = vst [vmem:[%s725 + $0x7] sm:$0xff] %v828
        %831 = vst [vmem:[%s725 + $0xf] sm:$0x7f] %v829
        %s832 = scalar_lea.vmem %s663, 16 [#allocation2]
        %v833 = vld [vmem:[%s832] sm:$0xff]
        %v834 = vld [vmem:[%s832 + $0x8] sm:$0x7f]
        %v835 = vmul.f32 %v789, %v833
        %v836 = vmul.f32 %v789, %v834
        %s837 = scalar_lea.vmem %s663, 256 [#allocation2]
        %v838 = vld [vmem:[%s837] sm:$0xff]
        %v839 = vld [vmem:[%s837 + $0x8] sm:$0x7f]
        %v840 = vmul.f32 %v794, %v838
        %v841 = vmul.f32 %v794, %v839
        %v842 = vadd.f32 %v835, %v840
        %v843 = vadd.f32 %v836, %v841
        %s844 = scalar_lea.vmem %s663, 496 [#allocation2]
        %v845 = vld [vmem:[%s844] sm:$0xff]
        %v846 = vld [vmem:[%s844 + $0x8] sm:$0x7f]
        %v847 = vmul.f32 %v799, %v845
        %v848 = vmul.f32 %v799, %v846
        %v849 = vadd.f32 %v842, %v847
        %v850 = vadd.f32 %v843, %v848
        %s851 = scalar_lea.vmem %s663, 736 [#allocation2]
        %v852 = vld [vmem:[%s851] sm:$0xff]
        %v853 = vld [vmem:[%s851 + $0x8] sm:$0x7f]
        %v854 = vmul.f32 %v804, %v852
        %v855 = vmul.f32 %v804, %v853
        %v856 = vadd.f32 %v849, %v854
        %v857 = vadd.f32 %v850, %v855
        %s858 = scalar_lea.vmem %s688, 256 [#allocation3]
        %859 = vst [vmem:[%s858 + $0x7] sm:$0xff] %v856
        %860 = vst [vmem:[%s858 + $0xf] sm:$0x7f] %v857
        %s861 = scalar_lea.vmem %s663, 32 [#allocation2]
        %v862 = vld [vmem:[%s861] sm:$0xff]
        %v863 = vld [vmem:[%s861 + $0x8] sm:$0x7f]
        %v864 = vmul.f32 %v789, %v862
        %v865 = vmul.f32 %v789, %v863
        %s866 = scalar_lea.vmem %s663, 272 [#allocation2]
        %v867 = vld [vmem:[%s866] sm:$0xff]
        %v868 = vld [vmem:[%s866 + $0x8] sm:$0x7f]
        %v869 = vmul.f32 %v794, %v867
        %v870 = vmul.f32 %v794, %v868
        %v871 = vadd.f32 %v864, %v869
        %v872 = vadd.f32 %v865, %v870
        %s873 = scalar_lea.vmem %s663, 512 [#allocation2]
        %v874 = vld [vmem:[%s873] sm:$0xff]
        %v875 = vld [vmem:[%s873 + $0x8] sm:$0x7f]
        %v876 = vmul.f32 %v799, %v874
        %v877 = vmul.f32 %v799, %v875
        %v878 = vadd.f32 %v871, %v876
        %v879 = vadd.f32 %v872, %v877
        %s880 = scalar_lea.vmem %s663, 752 [#allocation2]
        %v881 = vld [vmem:[%s880] sm:$0xff]
        %v882 = vld [vmem:[%s880 + $0x8] sm:$0x7f]
        %v883 = vmul.f32 %v804, %v881
        %v884 = vmul.f32 %v804, %v882
        %v885 = vadd.f32 %v878, %v883
        %v886 = vadd.f32 %v879, %v884
        %s887 = scalar_lea.vmem %s688, 288 [#allocation3]
        %888 = vst [vmem:[%s887 + $0x7] sm:$0xff] %v885
        %889 = vst [vmem:[%s887 + $0xf] sm:$0x7f] %v886
        %s890 = scalar_lea.vmem %s663, 48 [#allocation2]
        %v891 = vld [vmem:[%s890] sm:$0xff]
        %v892 = vld [vmem:[%s890 + $0x8] sm:$0x7f]
        %v893 = vmul.f32 %v789, %v891
        %v894 = vmul.f32 %v789, %v892
        %s895 = scalar_lea.vmem %s663, 288 [#allocation2]
        %v896 = vld [vmem:[%s895] sm:$0xff]
        %v897 = vld [vmem:[%s895 + $0x8] sm:$0x7f]
        %v898 = vmul.f32 %v794, %v896
        %v899 = vmul.f32 %v794, %v897
        %v900 = vadd.f32 %v893, %v898
        %v901 = vadd.f32 %v894, %v899
        %s902 = scalar_lea.vmem %s663, 528 [#allocation2]
        %v903 = vld [vmem:[%s902] sm:$0xff]
        %v904 = vld [vmem:[%s902 + $0x8] sm:$0x7f]
        %v905 = vmul.f32 %v799, %v903
        %v906 = vmul.f32 %v799, %v904
        %v907 = vadd.f32 %v900, %v905
        %v908 = vadd.f32 %v901, %v906
        %s909 = scalar_lea.vmem %s663, 768 [#allocation2]
        %v910 = vld [vmem:[%s909] sm:$0xff]
        %v911 = vld [vmem:[%s909 + $0x8] sm:$0x7f]
        %v912 = vmul.f32 %v804, %v910
        %v913 = vmul.f32 %v804, %v911
        %v914 = vadd.f32 %v907, %v912
        %v915 = vadd.f32 %v908, %v913
        %s916 = scalar_lea.vmem %s688, 320 [#allocation3]
        %917 = vst [vmem:[%s916 + $0x7] sm:$0xff] %v914
        %918 = vst [vmem:[%s916 + $0xf] sm:$0x7f] %v915
        %s919 = scalar_lea.vmem %s663, 64 [#allocation2]
        %v920 = vld [vmem:[%s919] sm:$0xff]
        %v921 = vld [vmem:[%s919 + $0x8] sm:$0x7f]
        %v922 = vmul.f32 %v789, %v920
        %v923 = vmul.f32 %v789, %v921
        %s924 = scalar_lea.vmem %s663, 304 [#allocation2]
        %v925 = vld [vmem:[%s924] sm:$0xff]
        %v926 = vld [vmem:[%s924 + $0x8] sm:$0x7f]
        %v927 = vmul.f32 %v794, %v925
        %v928 = vmul.f32 %v794, %v926
        %v929 = vadd.f32 %v922, %v927
        %v930 = vadd.f32 %v923, %v928
        %s931 = scalar_lea.vmem %s663, 544 [#allocation2]
        %v932 = vld [vmem:[%s931] sm:$0xff]
        %v933 = vld [vmem:[%s931 + $0x8] sm:$0x7f]
        %v934 = vmul.f32 %v799, %v932
        %v935 = vmul.f32 %v799, %v933
        %v936 = vadd.f32 %v929, %v934
        %v937 = vadd.f32 %v930, %v935
        %s938 = scalar_lea.vmem %s663, 784 [#allocation2]
        %v939 = vld [vmem:[%s938] sm:$0xff]
        %v940 = vld [vmem:[%s938 + $0x8] sm:$0x7f]
        %v941 = vmul.f32 %v804, %v939
        %v942 = vmul.f32 %v804, %v940
        %v943 = vadd.f32 %v936, %v941
        %v944 = vadd.f32 %v937, %v942
        %s945 = scalar_lea.vmem %s688, 352 [#allocation3]
        %946 = vst [vmem:[%s945 + $0x7] sm:$0xff] %v943
        %947 = vst [vmem:[%s945 + $0xf] sm:$0x7f] %v944
        %s948 = scalar_lea.vmem %s663, 80 [#allocation2]
        %v949 = vld [vmem:[%s948] sm:$0xff]
        %v950 = vld [vmem:[%s948 + $0x8] sm:$0x7f]
        %v951 = vmul.f32 %v789, %v949
        %v952 = vmul.f32 %v789, %v950
        %s953 = scalar_lea.vmem %s663, 320 [#allocation2]
        %v954 = vld [vmem:[%s953] sm:$0xff]
        %v955 = vld [vmem:[%s953 + $0x8] sm:$0x7f]
        %v956 = vmul.f32 %v794, %v954
        %v957 = vmul.f32 %v794, %v955
        %v958 = vadd.f32 %v951, %v956
        %v959 = vadd.f32 %v952, %v957
        %s960 = scalar_lea.vmem %s663, 560 [#allocation2]
        %v961 = vld [vmem:[%s960] sm:$0xff]
        %v962 = vld [vmem:[%s960 + $0x8] sm:$0x7f]
        %v963 = vmul.f32 %v799, %v961
        %v964 = vmul.f32 %v799, %v962
        %v965 = vadd.f32 %v958, %v963
        %v966 = vadd.f32 %v959, %v964
        %s967 = scalar_lea.vmem %s663, 800 [#allocation2]
        %v968 = vld [vmem:[%s967] sm:$0xff]
        %v969 = vld [vmem:[%s967 + $0x8] sm:$0x7f]
        %v970 = vmul.f32 %v804, %v968
        %v971 = vmul.f32 %v804, %v969
        %v972 = vadd.f32 %v965, %v970
        %v973 = vadd.f32 %v966, %v971
        %s974 = scalar_lea.vmem %s688, 384 [#allocation3]
        %975 = vst [vmem:[%s974 + $0x7] sm:$0xff] %v972
        %976 = vst [vmem:[%s974 + $0xf] sm:$0x7f] %v973
        %s977 = scalar_lea.vmem %s663, 96 [#allocation2]
        %v978 = vld [vmem:[%s977] sm:$0xff]
        %v979 = vld [vmem:[%s977 + $0x8] sm:$0x7f]
        %v980 = vmul.f32 %v789, %v978
        %v981 = vmul.f32 %v789, %v979
        %s982 = scalar_lea.vmem %s663, 336 [#allocation2]
        %v983 = vld [vmem:[%s982] sm:$0xff]
        %v984 = vld [vmem:[%s982 + $0x8] sm:$0x7f]
        %v985 = vmul.f32 %v794, %v983
        %v986 = vmul.f32 %v794, %v984
        %v987 = vadd.f32 %v980, %v985
        %v988 = vadd.f32 %v981, %v986
        %s989 = scalar_lea.vmem %s663, 576 [#allocation2]
        %v990 = vld [vmem:[%s989] sm:$0xff]
        %v991 = vld [vmem:[%s989 + $0x8] sm:$0x7f]
        %v992 = vmul.f32 %v799, %v990
        %v993 = vmul.f32 %v799, %v991
        %v994 = vadd.f32 %v987, %v992
        %v995 = vadd.f32 %v988, %v993
        %s996 = scalar_lea.vmem %s663, 816 [#allocation2]
        %v997 = vld [vmem:[%s996] sm:$0xff]
        %v998 = vld [vmem:[%s996 + $0x8] sm:$0x7f]
        %v999 = vmul.f32 %v804, %v997
        %v1000 = vmul.f32 %v804, %v998
        %v1001 = vadd.f32 %v994, %v999
        %v1002 = vadd.f32 %v995, %v1000
        %s1003 = scalar_lea.vmem %s688, 416 [#allocation3]
        %1004 = vst [vmem:[%s1003 + $0x7] sm:$0xff] %v1001
        %1005 = vst [vmem:[%s1003 + $0xf] sm:$0x7f] %v1002
        %s1006 = scalar_lea.vmem %s663, 112 [#allocation2]
        %v1007 = vld [vmem:[%s1006] sm:$0xff]
        %v1008 = vld [vmem:[%s1006 + $0x8] sm:$0x7f]
        %v1009 = vmul.f32 %v789, %v1007
        %v1010 = vmul.f32 %v789, %v1008
        %s1011 = scalar_lea.vmem %s663, 352 [#allocation2]
        %v1012 = vld [vmem:[%s1011] sm:$0xff]
        %v1013 = vld [vmem:[%s1011 + $0x8] sm:$0x7f]
        %v1014 = vmul.f32 %v794, %v1012
        %v1015 = vmul.f32 %v794, %v1013
        %v1016 = vadd.f32 %v1009, %v1014
        %v1017 = vadd.f32 %v1010, %v1015
        %s1018 = scalar_lea.vmem %s663, 592 [#allocation2]
        %v1019 = vld [vmem:[%s1018] sm:$0xff]
        %v1020 = vld [vmem:[%s1018 + $0x8] sm:$0x7f]
        %v1021 = vmul.f32 %v799, %v1019
        %v1022 = vmul.f32 %v799, %v1020
        %v1023 = vadd.f32 %v1016, %v1021
        %v1024 = vadd.f32 %v1017, %v1022
        %s1025 = scalar_lea.vmem %s663, 832 [#allocation2]
        %v1026 = vld [vmem:[%s1025] sm:$0xff]
        %v1027 = vld [vmem:[%s1025 + $0x8] sm:$0x7f]
        %v1028 = vmul.f32 %v804, %v1026
        %v1029 = vmul.f32 %v804, %v1027
        %v1030 = vadd.f32 %v1023, %v1028
        %v1031 = vadd.f32 %v1024, %v1029
        %s1032 = scalar_lea.vmem %s688, 448 [#allocation3]
        %1033 = vst [vmem:[%s1032 + $0x7] sm:$0xff] %v1030
        %1034 = vst [vmem:[%s1032 + $0xf] sm:$0x7f] %v1031
        %s1035 = scalar_lea.vmem %s663, 128 [#allocation2]
        %v1036 = vld [vmem:[%s1035] sm:$0xff]
        %v1037 = vld [vmem:[%s1035 + $0x8] sm:$0x7f]
        %v1038 = vmul.f32 %v789, %v1036
        %v1039 = vmul.f32 %v789, %v1037
        %s1040 = scalar_lea.vmem %s663, 368 [#allocation2]
        %v1041 = vld [vmem:[%s1040] sm:$0xff]
        %v1042 = vld [vmem:[%s1040 + $0x8] sm:$0x7f]
        %v1043 = vmul.f32 %v794, %v1041
        %v1044 = vmul.f32 %v794, %v1042
        %v1045 = vadd.f32 %v1038, %v1043
        %v1046 = vadd.f32 %v1039, %v1044
        %s1047 = scalar_lea.vmem %s663, 608 [#allocation2]
        %v1048 = vld [vmem:[%s1047] sm:$0xff]
        %v1049 = vld [vmem:[%s1047 + $0x8] sm:$0x7f]
        %v1050 = vmul.f32 %v799, %v1048
        %v1051 = vmul.f32 %v799, %v1049
        %v1052 = vadd.f32 %v1045, %v1050
        %v1053 = vadd.f32 %v1046, %v1051
        %s1054 = scalar_lea.vmem %s663, 848 [#allocation2]
        %v1055 = vld [vmem:[%s1054] sm:$0xff]
        %v1056 = vld [vmem:[%s1054 + $0x8] sm:$0x7f]
        %v1057 = vmul.f32 %v804, %v1055
        %v1058 = vmul.f32 %v804, %v1056
        %v1059 = vadd.f32 %v1052, %v1057
        %v1060 = vadd.f32 %v1053, %v1058
        %s1061 = scalar_lea.vmem %s688, 480 [#allocation3]
        %1062 = vst [vmem:[%s1061 + $0x7] sm:$0xff] %v1059
        %1063 = vst [vmem:[%s1061 + $0xf] sm:$0x7f] %v1060
        %s1064 = scalar_lea.vmem %s663, 144 [#allocation2]
        %v1065 = vld [vmem:[%s1064] sm:$0xff]
        %v1066 = vld [vmem:[%s1064 + $0x8] sm:$0x7f]
        %v1067 = vmul.f32 %v789, %v1065
        %v1068 = vmul.f32 %v789, %v1066
        %s1069 = scalar_lea.vmem %s663, 384 [#allocation2]
        %v1070 = vld [vmem:[%s1069] sm:$0xff]
        %v1071 = vld [vmem:[%s1069 + $0x8] sm:$0x7f]
        %v1072 = vmul.f32 %v794, %v1070
        %v1073 = vmul.f32 %v794, %v1071
        %v1074 = vadd.f32 %v1067, %v1072
        %v1075 = vadd.f32 %v1068, %v1073
        %s1076 = scalar_lea.vmem %s663, 624 [#allocation2]
        %v1077 = vld [vmem:[%s1076] sm:$0xff]
        %v1078 = vld [vmem:[%s1076 + $0x8] sm:$0x7f]
        %v1079 = vmul.f32 %v799, %v1077
        %v1080 = vmul.f32 %v799, %v1078
        %v1081 = vadd.f32 %v1074, %v1079
        %v1082 = vadd.f32 %v1075, %v1080
        %s1083 = scalar_lea.vmem %s663, 864 [#allocation2]
        %v1084 = vld [vmem:[%s1083] sm:$0xff]
        %v1085 = vld [vmem:[%s1083 + $0x8] sm:$0x7f]
        %v1086 = vmul.f32 %v804, %v1084
        %v1087 = vmul.f32 %v804, %v1085
        %v1088 = vadd.f32 %v1081, %v1086
        %v1089 = vadd.f32 %v1082, %v1087
        %s1090 = scalar_lea.vmem %s688, 512 [#allocation3]
        %1091 = vst [vmem:[%s1090 + $0x7] sm:$0xff] %v1088
        %1092 = vst [vmem:[%s1090 + $0xf] sm:$0x7f] %v1089
        %s1093 = scalar_lea.vmem %s663, 160 [#allocation2]
        %v1094 = vld [vmem:[%s1093] sm:$0xff]
        %v1095 = vld [vmem:[%s1093 + $0x8] sm:$0x7f]
        %v1096 = vmul.f32 %v789, %v1094
        %v1097 = vmul.f32 %v789, %v1095
        %s1098 = scalar_lea.vmem %s663, 400 [#allocation2]
        %v1099 = vld [vmem:[%s1098] sm:$0xff]
        %v1100 = vld [vmem:[%s1098 + $0x8] sm:$0x7f]
        %v1101 = vmul.f32 %v794, %v1099
        %v1102 = vmul.f32 %v794, %v1100
        %v1103 = vadd.f32 %v1096, %v1101
        %v1104 = vadd.f32 %v1097, %v1102
        %s1105 = scalar_lea.vmem %s663, 640 [#allocation2]
        %v1106 = vld [vmem:[%s1105] sm:$0xff]
        %v1107 = vld [vmem:[%s1105 + $0x8] sm:$0x7f]
        %v1108 = vmul.f32 %v799, %v1106
        %v1109 = vmul.f32 %v799, %v1107
        %v1110 = vadd.f32 %v1103, %v1108
        %v1111 = vadd.f32 %v1104, %v1109
        %s1112 = scalar_lea.vmem %s663, 880 [#allocation2]
        %v1113 = vld [vmem:[%s1112] sm:$0xff]
        %v1114 = vld [vmem:[%s1112 + $0x8] sm:$0x7f]
        %v1115 = vmul.f32 %v804, %v1113
        %v1116 = vmul.f32 %v804, %v1114
        %v1117 = vadd.f32 %v1110, %v1115
        %v1118 = vadd.f32 %v1111, %v1116
        %s1119 = scalar_lea.vmem %s688, 544 [#allocation3]
        %1120 = vst [vmem:[%s1119 + $0x7] sm:$0xff] %v1117
        %1121 = vst [vmem:[%s1119 + $0xf] sm:$0x7f] %v1118
        %s1122 = scalar_lea.vmem %s663, 176 [#allocation2]
        %v1123 = vld [vmem:[%s1122] sm:$0xff]
        %v1124 = vld [vmem:[%s1122 + $0x8] sm:$0x7f]
        %v1125 = vmul.f32 %v789, %v1123
        %v1126 = vmul.f32 %v789, %v1124
        %s1127 = scalar_lea.vmem %s663, 416 [#allocation2]
        %v1128 = vld [vmem:[%s1127] sm:$0xff]
        %v1129 = vld [vmem:[%s1127 + $0x8] sm:$0x7f]
        %v1130 = vmul.f32 %v794, %v1128
        %v1131 = vmul.f32 %v794, %v1129
        %v1132 = vadd.f32 %v1125, %v1130
        %v1133 = vadd.f32 %v1126, %v1131
        %s1134 = scalar_lea.vmem %s663, 656 [#allocation2]
        %v1135 = vld [vmem:[%s1134] sm:$0xff]
        %v1136 = vld [vmem:[%s1134 + $0x8] sm:$0x7f]
        %v1137 = vmul.f32 %v799, %v1135
        %v1138 = vmul.f32 %v799, %v1136
        %v1139 = vadd.f32 %v1132, %v1137
        %v1140 = vadd.f32 %v1133, %v1138
        %s1141 = scalar_lea.vmem %s663, 896 [#allocation2]
        %v1142 = vld [vmem:[%s1141] sm:$0xff]
        %v1143 = vld [vmem:[%s1141 + $0x8] sm:$0x7f]
        %v1144 = vmul.f32 %v804, %v1142
        %v1145 = vmul.f32 %v804, %v1143
        %v1146 = vadd.f32 %v1139, %v1144
        %v1147 = vadd.f32 %v1140, %v1145
        %s1148 = scalar_lea.vmem %s688, 576 [#allocation3]
        %1149 = vst [vmem:[%s1148 + $0x7] sm:$0xff] %v1146
        %1150 = vst [vmem:[%s1148 + $0xf] sm:$0x7f] %v1147
        %s1151 = scalar_lea.vmem %s663, 192 [#allocation2]
        %v1152 = vld [vmem:[%s1151] sm:$0xff]
        %v1153 = vld [vmem:[%s1151 + $0x8] sm:$0x7f]
        %v1154 = vmul.f32 %v789, %v1152
        %v1155 = vmul.f32 %v789, %v1153
        %s1156 = scalar_lea.vmem %s663, 432 [#allocation2]
        %v1157 = vld [vmem:[%s1156] sm:$0xff]
        %v1158 = vld [vmem:[%s1156 + $0x8] sm:$0x7f]
        %v1159 = vmul.f32 %v794, %v1157
        %v1160 = vmul.f32 %v794, %v1158
        %v1161 = vadd.f32 %v1154, %v1159
        %v1162 = vadd.f32 %v1155, %v1160
        %s1163 = scalar_lea.vmem %s663, 672 [#allocation2]
        %v1164 = vld [vmem:[%s1163] sm:$0xff]
        %v1165 = vld [vmem:[%s1163 + $0x8] sm:$0x7f]
        %v1166 = vmul.f32 %v799, %v1164
        %v1167 = vmul.f32 %v799, %v1165
        %v1168 = vadd.f32 %v1161, %v1166
        %v1169 = vadd.f32 %v1162, %v1167
        %s1170 = scalar_lea.vmem %s663, 912 [#allocation2]
        %v1171 = vld [vmem:[%s1170] sm:$0xff]
        %v1172 = vld [vmem:[%s1170 + $0x8] sm:$0x7f]
        %v1173 = vmul.f32 %v804, %v1171
        %v1174 = vmul.f32 %v804, %v1172
        %v1175 = vadd.f32 %v1168, %v1173
        %v1176 = vadd.f32 %v1169, %v1174
        %s1177 = scalar_lea.vmem %s688, 608 [#allocation3]
        %1178 = vst [vmem:[%s1177 + $0x7] sm:$0xff] %v1175
        %1179 = vst [vmem:[%s1177 + $0xf] sm:$0x7f] %v1176
        %s1180 = scalar_lea.vmem %s663, 208 [#allocation2]
        %v1181 = vld [vmem:[%s1180] sm:$0xff]
        %v1182 = vld [vmem:[%s1180 + $0x8] sm:$0x7f]
        %v1183 = vmul.f32 %v789, %v1181
        %v1184 = vmul.f32 %v789, %v1182
        %s1185 = scalar_lea.vmem %s663, 448 [#allocation2]
        %v1186 = vld [vmem:[%s1185] sm:$0xff]
        %v1187 = vld [vmem:[%s1185 + $0x8] sm:$0x7f]
        %v1188 = vmul.f32 %v794, %v1186
        %v1189 = vmul.f32 %v794, %v1187
        %v1190 = vadd.f32 %v1183, %v1188
        %v1191 = vadd.f32 %v1184, %v1189
        %s1192 = scalar_lea.vmem %s663, 688 [#allocation2]
        %v1193 = vld [vmem:[%s1192] sm:$0xff]
        %v1194 = vld [vmem:[%s1192 + $0x8] sm:$0x7f]
        %v1195 = vmul.f32 %v799, %v1193
        %v1196 = vmul.f32 %v799, %v1194
        %v1197 = vadd.f32 %v1190, %v1195
        %v1198 = vadd.f32 %v1191, %v1196
        %s1199 = scalar_lea.vmem %s663, 928 [#allocation2]
        %v1200 = vld [vmem:[%s1199] sm:$0xff]
        %v1201 = vld [vmem:[%s1199 + $0x8] sm:$0x7f]
        %v1202 = vmul.f32 %v804, %v1200
        %v1203 = vmul.f32 %v804, %v1201
        %v1204 = vadd.f32 %v1197, %v1202
        %v1205 = vadd.f32 %v1198, %v1203
        %s1206 = scalar_lea.vmem %s688, 640 [#allocation3]
        %1207 = vst [vmem:[%s1206 + $0x7] sm:$0xff] %v1204
        %1208 = vst [vmem:[%s1206 + $0xf] sm:$0x7f] %v1205
        %s1209 = scalar_lea.vmem %s663, 224 [#allocation2]
        %v1210 = vld [vmem:[%s1209] sm:$0xff]
        %v1211 = vld [vmem:[%s1209 + $0x8] sm:$0x7f]
        %v1212 = vmul.f32 %v789, %v1210
        %v1213 = vmul.f32 %v789, %v1211
        %s1214 = scalar_lea.vmem %s663, 464 [#allocation2]
        %v1215 = vld [vmem:[%s1214] sm:$0xff]
        %v1216 = vld [vmem:[%s1214 + $0x8] sm:$0x7f]
        %v1217 = vmul.f32 %v794, %v1215
        %v1218 = vmul.f32 %v794, %v1216
        %v1219 = vadd.f32 %v1212, %v1217
        %v1220 = vadd.f32 %v1213, %v1218
        %s1221 = scalar_lea.vmem %s663, 704 [#allocation2]
        %v1222 = vld [vmem:[%s1221] sm:$0xff]
        %v1223 = vld [vmem:[%s1221 + $0x8] sm:$0x7f]
        %v1224 = vmul.f32 %v799, %v1222
        %v1225 = vmul.f32 %v799, %v1223
        %v1226 = vadd.f32 %v1219, %v1224
        %v1227 = vadd.f32 %v1220, %v1225
        %s1228 = scalar_lea.vmem %s663, 944 [#allocation2]
        %v1229 = vld [vmem:[%s1228] sm:$0xff]
        %v1230 = vld [vmem:[%s1228 + $0x8] sm:$0x7f]
        %v1231 = vmul.f32 %v804, %v1229
        %v1232 = vmul.f32 %v804, %v1230
        %v1233 = vadd.f32 %v1226, %v1231
        %v1234 = vadd.f32 %v1227, %v1232
        %s1235 = scalar_lea.vmem %s688, 672 [#allocation3]
        %1236 = vst [vmem:[%s1235 + $0x7] sm:$0xff] %v1233
        %1237 = vst [vmem:[%s1235 + $0xf] sm:$0x7f] %v1234
        %s1238 = sand.u32 %s91, 1
        %s1239 = sand.u32 %s91, 1
        %s1240 = smul.addr %s1239, 928
        %s1241 = scalar_lea.vmem [#allocation3], %s1240
        // Predicated region
        $region67: #{correlation_forward.1} parent=61 // pred_check
          %p1242 = pneg %p101
        $region68: #{correlation_forward.1} parent=61 // pred_check_branch
          %1244 = sbr.rel (%p1242) target = $region70
        $region69: #{correlation_forward.1} parent=61 // pred_region
          %s1245 = smul.addr %s17, 232
          %s1246 = sadd.s32 %s18, %s1245
          %s1247 = smul.addr %s1246, 8
          %s1248 = scalar_lea.vmem %s2, %s1247
          // Predicated region
          $region71: #{correlation_forward.1} parent=69 // pred_check
            _
          $region72: #{correlation_forward.1} parent=69 // pred_check_branch
            %1250 = sbr.rel (0) target = $region74
          $region73: #{correlation_forward.1} parent=69 // pred_region
            // Predicated region
            $region75: #{correlation_forward.1} parent=73 // pred_check
              _
            $region76: #{correlation_forward.1} parent=73 // pred_check_branch
              %1252 = sbr.rel (0) target = $region78
            $region77: #{correlation_forward.1} parent=73 // pred_region
              // Predicated region
              $region90: #{correlation_forward.1} parent=77 // pred_check
                _
              $region91: #{correlation_forward.1} parent=77 // pred_check_branch
                %1497 = sbr.rel (0) target = $region93
              $region92: #{correlation_forward.1} parent=77 // pred_region
                loop: start=0, step=1, limit=1
                $region94: #{correlation_forward.1} parent=92 // loop_pre_header
                  _
                $region95: #{correlation_forward.1} parent=92 // loop_header
                  %s1499 = sphi 0, %s1503
                  %p1500 = scmp.ge.s32.totalorder %s1499, 1
                  %s1504 = sphi %s1241, %s1241
                  %s1505 = sphi %s1248, %s1248
                $region96: #{correlation_forward.1} parent=92 // loop_header_branch
                  %1502 = sbr.rel (%p1500) target = $region100
                $region97: #{correlation_forward.1} parent=92 // loop_body
                  %v1506 = vld [vmem:[%s1504] sm:$0xff]
                  %1507 = vst [vmem:[%s1505] sm:$0xff] %v1506
                  %v1508 = vld [vmem:[%s1504 + $0x8] sm:$0xff]
                  %1509 = vst [vmem:[%s1505 + $0x10] sm:$0xff] %v1508
                  %v1510 = vld [vmem:[%s1504 + $0x10] sm:$0xff]
                  %1511 = vst [vmem:[%s1505 + $0x20] sm:$0xff] %v1510
                  %v1512 = vld [vmem:[%s1504 + $0x18] sm:$0xff]
                  %1513 = vst [vmem:[%s1505 + $0x30] sm:$0xff] %v1512
                  %v1514 = vld [vmem:[%s1504 + $0x20] sm:$0xff]
                  %1515 = vst [vmem:[%s1505 + $0x40] sm:$0xff] %v1514
                  %v1516 = vld [vmem:[%s1504 + $0x28] sm:$0xff]
                  %1517 = vst [vmem:[%s1505 + $0x50] sm:$0xff] %v1516
                  %v1518 = vld [vmem:[%s1504 + $0x30] sm:$0xff]
                  %1519 = vst [vmem:[%s1505 + $0x60] sm:$0xff] %v1518
                  %v1520 = vld [vmem:[%s1504 + $0x38] sm:$0xff]
                  %1521 = vst [vmem:[%s1505 + $0x70] sm:$0xff] %v1520
                  %v1522 = vld [vmem:[%s1504 + $0x40] sm:$0xff]
                  %1523 = vst [vmem:[%s1505 + $0x80] sm:$0xff] %v1522
                  %v1524 = vld [vmem:[%s1504 + $0x48] sm:$0xff]
                  %1525 = vst [vmem:[%s1505 + $0x90] sm:$0xff] %v1524
                  %v1526 = vld [vmem:[%s1504 + $0x50] sm:$0xff]
                  %1527 = vst [vmem:[%s1505 + $0xa0] sm:$0xff] %v1526
                  %v1528 = vld [vmem:[%s1504 + $0x58] sm:$0xff]
                  %1529 = vst [vmem:[%s1505 + $0xb0] sm:$0xff] %v1528
                  %v1530 = vld [vmem:[%s1504 + $0x60] sm:$0xff]
                  %1531 = vst [vmem:[%s1505 + $0xc0] sm:$0xff] %v1530
                  %v1532 = vld [vmem:[%s1504 + $0x68] sm:$0xff]
                  %1533 = vst [vmem:[%s1505 + $0xd0] sm:$0xff] %v1532
                  %v1534 = vld [vmem:[%s1504 + $0x70] sm:$0xff]
                  %1535 = vst [vmem:[%s1505 + $0xe0] sm:$0xff] %v1534
                  %v1536 = vld [vmem:[%s1504 + $0x78] sm:$0xff]
                  %1537 = vst [vmem:[%s1505 + $0xf0] sm:$0xff] %v1536
                  %v1538 = vld [vmem:[%s1504 + $0x80] sm:$0xff]
                  %1539 = vst [vmem:[%s1505 + $0x100] sm:$0xff] %v1538
                  %v1540 = vld [vmem:[%s1504 + $0x88] sm:$0xff]
                  %1541 = vst [vmem:[%s1505 + $0x110] sm:$0xff] %v1540
                  %v1542 = vld [vmem:[%s1504 + $0x90] sm:$0xff]
                  %1543 = vst [vmem:[%s1505 + $0x120] sm:$0xff] %v1542
                  %v1544 = vld [vmem:[%s1504 + $0x98] sm:$0xff]
                  %1545 = vst [vmem:[%s1505 + $0x130] sm:$0xff] %v1544
                  %v1546 = vld [vmem:[%s1504 + $0xa0] sm:$0xff]
                  %1547 = vst [vmem:[%s1505 + $0x140] sm:$0xff] %v1546
                  %v1548 = vld [vmem:[%s1504 + $0xa8] sm:$0xff]
                  %1549 = vst [vmem:[%s1505 + $0x150] sm:$0xff] %v1548
                  %v1550 = vld [vmem:[%s1504 + $0xb0] sm:$0xff]
                  %1551 = vst [vmem:[%s1505 + $0x160] sm:$0xff] %v1550
                  %v1552 = vld [vmem:[%s1504 + $0xb8] sm:$0xff]
                  %1553 = vst [vmem:[%s1505 + $0x170] sm:$0xff] %v1552
                  %v1554 = vld [vmem:[%s1504 + $0xc0] sm:$0xff]
                  %1555 = vst [vmem:[%s1505 + $0x180] sm:$0xff] %v1554
                  %v1556 = vld [vmem:[%s1504 + $0xc8] sm:$0xff]
                  %1557 = vst [vmem:[%s1505 + $0x190] sm:$0xff] %v1556
                  %v1558 = vld [vmem:[%s1504 + $0xd0] sm:$0xff]
                  %1559 = vst [vmem:[%s1505 + $0x1a0] sm:$0xff] %v1558
                  %v1560 = vld [vmem:[%s1504 + $0xd8] sm:$0xff]
                  %1561 = vst [vmem:[%s1505 + $0x1b0] sm:$0xff] %v1560
                  %v1562 = vld [vmem:[%s1504 + $0xe0] sm:$0xff]
                  %1563 = vst [vmem:[%s1505 + $0x1c0] sm:$0xff] %v1562
                  %v1564 = vld [vmem:[%s1504 + $0xe8] sm:$0xff]
                  %1565 = vst [vmem:[%s1505 + $0x1d0] sm:$0xff] %v1564
                  %v1566 = vld [vmem:[%s1504 + $0xf0] sm:$0xff]
                  %1567 = vst [vmem:[%s1505 + $0x1e0] sm:$0xff] %v1566
                  %v1568 = vld [vmem:[%s1504 + $0xf8] sm:$0xff]
                  %1569 = vst [vmem:[%s1505 + $0x1f0] sm:$0xff] %v1568
                  %v1570 = vld [vmem:[%s1504 + $0x100] sm:$0xff]
                  %1571 = vst [vmem:[%s1505 + $0x200] sm:$0xff] %v1570
                  %v1572 = vld [vmem:[%s1504 + $0x108] sm:$0xff]
                  %1573 = vst [vmem:[%s1505 + $0x210] sm:$0xff] %v1572
                  %v1574 = vld [vmem:[%s1504 + $0x110] sm:$0xff]
                  %1575 = vst [vmem:[%s1505 + $0x220] sm:$0xff] %v1574
                  %v1576 = vld [vmem:[%s1504 + $0x118] sm:$0xff]
                  %1577 = vst [vmem:[%s1505 + $0x230] sm:$0xff] %v1576
                  %v1578 = vld [vmem:[%s1504 + $0x120] sm:$0xff]
                  %1579 = vst [vmem:[%s1505 + $0x240] sm:$0xff] %v1578
                  %v1580 = vld [vmem:[%s1504 + $0x128] sm:$0xff]
                  %1581 = vst [vmem:[%s1505 + $0x250] sm:$0xff] %v1580
                  %v1582 = vld [vmem:[%s1504 + $0x130] sm:$0xff]
                  %1583 = vst [vmem:[%s1505 + $0x260] sm:$0xff] %v1582
                  %v1584 = vld [vmem:[%s1504 + $0x138] sm:$0xff]
                  %1585 = vst [vmem:[%s1505 + $0x270] sm:$0xff] %v1584
                  %v1586 = vld [vmem:[%s1504 + $0x140] sm:$0xff]
                  %1587 = vst [vmem:[%s1505 + $0x280] sm:$0xff] %v1586
                  %v1588 = vld [vmem:[%s1504 + $0x148] sm:$0xff]
                  %1589 = vst [vmem:[%s1505 + $0x290] sm:$0xff] %v1588
                  %v1590 = vld [vmem:[%s1504 + $0x150] sm:$0xff]
                  %1591 = vst [vmem:[%s1505 + $0x2a0] sm:$0xff] %v1590
                  %v1592 = vld [vmem:[%s1504 + $0x158] sm:$0xff]
                  %1593 = vst [vmem:[%s1505 + $0x2b0] sm:$0xff] %v1592
                  %v1594 = vld [vmem:[%s1504 + $0x160] sm:$0xff]
                  %1595 = vst [vmem:[%s1505 + $0x2c0] sm:$0xff] %v1594
                  %v1596 = vld [vmem:[%s1504 + $0x168] sm:$0xff]
                  %1597 = vst [vmem:[%s1505 + $0x2d0] sm:$0xff] %v1596
                  %v1598 = vld [vmem:[%s1504 + $0x170] sm:$0xff]
                  %1599 = vst [vmem:[%s1505 + $0x2e0] sm:$0xff] %v1598
                  %v1600 = vld [vmem:[%s1504 + $0x178] sm:$0xff]
                  %1601 = vst [vmem:[%s1505 + $0x2f0] sm:$0xff] %v1600
                  %v1602 = vld [vmem:[%s1504 + $0x180] sm:$0xff]
                  %1603 = vst [vmem:[%s1505 + $0x300] sm:$0xff] %v1602
                  %v1604 = vld [vmem:[%s1504 + $0x188] sm:$0xff]
                  %1605 = vst [vmem:[%s1505 + $0x310] sm:$0xff] %v1604
                  %v1606 = vld [vmem:[%s1504 + $0x190] sm:$0xff]
                  %1607 = vst [vmem:[%s1505 + $0x320] sm:$0xff] %v1606
                  %v1608 = vld [vmem:[%s1504 + $0x198] sm:$0xff]
                  %1609 = vst [vmem:[%s1505 + $0x330] sm:$0xff] %v1608
                  %v1610 = vld [vmem:[%s1504 + $0x1a0] sm:$0xff]
                  %1611 = vst [vmem:[%s1505 + $0x340] sm:$0xff] %v1610
                  %v1612 = vld [vmem:[%s1504 + $0x1a8] sm:$0xff]
                  %1613 = vst [vmem:[%s1505 + $0x350] sm:$0xff] %v1612
                  %v1614 = vld [vmem:[%s1504 + $0x1b0] sm:$0xff]
                  %1615 = vst [vmem:[%s1505 + $0x360] sm:$0xff] %v1614
                  %v1616 = vld [vmem:[%s1504 + $0x1b8] sm:$0xff]
                  %1617 = vst [vmem:[%s1505 + $0x370] sm:$0xff] %v1616
                  %v1618 = vld [vmem:[%s1504 + $0x1c0] sm:$0xff]
                  %1619 = vst [vmem:[%s1505 + $0x380] sm:$0xff] %v1618
                  %v1620 = vld [vmem:[%s1504 + $0x1c8] sm:$0xff]
                  %1621 = vst [vmem:[%s1505 + $0x390] sm:$0xff] %v1620
                  %v1622 = vld [vmem:[%s1504 + $0x1d0] sm:$0xff]
                  %1623 = vst [vmem:[%s1505 + $0x3a0] sm:$0xff] %v1622
                  %v1624 = vld [vmem:[%s1504 + $0x1d8] sm:$0xff]
                  %1625 = vst [vmem:[%s1505 + $0x3b0] sm:$0xff] %v1624
                  %v1626 = vld [vmem:[%s1504 + $0x1e0] sm:$0xff]
                  %1627 = vst [vmem:[%s1505 + $0x3c0] sm:$0xff] %v1626
                  %v1628 = vld [vmem:[%s1504 + $0x1e8] sm:$0xff]
                  %1629 = vst [vmem:[%s1505 + $0x3d0] sm:$0xff] %v1628
                  %v1630 = vld [vmem:[%s1504 + $0x1f0] sm:$0xff]
                  %1631 = vst [vmem:[%s1505 + $0x3e0] sm:$0xff] %v1630
                  %v1632 = vld [vmem:[%s1504 + $0x1f8] sm:$0xff]
                  %1633 = vst [vmem:[%s1505 + $0x3f0] sm:$0xff] %v1632
                  %v1634 = vld [vmem:[%s1504 + $0x200] sm:$0xff]
                  %1635 = vst [vmem:[%s1505 + $0x400] sm:$0xff] %v1634
                  %v1636 = vld [vmem:[%s1504 + $0x208] sm:$0xff]
                  %1637 = vst [vmem:[%s1505 + $0x410] sm:$0xff] %v1636
                  %v1638 = vld [vmem:[%s1504 + $0x210] sm:$0xff]
                  %1639 = vst [vmem:[%s1505 + $0x420] sm:$0xff] %v1638
                  %v1640 = vld [vmem:[%s1504 + $0x218] sm:$0xff]
                  %1641 = vst [vmem:[%s1505 + $0x430] sm:$0xff] %v1640
                  %v1642 = vld [vmem:[%s1504 + $0x220] sm:$0xff]
                  %1643 = vst [vmem:[%s1505 + $0x440] sm:$0xff] %v1642
                  %v1644 = vld [vmem:[%s1504 + $0x228] sm:$0xff]
                  %1645 = vst [vmem:[%s1505 + $0x450] sm:$0xff] %v1644
                  %v1646 = vld [vmem:[%s1504 + $0x230] sm:$0xff]
                  %1647 = vst [vmem:[%s1505 + $0x460] sm:$0xff] %v1646
                  %v1648 = vld [vmem:[%s1504 + $0x238] sm:$0xff]
                  %1649 = vst [vmem:[%s1505 + $0x470] sm:$0xff] %v1648
                  %v1650 = vld [vmem:[%s1504 + $0x240] sm:$0xff]
                  %1651 = vst [vmem:[%s1505 + $0x480] sm:$0xff] %v1650
                  %v1652 = vld [vmem:[%s1504 + $0x248] sm:$0xff]
                  %1653 = vst [vmem:[%s1505 + $0x490] sm:$0xff] %v1652
                  %v1654 = vld [vmem:[%s1504 + $0x250] sm:$0xff]
                  %1655 = vst [vmem:[%s1505 + $0x4a0] sm:$0xff] %v1654
                  %v1656 = vld [vmem:[%s1504 + $0x258] sm:$0xff]
                  %1657 = vst [vmem:[%s1505 + $0x4b0] sm:$0xff] %v1656
                  %v1658 = vld [vmem:[%s1504 + $0x260] sm:$0xff]
                  %1659 = vst [vmem:[%s1505 + $0x4c0] sm:$0xff] %v1658
                  %v1660 = vld [vmem:[%s1504 + $0x268] sm:$0xff]
                  %1661 = vst [vmem:[%s1505 + $0x4d0] sm:$0xff] %v1660
                  %v1662 = vld [vmem:[%s1504 + $0x270] sm:$0xff]
                  %1663 = vst [vmem:[%s1505 + $0x4e0] sm:$0xff] %v1662
                  %v1664 = vld [vmem:[%s1504 + $0x278] sm:$0xff]
                  %1665 = vst [vmem:[%s1505 + $0x4f0] sm:$0xff] %v1664
                  %v1666 = vld [vmem:[%s1504 + $0x280] sm:$0xff]
                  %1667 = vst [vmem:[%s1505 + $0x500] sm:$0xff] %v1666
                  %v1668 = vld [vmem:[%s1504 + $0x288] sm:$0xff]
                  %1669 = vst [vmem:[%s1505 + $0x510] sm:$0xff] %v1668
                  %v1670 = vld [vmem:[%s1504 + $0x290] sm:$0xff]
                  %1671 = vst [vmem:[%s1505 + $0x520] sm:$0xff] %v1670
                  %v1672 = vld [vmem:[%s1504 + $0x298] sm:$0xff]
                  %1673 = vst [vmem:[%s1505 + $0x530] sm:$0xff] %v1672
                  %v1674 = vld [vmem:[%s1504 + $0x2a0] sm:$0xff]
                  %1675 = vst [vmem:[%s1505 + $0x540] sm:$0xff] %v1674
                  %v1676 = vld [vmem:[%s1504 + $0x2a8] sm:$0xff]
                  %1677 = vst [vmem:[%s1505 + $0x550] sm:$0xff] %v1676
                  %v1678 = vld [vmem:[%s1504 + $0x2b0] sm:$0xff]
                  %1679 = vst [vmem:[%s1505 + $0x560] sm:$0xff] %v1678
                  %v1680 = vld [vmem:[%s1504 + $0x2b8] sm:$0xff]
                  %1681 = vst [vmem:[%s1505 + $0x570] sm:$0xff] %v1680
                  %v1682 = vld [vmem:[%s1504 + $0x2c0] sm:$0xff]
                  %1683 = vst [vmem:[%s1505 + $0x580] sm:$0xff] %v1682
                  %v1684 = vld [vmem:[%s1504 + $0x2c8] sm:$0xff]
                  %1685 = vst [vmem:[%s1505 + $0x590] sm:$0xff] %v1684
                  %v1686 = vld [vmem:[%s1504 + $0x2d0] sm:$0xff]
                  %1687 = vst [vmem:[%s1505 + $0x5a0] sm:$0xff] %v1686
                  %v1688 = vld [vmem:[%s1504 + $0x2d8] sm:$0xff]
                  %1689 = vst [vmem:[%s1505 + $0x5b0] sm:$0xff] %v1688
                  %v1690 = vld [vmem:[%s1504 + $0x2e0] sm:$0xff]
                  %1691 = vst [vmem:[%s1505 + $0x5c0] sm:$0xff] %v1690
                  %v1692 = vld [vmem:[%s1504 + $0x2e8] sm:$0xff]
                  %1693 = vst [vmem:[%s1505 + $0x5d0] sm:$0xff] %v1692
                  %v1694 = vld [vmem:[%s1504 + $0x2f0] sm:$0xff]
                  %1695 = vst [vmem:[%s1505 + $0x5e0] sm:$0xff] %v1694
                  %v1696 = vld [vmem:[%s1504 + $0x2f8] sm:$0xff]
                  %1697 = vst [vmem:[%s1505 + $0x5f0] sm:$0xff] %v1696
                  %v1698 = vld [vmem:[%s1504 + $0x300] sm:$0xff]
                  %1699 = vst [vmem:[%s1505 + $0x600] sm:$0xff] %v1698
                  %v1700 = vld [vmem:[%s1504 + $0x308] sm:$0xff]
                  %1701 = vst [vmem:[%s1505 + $0x610] sm:$0xff] %v1700
                  %v1702 = vld [vmem:[%s1504 + $0x310] sm:$0xff]
                  %1703 = vst [vmem:[%s1505 + $0x620] sm:$0xff] %v1702
                  %v1704 = vld [vmem:[%s1504 + $0x318] sm:$0xff]
                  %1705 = vst [vmem:[%s1505 + $0x630] sm:$0xff] %v1704
                  %v1706 = vld [vmem:[%s1504 + $0x320] sm:$0xff]
                  %1707 = vst [vmem:[%s1505 + $0x640] sm:$0xff] %v1706
                  %v1708 = vld [vmem:[%s1504 + $0x328] sm:$0xff]
                  %1709 = vst [vmem:[%s1505 + $0x650] sm:$0xff] %v1708
                  %v1710 = vld [vmem:[%s1504 + $0x330] sm:$0xff]
                  %1711 = vst [vmem:[%s1505 + $0x660] sm:$0xff] %v1710
                  %v1712 = vld [vmem:[%s1504 + $0x338] sm:$0xff]
                  %1713 = vst [vmem:[%s1505 + $0x670] sm:$0xff] %v1712
                  %v1714 = vld [vmem:[%s1504 + $0x340] sm:$0xff]
                  %1715 = vst [vmem:[%s1505 + $0x680] sm:$0xff] %v1714
                  %v1716 = vld [vmem:[%s1504 + $0x348] sm:$0xff]
                  %1717 = vst [vmem:[%s1505 + $0x690] sm:$0xff] %v1716
                  %v1718 = vld [vmem:[%s1504 + $0x350] sm:$0xff]
                  %1719 = vst [vmem:[%s1505 + $0x6a0] sm:$0xff] %v1718
                  %v1720 = vld [vmem:[%s1504 + $0x358] sm:$0xff]
                  %1721 = vst [vmem:[%s1505 + $0x6b0] sm:$0xff] %v1720
                  %v1722 = vld [vmem:[%s1504 + $0x360] sm:$0xff]
                  %1723 = vst [vmem:[%s1505 + $0x6c0] sm:$0xff] %v1722
                  %v1724 = vld [vmem:[%s1504 + $0x368] sm:$0xff]
                  %1725 = vst [vmem:[%s1505 + $0x6d0] sm:$0xff] %v1724
                  %v1726 = vld [vmem:[%s1504 + $0x370] sm:$0xff]
                  %1727 = vst [vmem:[%s1505 + $0x6e0] sm:$0xff] %v1726
                  %v1728 = vld [vmem:[%s1504 + $0x378] sm:$0xff]
                  %1729 = vst [vmem:[%s1505 + $0x6f0] sm:$0xff] %v1728
                  %v1730 = vld [vmem:[%s1504 + $0x380] sm:$0xff]
                  %1731 = vst [vmem:[%s1505 + $0x700] sm:$0xff] %v1730
                  %v1732 = vld [vmem:[%s1504 + $0x388] sm:$0xff]
                  %1733 = vst [vmem:[%s1505 + $0x710] sm:$0xff] %v1732
                  %v1734 = vld [vmem:[%s1504 + $0x390] sm:$0xff]
                  %1735 = vst [vmem:[%s1505 + $0x720] sm:$0xff] %v1734
                  %v1736 = vld [vmem:[%s1504 + $0x398] sm:$0xff]
                  %1737 = vst [vmem:[%s1505 + $0x730] sm:$0xff] %v1736
                $region98: #{correlation_forward.1} parent=92 // loop_footer
                  %s1503 = sadd.s32 1, %s1499
                $region99: #{correlation_forward.1} parent=92 // loop_footer_branch
                  %1498 = sbr.rel target = $region95
                $region100: #{correlation_forward.1} parent=92 // loop_exit
                  _
              $region93: #{correlation_forward.1} parent=77 // pred_fallthru
                _
              // Predicated region
              $region101: #{correlation_forward.1} parent=77 // pred_check
                _
              $region102: #{correlation_forward.1} parent=77 // pred_check_branch
                %1739 = sbr.rel target = $region104
              $region103: #{correlation_forward.1} parent=77 // pred_region
                _
              $region104: #{correlation_forward.1} parent=77 // pred_fallthru
                _
            $region78: #{correlation_forward.1} parent=73 // pred_fallthru
              _
            // Predicated region
            $region79: #{correlation_forward.1} parent=73 // pred_check
              _
            $region80: #{correlation_forward.1} parent=73 // pred_check_branch
              %1254 = sbr.rel target = $region82
            $region81: #{correlation_forward.1} parent=73 // pred_region
              loop: start=0, step=1, limit=1
              $region83: #{correlation_forward.1} parent=81 // loop_pre_header
                _
              $region84: #{correlation_forward.1} parent=81 // loop_header
                %s1257 = sphi 0, %s1261
                %p1258 = scmp.ge.s32.totalorder %s1257, 1
                %s1262 = sphi %s1241, %s1241
                %s1263 = sphi %s1248, %s1248
              $region85: #{correlation_forward.1} parent=81 // loop_header_branch
                %1260 = sbr.rel (%p1258) target = $region89
              $region86: #{correlation_forward.1} parent=81 // loop_body
                %v1264 = vld [vmem:[%s1262] sm:$0xff]
                %1265 = vst [vmem:[%s1263] sm:$0xff] %v1264
                %v1266 = vld [vmem:[%s1262 + $0x8] sm:$0xff]
                %1267 = vst [vmem:[%s1263 + $0x10] sm:$0xff] %v1266
                %v1268 = vld [vmem:[%s1262 + $0x10] sm:$0xff]
                %1269 = vst [vmem:[%s1263 + $0x20] sm:$0xff] %v1268
                %v1270 = vld [vmem:[%s1262 + $0x18] sm:$0xff]
                %1271 = vst [vmem:[%s1263 + $0x30] sm:$0xff] %v1270
                %v1272 = vld [vmem:[%s1262 + $0x20] sm:$0xff]
                %1273 = vst [vmem:[%s1263 + $0x40] sm:$0xff] %v1272
                %v1274 = vld [vmem:[%s1262 + $0x28] sm:$0xff]
                %1275 = vst [vmem:[%s1263 + $0x50] sm:$0xff] %v1274
                %v1276 = vld [vmem:[%s1262 + $0x30] sm:$0xff]
                %1277 = vst [vmem:[%s1263 + $0x60] sm:$0xff] %v1276
                %v1278 = vld [vmem:[%s1262 + $0x38] sm:$0xff]
                %1279 = vst [vmem:[%s1263 + $0x70] sm:$0xff] %v1278
                %v1280 = vld [vmem:[%s1262 + $0x40] sm:$0xff]
                %1281 = vst [vmem:[%s1263 + $0x80] sm:$0xff] %v1280
                %v1282 = vld [vmem:[%s1262 + $0x48] sm:$0xff]
                %1283 = vst [vmem:[%s1263 + $0x90] sm:$0xff] %v1282
                %v1284 = vld [vmem:[%s1262 + $0x50] sm:$0xff]
                %1285 = vst [vmem:[%s1263 + $0xa0] sm:$0xff] %v1284
                %v1286 = vld [vmem:[%s1262 + $0x58] sm:$0xff]
                %1287 = vst [vmem:[%s1263 + $0xb0] sm:$0xff] %v1286
                %v1288 = vld [vmem:[%s1262 + $0x60] sm:$0xff]
                %1289 = vst [vmem:[%s1263 + $0xc0] sm:$0xff] %v1288
                %v1290 = vld [vmem:[%s1262 + $0x68] sm:$0xff]
                %1291 = vst [vmem:[%s1263 + $0xd0] sm:$0xff] %v1290
                %v1292 = vld [vmem:[%s1262 + $0x70] sm:$0xff]
                %1293 = vst [vmem:[%s1263 + $0xe0] sm:$0xff] %v1292
                %v1294 = vld [vmem:[%s1262 + $0x78] sm:$0xff]
                %1295 = vst [vmem:[%s1263 + $0xf0] sm:$0xff] %v1294
                %v1296 = vld [vmem:[%s1262 + $0x80] sm:$0xff]
                %1297 = vst [vmem:[%s1263 + $0x100] sm:$0xff] %v1296
                %v1298 = vld [vmem:[%s1262 + $0x88] sm:$0xff]
                %1299 = vst [vmem:[%s1263 + $0x110] sm:$0xff] %v1298
                %v1300 = vld [vmem:[%s1262 + $0x90] sm:$0xff]
                %1301 = vst [vmem:[%s1263 + $0x120] sm:$0xff] %v1300
                %v1302 = vld [vmem:[%s1262 + $0x98] sm:$0xff]
                %1303 = vst [vmem:[%s1263 + $0x130] sm:$0xff] %v1302
                %v1304 = vld [vmem:[%s1262 + $0xa0] sm:$0xff]
                %1305 = vst [vmem:[%s1263 + $0x140] sm:$0xff] %v1304
                %v1306 = vld [vmem:[%s1262 + $0xa8] sm:$0xff]
                %1307 = vst [vmem:[%s1263 + $0x150] sm:$0xff] %v1306
                %v1308 = vld [vmem:[%s1262 + $0xb0] sm:$0xff]
                %1309 = vst [vmem:[%s1263 + $0x160] sm:$0xff] %v1308
                %v1310 = vld [vmem:[%s1262 + $0xb8] sm:$0xff]
                %1311 = vst [vmem:[%s1263 + $0x170] sm:$0xff] %v1310
                %v1312 = vld [vmem:[%s1262 + $0xc0] sm:$0xff]
                %1313 = vst [vmem:[%s1263 + $0x180] sm:$0xff] %v1312
                %v1314 = vld [vmem:[%s1262 + $0xc8] sm:$0xff]
                %1315 = vst [vmem:[%s1263 + $0x190] sm:$0xff] %v1314
                %v1316 = vld [vmem:[%s1262 + $0xd0] sm:$0xff]
                %1317 = vst [vmem:[%s1263 + $0x1a0] sm:$0xff] %v1316
                %v1318 = vld [vmem:[%s1262 + $0xd8] sm:$0xff]
                %1319 = vst [vmem:[%s1263 + $0x1b0] sm:$0xff] %v1318
                %v1320 = vld [vmem:[%s1262 + $0xe0] sm:$0xff]
                %1321 = vst [vmem:[%s1263 + $0x1c0] sm:$0xff] %v1320
                %v1322 = vld [vmem:[%s1262 + $0xe8] sm:$0xff]
                %1323 = vst [vmem:[%s1263 + $0x1d0] sm:$0xff] %v1322
                %v1324 = vld [vmem:[%s1262 + $0xf0] sm:$0xff]
                %1325 = vst [vmem:[%s1263 + $0x1e0] sm:$0xff] %v1324
                %v1326 = vld [vmem:[%s1262 + $0xf8] sm:$0xff]
                %1327 = vst [vmem:[%s1263 + $0x1f0] sm:$0xff] %v1326
                %v1328 = vld [vmem:[%s1262 + $0x100] sm:$0xff]
                %1329 = vst [vmem:[%s1263 + $0x200] sm:$0xff] %v1328
                %v1330 = vld [vmem:[%s1262 + $0x108] sm:$0xff]
                %1331 = vst [vmem:[%s1263 + $0x210] sm:$0xff] %v1330
                %v1332 = vld [vmem:[%s1262 + $0x110] sm:$0xff]
                %1333 = vst [vmem:[%s1263 + $0x220] sm:$0xff] %v1332
                %v1334 = vld [vmem:[%s1262 + $0x118] sm:$0xff]
                %1335 = vst [vmem:[%s1263 + $0x230] sm:$0xff] %v1334
                %v1336 = vld [vmem:[%s1262 + $0x120] sm:$0xff]
                %1337 = vst [vmem:[%s1263 + $0x240] sm:$0xff] %v1336
                %v1338 = vld [vmem:[%s1262 + $0x128] sm:$0xff]
                %1339 = vst [vmem:[%s1263 + $0x250] sm:$0xff] %v1338
                %v1340 = vld [vmem:[%s1262 + $0x130] sm:$0xff]
                %1341 = vst [vmem:[%s1263 + $0x260] sm:$0xff] %v1340
                %v1342 = vld [vmem:[%s1262 + $0x138] sm:$0xff]
                %1343 = vst [vmem:[%s1263 + $0x270] sm:$0xff] %v1342
                %v1344 = vld [vmem:[%s1262 + $0x140] sm:$0xff]
                %1345 = vst [vmem:[%s1263 + $0x280] sm:$0xff] %v1344
                %v1346 = vld [vmem:[%s1262 + $0x148] sm:$0xff]
                %1347 = vst [vmem:[%s1263 + $0x290] sm:$0xff] %v1346
                %v1348 = vld [vmem:[%s1262 + $0x150] sm:$0xff]
                %1349 = vst [vmem:[%s1263 + $0x2a0] sm:$0xff] %v1348
                %v1350 = vld [vmem:[%s1262 + $0x158] sm:$0xff]
                %1351 = vst [vmem:[%s1263 + $0x2b0] sm:$0xff] %v1350
                %v1352 = vld [vmem:[%s1262 + $0x160] sm:$0xff]
                %1353 = vst [vmem:[%s1263 + $0x2c0] sm:$0xff] %v1352
                %v1354 = vld [vmem:[%s1262 + $0x168] sm:$0xff]
                %1355 = vst [vmem:[%s1263 + $0x2d0] sm:$0xff] %v1354
                %v1356 = vld [vmem:[%s1262 + $0x170] sm:$0xff]
                %1357 = vst [vmem:[%s1263 + $0x2e0] sm:$0xff] %v1356
                %v1358 = vld [vmem:[%s1262 + $0x178] sm:$0xff]
                %1359 = vst [vmem:[%s1263 + $0x2f0] sm:$0xff] %v1358
                %v1360 = vld [vmem:[%s1262 + $0x180] sm:$0xff]
                %1361 = vst [vmem:[%s1263 + $0x300] sm:$0xff] %v1360
                %v1362 = vld [vmem:[%s1262 + $0x188] sm:$0xff]
                %1363 = vst [vmem:[%s1263 + $0x310] sm:$0xff] %v1362
                %v1364 = vld [vmem:[%s1262 + $0x190] sm:$0xff]
                %1365 = vst [vmem:[%s1263 + $0x320] sm:$0xff] %v1364
                %v1366 = vld [vmem:[%s1262 + $0x198] sm:$0xff]
                %1367 = vst [vmem:[%s1263 + $0x330] sm:$0xff] %v1366
                %v1368 = vld [vmem:[%s1262 + $0x1a0] sm:$0xff]
                %1369 = vst [vmem:[%s1263 + $0x340] sm:$0xff] %v1368
                %v1370 = vld [vmem:[%s1262 + $0x1a8] sm:$0xff]
                %1371 = vst [vmem:[%s1263 + $0x350] sm:$0xff] %v1370
                %v1372 = vld [vmem:[%s1262 + $0x1b0] sm:$0xff]
                %1373 = vst [vmem:[%s1263 + $0x360] sm:$0xff] %v1372
                %v1374 = vld [vmem:[%s1262 + $0x1b8] sm:$0xff]
                %1375 = vst [vmem:[%s1263 + $0x370] sm:$0xff] %v1374
                %v1376 = vld [vmem:[%s1262 + $0x1c0] sm:$0xff]
                %1377 = vst [vmem:[%s1263 + $0x380] sm:$0xff] %v1376
                %v1378 = vld [vmem:[%s1262 + $0x1c8] sm:$0xff]
                %1379 = vst [vmem:[%s1263 + $0x390] sm:$0xff] %v1378
                %v1380 = vld [vmem:[%s1262 + $0x1d0] sm:$0xff]
                %1381 = vst [vmem:[%s1263 + $0x3a0] sm:$0xff] %v1380
                %v1382 = vld [vmem:[%s1262 + $0x1d8] sm:$0xff]
                %1383 = vst [vmem:[%s1263 + $0x3b0] sm:$0xff] %v1382
                %v1384 = vld [vmem:[%s1262 + $0x1e0] sm:$0xff]
                %1385 = vst [vmem:[%s1263 + $0x3c0] sm:$0xff] %v1384
                %v1386 = vld [vmem:[%s1262 + $0x1e8] sm:$0xff]
                %1387 = vst [vmem:[%s1263 + $0x3d0] sm:$0xff] %v1386
                %v1388 = vld [vmem:[%s1262 + $0x1f0] sm:$0xff]
                %1389 = vst [vmem:[%s1263 + $0x3e0] sm:$0xff] %v1388
                %v1390 = vld [vmem:[%s1262 + $0x1f8] sm:$0xff]
                %1391 = vst [vmem:[%s1263 + $0x3f0] sm:$0xff] %v1390
                %v1392 = vld [vmem:[%s1262 + $0x200] sm:$0xff]
                %1393 = vst [vmem:[%s1263 + $0x400] sm:$0xff] %v1392
                %v1394 = vld [vmem:[%s1262 + $0x208] sm:$0xff]
                %1395 = vst [vmem:[%s1263 + $0x410] sm:$0xff] %v1394
                %v1396 = vld [vmem:[%s1262 + $0x210] sm:$0xff]
                %1397 = vst [vmem:[%s1263 + $0x420] sm:$0xff] %v1396
                %v1398 = vld [vmem:[%s1262 + $0x218] sm:$0xff]
                %1399 = vst [vmem:[%s1263 + $0x430] sm:$0xff] %v1398
                %v1400 = vld [vmem:[%s1262 + $0x220] sm:$0xff]
                %1401 = vst [vmem:[%s1263 + $0x440] sm:$0xff] %v1400
                %v1402 = vld [vmem:[%s1262 + $0x228] sm:$0xff]
                %1403 = vst [vmem:[%s1263 + $0x450] sm:$0xff] %v1402
                %v1404 = vld [vmem:[%s1262 + $0x230] sm:$0xff]
                %1405 = vst [vmem:[%s1263 + $0x460] sm:$0xff] %v1404
                %v1406 = vld [vmem:[%s1262 + $0x238] sm:$0xff]
                %1407 = vst [vmem:[%s1263 + $0x470] sm:$0xff] %v1406
                %v1408 = vld [vmem:[%s1262 + $0x240] sm:$0xff]
                %1409 = vst [vmem:[%s1263 + $0x480] sm:$0xff] %v1408
                %v1410 = vld [vmem:[%s1262 + $0x248] sm:$0xff]
                %1411 = vst [vmem:[%s1263 + $0x490] sm:$0xff] %v1410
                %v1412 = vld [vmem:[%s1262 + $0x250] sm:$0xff]
                %1413 = vst [vmem:[%s1263 + $0x4a0] sm:$0xff] %v1412
                %v1414 = vld [vmem:[%s1262 + $0x258] sm:$0xff]
                %1415 = vst [vmem:[%s1263 + $0x4b0] sm:$0xff] %v1414
                %v1416 = vld [vmem:[%s1262 + $0x260] sm:$0xff]
                %1417 = vst [vmem:[%s1263 + $0x4c0] sm:$0xff] %v1416
                %v1418 = vld [vmem:[%s1262 + $0x268] sm:$0xff]
                %1419 = vst [vmem:[%s1263 + $0x4d0] sm:$0xff] %v1418
                %v1420 = vld [vmem:[%s1262 + $0x270] sm:$0xff]
                %1421 = vst [vmem:[%s1263 + $0x4e0] sm:$0xff] %v1420
                %v1422 = vld [vmem:[%s1262 + $0x278] sm:$0xff]
                %1423 = vst [vmem:[%s1263 + $0x4f0] sm:$0xff] %v1422
                %v1424 = vld [vmem:[%s1262 + $0x280] sm:$0xff]
                %1425 = vst [vmem:[%s1263 + $0x500] sm:$0xff] %v1424
                %v1426 = vld [vmem:[%s1262 + $0x288] sm:$0xff]
                %1427 = vst [vmem:[%s1263 + $0x510] sm:$0xff] %v1426
                %v1428 = vld [vmem:[%s1262 + $0x290] sm:$0xff]
                %1429 = vst [vmem:[%s1263 + $0x520] sm:$0xff] %v1428
                %v1430 = vld [vmem:[%s1262 + $0x298] sm:$0xff]
                %1431 = vst [vmem:[%s1263 + $0x530] sm:$0xff] %v1430
                %v1432 = vld [vmem:[%s1262 + $0x2a0] sm:$0xff]
                %1433 = vst [vmem:[%s1263 + $0x540] sm:$0xff] %v1432
                %v1434 = vld [vmem:[%s1262 + $0x2a8] sm:$0xff]
                %1435 = vst [vmem:[%s1263 + $0x550] sm:$0xff] %v1434
                %v1436 = vld [vmem:[%s1262 + $0x2b0] sm:$0xff]
                %1437 = vst [vmem:[%s1263 + $0x560] sm:$0xff] %v1436
                %v1438 = vld [vmem:[%s1262 + $0x2b8] sm:$0xff]
                %1439 = vst [vmem:[%s1263 + $0x570] sm:$0xff] %v1438
                %v1440 = vld [vmem:[%s1262 + $0x2c0] sm:$0xff]
                %1441 = vst [vmem:[%s1263 + $0x580] sm:$0xff] %v1440
                %v1442 = vld [vmem:[%s1262 + $0x2c8] sm:$0xff]
                %1443 = vst [vmem:[%s1263 + $0x590] sm:$0xff] %v1442
                %v1444 = vld [vmem:[%s1262 + $0x2d0] sm:$0xff]
                %1445 = vst [vmem:[%s1263 + $0x5a0] sm:$0xff] %v1444
                %v1446 = vld [vmem:[%s1262 + $0x2d8] sm:$0xff]
                %1447 = vst [vmem:[%s1263 + $0x5b0] sm:$0xff] %v1446
                %v1448 = vld [vmem:[%s1262 + $0x2e0] sm:$0xff]
                %1449 = vst [vmem:[%s1263 + $0x5c0] sm:$0xff] %v1448
                %v1450 = vld [vmem:[%s1262 + $0x2e8] sm:$0xff]
                %1451 = vst [vmem:[%s1263 + $0x5d0] sm:$0xff] %v1450
                %v1452 = vld [vmem:[%s1262 + $0x2f0] sm:$0xff]
                %1453 = vst [vmem:[%s1263 + $0x5e0] sm:$0xff] %v1452
                %v1454 = vld [vmem:[%s1262 + $0x2f8] sm:$0xff]
                %1455 = vst [vmem:[%s1263 + $0x5f0] sm:$0xff] %v1454
                %v1456 = vld [vmem:[%s1262 + $0x300] sm:$0xff]
                %1457 = vst [vmem:[%s1263 + $0x600] sm:$0xff] %v1456
                %v1458 = vld [vmem:[%s1262 + $0x308] sm:$0xff]
                %1459 = vst [vmem:[%s1263 + $0x610] sm:$0xff] %v1458
                %v1460 = vld [vmem:[%s1262 + $0x310] sm:$0xff]
                %1461 = vst [vmem:[%s1263 + $0x620] sm:$0xff] %v1460
                %v1462 = vld [vmem:[%s1262 + $0x318] sm:$0xff]
                %1463 = vst [vmem:[%s1263 + $0x630] sm:$0xff] %v1462
                %v1464 = vld [vmem:[%s1262 + $0x320] sm:$0xff]
                %1465 = vst [vmem:[%s1263 + $0x640] sm:$0xff] %v1464
                %v1466 = vld [vmem:[%s1262 + $0x328] sm:$0xff]
                %1467 = vst [vmem:[%s1263 + $0x650] sm:$0xff] %v1466
                %v1468 = vld [vmem:[%s1262 + $0x330] sm:$0xff]
                %1469 = vst [vmem:[%s1263 + $0x660] sm:$0xff] %v1468
                %v1470 = vld [vmem:[%s1262 + $0x338] sm:$0xff]
                %1471 = vst [vmem:[%s1263 + $0x670] sm:$0xff] %v1470
                %v1472 = vld [vmem:[%s1262 + $0x340] sm:$0xff]
                %1473 = vst [vmem:[%s1263 + $0x680] sm:$0xff] %v1472
                %v1474 = vld [vmem:[%s1262 + $0x348] sm:$0xff]
                %1475 = vst [vmem:[%s1263 + $0x690] sm:$0xff] %v1474
                %v1476 = vld [vmem:[%s1262 + $0x350] sm:$0xff]
                %1477 = vst [vmem:[%s1263 + $0x6a0] sm:$0xff] %v1476
                %v1478 = vld [vmem:[%s1262 + $0x358] sm:$0xff]
                %1479 = vst [vmem:[%s1263 + $0x6b0] sm:$0xff] %v1478
                %v1480 = vld [vmem:[%s1262 + $0x360] sm:$0xff]
                %1481 = vst [vmem:[%s1263 + $0x6c0] sm:$0xff] %v1480
                %v1482 = vld [vmem:[%s1262 + $0x368] sm:$0xff]
                %1483 = vst [vmem:[%s1263 + $0x6d0] sm:$0xff] %v1482
                %v1484 = vld [vmem:[%s1262 + $0x370] sm:$0xff]
                %1485 = vst [vmem:[%s1263 + $0x6e0] sm:$0xff] %v1484
                %v1486 = vld [vmem:[%s1262 + $0x378] sm:$0xff]
                %1487 = vst [vmem:[%s1263 + $0x6f0] sm:$0xff] %v1486
                %v1488 = vld [vmem:[%s1262 + $0x380] sm:$0xff]
                %1489 = vst [vmem:[%s1263 + $0x700] sm:$0xff] %v1488
                %v1490 = vld [vmem:[%s1262 + $0x388] sm:$0xff]
                %1491 = vst [vmem:[%s1263 + $0x710] sm:$0xff] %v1490
                %v1492 = vld [vmem:[%s1262 + $0x390] sm:$0xff]
                %1493 = vst [vmem:[%s1263 + $0x720] sm:$0xff] %v1492
                %v1494 = vld [vmem:[%s1262 + $0x398] sm:$0xff]
                %1495 = vst [vmem:[%s1263 + $0x730] sm:$0xff] %v1494
              $region87: #{correlation_forward.1} parent=81 // loop_footer
                %s1261 = sadd.s32 1, %s1257
              $region88: #{correlation_forward.1} parent=81 // loop_footer_branch
                %1256 = sbr.rel target = $region84
              $region89: #{correlation_forward.1} parent=81 // loop_exit
                _
            $region82: #{correlation_forward.1} parent=73 // pred_fallthru
              _
          $region74: #{correlation_forward.1} parent=69 // pred_fallthru
            _
          %1740 = vnop
        $region70: #{correlation_forward.1} parent=61 // pred_fallthru
          _
      $region62: #{correlation_forward.1} parent=5 // pred_fallthru
        _
      %p1741 = scmp.le.s32.totalorder 2, %s8
      // Predicated region
      $region105: #{correlation_forward.1} parent=5 // pred_check
        %p1742 = pneg %p1741
      $region106: #{correlation_forward.1} parent=5 // pred_check_branch
        %1744 = sbr.rel (%p1742) target = $region108
      $region107: #{correlation_forward.1} parent=5 // pred_region
        %s1745 = ssub.s32 %s8, 2
        // Predicated region
        $region109: #{correlation_forward.1} parent=107 // pred_check
          %p1746 = pneg %p107
        $region110: #{correlation_forward.1} parent=107 // pred_check_branch
          %1748 = sbr.rel (%p1746) target = $region112
        $region111: #{correlation_forward.1} parent=107 // pred_region
          %s1749 = sand.u32 %s92, 1
          %s1750 = sand.u32 %s92, 1
          %s1751 = smul.addr %s1750, 928
          %s1752 = scalar_lea.vmem [#allocation3], %s1751
        $region112: #{correlation_forward.1} parent=107 // pred_fallthru
          _
      $region108: #{correlation_forward.1} parent=5 // pred_fallthru
        _
    $region6: #{correlation_forward.1} parent=1 // loop_footer
      %s12 = sadd.s32 1, %s8
    $region7: #{correlation_forward.1} parent=1 // loop_footer_branch
      %7 = sbr.rel target = $region3
    $region8: #{correlation_forward.1} parent=1 // loop_exit
      _

</llo_original>
